<compile_context>
chip_gen: v6e
topology: v6e:2x2x1
jax: 0.10.0
libtpu: 0.0.40
codegen_flags: <defaults>
</compile_context>

<pallas_src>
import functools
import itertools

import jax
import jax.numpy as jnp
from jax.experimental import pallas as pl
from jax.experimental.pallas import tpu as pltpu


def _round_up(v, m):
    return ((v + m - 1) // m) * m


# -----------------------------------------------------------------------------
# Phase 1 kernel: spline aggregation + root term + skip linear + per-tile BN sums
# -----------------------------------------------------------------------------
def _phase1_kernel(
    a_ref,      # [K, TILE, Np] bf16  basis-weighted, mean-normalized adjacency rows
    x_ref,      # [Np, Cp]      bf16  all node features (grid-invariant)
    wm_ref,     # [K*Cp, Op]    bf16  merged spline weights
    wr_ref,     # [Cp, Op]      bf16  root weight
    xs_ref,     # [TILE, Sp]    bf16  skip features (this tile)
    wl_ref,     # [Sp, Op]      bf16  skip linear weight
    conv_ref,   # [TILE, Op]    f32   pre-BN conv branch (out)
    skip_ref,   # [TILE, Op]    f32   pre-BN skip branch (out)
    stat_ref,   # [8, Op]       f32   per-tile BN partial sums (out)
    y_scr,      # [TILE, K*Cp]  bf16  scratch: aggregated features, K column blocks
    *,
    tile_rows,
    cp,
    num_k,
):
    x = x_ref[...]                                    # [Np, Cp]

    # K neighborhood aggregations: y[:, k*Cp:(k+1)*Cp] = A_k[tile] @ X
    for k in range(num_k):
        y_scr[:, k * cp:(k + 1) * cp] = jnp.dot(
            a_ref[k], x, preferred_element_type=jnp.float32
        ).astype(jnp.bfloat16)

    # Root term on this tile's rows of x.
    row0 = pl.multiple_of(pl.program_id(0) * tile_rows, tile_rows)
    x_tile = x_ref[pl.ds(row0, tile_rows), :]
    conv = jnp.dot(x_tile, wr_ref[...], preferred_element_type=jnp.float32)

    # Single merged weight matmul, contraction depth K*Cp.
    conv = conv + jnp.dot(y_scr[...], wm_ref[...], preferred_element_type=jnp.float32)

    # Skip branch.
    skip = jnp.dot(xs_ref[...], wl_ref[...], preferred_element_type=jnp.float32)

    conv_ref[...] = conv
    skip_ref[...] = skip

    # Per-tile BatchNorm partial statistics (padded rows are exactly zero, so
    # the host-side division by the real node count gives exact mean/variance).
    op = conv.shape[1]
    stat_ref[...] = jnp.concatenate(
        [
            jnp.sum(conv, axis=0, keepdims=True),
            jnp.sum(conv * conv, axis=0, keepdims=True),
            jnp.sum(skip, axis=0, keepdims=True),
            jnp.sum(skip * skip, axis=0, keepdims=True),
            jnp.zeros((4, op), jnp.float32),
        ],
        axis=0,
    )


def _phase1(A, x, w_merged, w_root, xs, w_lin, *, tile_rows):
    K, Np, _ = A.shape
    Cp = x.shape[1]
    Op = w_root.shape[1]
    Sp = xs.shape[1]
    KCp = w_merged.shape[0]
    n_tiles = Np // tile_rows

    kernel = functools.partial(_phase1_kernel, tile_rows=tile_rows, cp=Cp, num_k=K)

    vmem = (
        2 * K * tile_rows * Np * 2      # A tile, double-buffered (pipelined)
        + 2 * Np * Cp * 2               # x (grid-invariant)
        + 2 * KCp * Op * 2              # merged spline weights
        + 2 * Cp * Op * 2               # root weight
        + 2 * tile_rows * Sp * 2        # skip features tile
        + 2 * Sp * Op * 2               # skip weight
        + 2 * 2 * tile_rows * Op * 4    # conv_pre + skip_pre output tiles
        + 2 * 8 * Op * 4                # stats tile
        + tile_rows * KCp * 2           # y scratch
    )
    vmem = int(min(1.5 * vmem + (2 << 20), 100 * 1024 * 1024))

    return pl.pallas_call(
        kernel,
        out_shape=(
            jax.ShapeDtypeStruct((Np, Op), jnp.float32),
            jax.ShapeDtypeStruct((Np, Op), jnp.float32),
            jax.ShapeDtypeStruct((n_tiles * 8, Op), jnp.float32),
        ),
        grid_spec=pltpu.PrefetchScalarGridSpec(
            num_scalar_prefetch=0,
            grid=(n_tiles,),
            in_specs=[
                pl.BlockSpec((K, tile_rows, Np), lambda i: (0, i, 0)),
                pl.BlockSpec((Np, Cp), lambda i: (0, 0)),
                pl.BlockSpec((KCp, Op), lambda i: (0, 0)),
                pl.BlockSpec((Cp, Op), lambda i: (0, 0)),
                pl.BlockSpec((tile_rows, Sp), lambda i: (i, 0)),
                pl.BlockSpec((Sp, Op), lambda i: (0, 0)),
            ],
            out_specs=[
                pl.BlockSpec((tile_rows, Op), lambda i: (i, 0)),
                pl.BlockSpec((tile_rows, Op), lambda i: (i, 0)),
                pl.BlockSpec((8, Op), lambda i: (i, 0)),
            ],
            scratch_shapes=[pltpu.VMEM((tile_rows, KCp), jnp.bfloat16)],
        ),
        compiler_params=pltpu.CompilerParams(
            dimension_semantics=("parallel",),
            vmem_limit_bytes=vmem,
        ),
    )(A, x, w_merged, w_root, xs, w_lin)


# -----------------------------------------------------------------------------
# Phase 2 kernel: folded double-BatchNorm + residual add + ELU
# -----------------------------------------------------------------------------
def _phase2_kernel(conv_ref, skip_ref, sc_ref, o_ref):
    s1 = sc_ref[0:1, :]
    s2 = sc_ref[1:2, :]
    b = sc_ref[2:3, :]
    z = conv_ref[...] * s1 + skip_ref[...] * s2 + b
    o_ref[...] = jnp.where(z > 0.0, z, jnp.exp(z) - 1.0).astype(o_ref.dtype)


def _phase2(conv_pre, skip_pre, scale, *, tile_rows):
    Np, Op = conv_pre.shape
    n_tiles = Np // tile_rows
    vmem = 2 * 2 * tile_rows * Op * 4 + 2 * 8 * Op * 4 + 2 * tile_rows * Op * 2
    vmem = int(min(1.5 * vmem + (2 << 20), 100 * 1024 * 1024))
    return pl.pallas_call(
        _phase2_kernel,
        out_shape=jax.ShapeDtypeStruct((Np, Op), jnp.bfloat16),
        grid_spec=pltpu.PrefetchScalarGridSpec(
            num_scalar_prefetch=0,
            grid=(n_tiles,),
            in_specs=[
                pl.BlockSpec((tile_rows, Op), lambda i: (i, 0)),
                pl.BlockSpec((tile_rows, Op), lambda i: (i, 0)),
                pl.BlockSpec((8, Op), lambda i: (0, 0)),
            ],
            out_specs=pl.BlockSpec((tile_rows, Op), lambda i: (i, 0)),
        ),
        compiler_params=pltpu.CompilerParams(
            dimension_semantics=("parallel",),
            vmem_limit_bytes=vmem,
        ),
    )(conv_pre, skip_pre, scale)


# -----------------------------------------------------------------------------
# Plain-JAX glue: degree-1 open B-spline basis and O(E*K) scatter-built,
# basis-weighted, mean-normalized adjacency A[k, i, j].
# -----------------------------------------------------------------------------
def spline_basis_degree1(edge_attr, kernel_size, dim):
    m = kernel_size
    E = edge_attr.shape[0]
    p = edge_attr.astype(jnp.float32) * (m - 1)
    lo = jnp.clip(jnp.floor(p).astype(jnp.int32), 0, m - 1)
    frac = p - lo.astype(jnp.float32)
    hi = jnp.clip(lo + 1, 0, m - 1)
    K = m ** dim
    basis = jnp.zeros((E, K), jnp.float32)
    rows = jnp.arange(E)
    for bits in itertools.product((0, 1), repeat=dim):
        w = jnp.ones((E,), jnp.float32)
        idx = jnp.zeros((E,), jnp.int32)
        for d, b in enumerate(bits):
            w = w * (frac[:, d] if b else (1.0 - frac[:, d]))
            idx = idx * m + (hi[:, d] if b else lo[:, d])
        basis = basis.at[rows, idx].add(w)
    return basis  # [E, K]


def build_basis_adjacency(edge_index, basis, num_nodes, n_pad):
    """A[k, i, j] = sum_e basis[e,k] * [dst_e==i] * [src_e==j] / max(in_deg_i, 1)."""
    src = edge_index[0].astype(jnp.int32)
    dst = edge_index[1].astype(jnp.int32)
    E, K = basis.shape
    deg = jnp.zeros((num_nodes,), jnp.float32).at[dst].add(1.0)
    vals = basis / jnp.maximum(deg, 1.0)[dst][:, None]          # [E, K]
    k_idx = jnp.arange(K, dtype=jnp.int32)
    A = jnp.zeros((K, n_pad, n_pad), jnp.float32)
    A = A.at[k_idx[None, :], dst[:, None], src[:, None]].add(vals)
    return A


# -----------------------------------------------------------------------------
# Full ConvBlockWithSkip forward
# -----------------------------------------------------------------------------
def conv_block_with_skip(x, edge_index, edge_attr, x_skip, params, *,
                         kernel_size, dim, tile_rows=128):
    N, Cin = x.shape
    Cskip = x_skip.shape[1]
    Cout = params["W_root"].shape[1]
    K = kernel_size ** dim
    eps = 1e-5

    Np = _round_up(max(N, tile_rows), tile_rows)   # node dim, 128-aligned
    Cp = _round_up(Cin, 128)
    Sp = _round_up(Cskip, 128)
    Op = _round_up(Cout, 128)

    basis = spline_basis_degree1(edge_attr, kernel_size, dim)          # [E, K]
    A = build_basis_adjacency(edge_index, basis, N, Np).astype(jnp.bfloat16)

    def pad2(a, r, c):
        return jnp.pad(a.astype(jnp.bfloat16),
                       ((0, r - a.shape[0]), (0, c - a.shape[1])))

    x_p = pad2(x, Np, Cp)
    xs_p = pad2(x_skip, Np, Sp)
    wr_p = pad2(params["W_root"], Cp, Op)
    wl_p = pad2(params["W_lin"], Sp, Op)
    w_merged = jnp.pad(
        params["W_spline"].astype(jnp.bfloat16),
        ((0, 0), (0, Cp - Cin), (0, Op - Cout)),
    ).reshape(K * Cp, Op)

    conv_pre, skip_pre, stats = _phase1(
        A, x_p, w_merged, wr_p, xs_p, wl_p, tile_rows=tile_rows)

    # Fold BatchNorm (training-mode batch stats over the N real nodes) + affine
    # into per-channel scale/shift.  Tiny [Op]-sized math, done in plain JAX.
    tot = stats.reshape(-1, 8, Op).sum(axis=0)
    inv_n = 1.0 / N
    mu_c, ex2_c = tot[0] * inv_n, tot[1] * inv_n
    mu_s, ex2_s = tot[2] * inv_n, tot[3] * inv_n
    var_c = jnp.maximum(ex2_c - mu_c * mu_c, 0.0)
    var_s = jnp.maximum(ex2_s - mu_s * mu_s, 0.0)

    def padv(v):
        return jnp.pad(v.reshape(-1).astype(jnp.float32), (0, Op - Cout))

    g_c, b_c = padv(params["bn_gamma"]), padv(params["bn_beta"])
    g_s, b_s = padv(params["bn_skip_gamma"]), padv(params["bn_skip_beta"])
    s1 = g_c * jax.lax.rsqrt(var_c + eps)
    s2 = g_s * jax.lax.rsqrt(var_s + eps)
    bias = b_c + b_s - mu_c * s1 - mu_s * s2
    scale = jnp.zeros((8, Op), jnp.float32).at[0].set(s1).at[1].set(s2).at[2].set(bias)

    out_p = _phase2(conv_pre, skip_pre, scale, tile_rows=tile_rows)
    return out_p[:N, :Cout]   # bf16; cast downstream if f32 is required


if __name__ == "__main__":
    # Small synthetic graph consistent with the module's forward (2 node tiles).
    N = 200               # number of nodes
    E = 400               # number of edges
    in_channel = 16
    out_channel = 32
    skip_in_channel = 8
    edge_attr_dim = 2     # args.edge_attr_dim
    kernel_size = 3       # spline kernel size per pseudo-coordinate dim
    K = kernel_size ** edge_attr_dim

    key = jax.random.PRNGKey(0)
    k_x, k_skip, k_ei, k_ea, k_ws, k_wr, k_wl = jax.random.split(key, 7)

    x = jax.random.normal(k_x, (N, in_channel), dtype=jnp.float32)
    x_skip = jax.random.normal(k_skip, (N, skip_in_channel), dtype=jnp.float32)
    edge_index = jax.random.randint(k_ei, (2, E), 0, N, dtype=jnp.int32)
    edge_attr = jax.random.uniform(k_ea, (E, edge_attr_dim), dtype=jnp.float32)

    params = {
        # SplineConv weights: [K, in, out], root weight [in, out], bias=False
        "W_spline": 0.1 * jax.random.normal(k_ws, (K, in_channel, out_channel), jnp.float32),
        "W_root": 0.1 * jax.random.normal(k_wr, (in_channel, out_channel), jnp.float32),
        # skip Linear (bias=False)
        "W_lin": 0.1 * jax.random.normal(k_wl, (skip_in_channel, out_channel), jnp.float32),
        # BatchNorm affine params (fresh init: gamma=1, beta=0)
        "bn_gamma": jnp.ones((out_channel,), jnp.float32),
        "bn_beta": jnp.zeros((out_channel,), jnp.float32),
        "bn_skip_gamma": jnp.ones((out_channel,), jnp.float32),
        "bn_skip_beta": jnp.zeros((out_channel,), jnp.float32),
    }

    out = conv_block_with_skip(
        x, edge_index, edge_attr, x_skip, params,
        kernel_size=kernel_size, dim=edge_attr_dim,
    )
    out = jax.block_until_ready(out)
    assert out.shape == (N, out_channel)
    assert bool(jnp.all(jnp.isfinite(out.astype(jnp.float32))))
    print("KERNEL_OK")
</pallas_src>

<mosaic_0001>
module attributes {stable_mosaic.version = 11 : i64} {
  func.func @_phase1_kernel(%arg0: i32, %arg1: memref<9x128x256xbf16, #tpu.memory_space<vmem>>, %arg2: memref<256x128xbf16, #tpu.memory_space<vmem>>, %arg3: memref<1152x128xbf16, #tpu.memory_space<vmem>>, %arg4: memref<128x128xbf16, #tpu.memory_space<vmem>>, %arg5: memref<128x128xbf16, #tpu.memory_space<vmem>>, %arg6: memref<128x128xbf16, #tpu.memory_space<vmem>>, %arg7: memref<128x128xf32, #tpu.memory_space<vmem>>, %arg8: memref<128x128xf32, #tpu.memory_space<vmem>>, %arg9: memref<8x128xf32, #tpu.memory_space<vmem>>, %arg10: memref<128x1152xbf16, #tpu.memory_space<vmem>>) attributes {dimension_semantics = [#tpu.dimension_semantics<parallel>], iteration_bounds = array<i64: 2>, scalar_prefetch = 0 : i64, scratch_operands = 1 : i64, tpu.core_type = #tpu.core_type<tc>, window_params = [{transform_indices = @transform_0, window_bounds = array<i64: 9, 128, 256>}, {pipeline_mode = #tpu.pipeline_mode<synchronous>, transform_indices = @transform_1, window_bounds = array<i64: 256, 128>}, {pipeline_mode = #tpu.pipeline_mode<synchronous>, transform_indices = @transform_2, window_bounds = array<i64: 1152, 128>}, {pipeline_mode = #tpu.pipeline_mode<synchronous>, transform_indices = @transform_3, window_bounds = array<i64: 128, 128>}, {transform_indices = @transform_4, window_bounds = array<i64: 128, 128>}, {pipeline_mode = #tpu.pipeline_mode<synchronous>, transform_indices = @transform_5, window_bounds = array<i64: 128, 128>}, {transform_indices = @transform_6, window_bounds = array<i64: 128, 128>}, {transform_indices = @transform_7, window_bounds = array<i64: 128, 128>}, {transform_indices = @transform_8, window_bounds = array<i64: 8, 128>}]} {
    %c0 = arith.constant 0 : index
    %c0_0 = arith.constant 0 : index
    %0 = vector.load %arg2[%c0, %c0_0] : memref<256x128xbf16, #tpu.memory_space<vmem>>, vector<256x128xbf16>
    %c0_1 = arith.constant 0 : index
    %c0_2 = arith.constant 0 : index
    %c0_3 = arith.constant 0 : index
    %1 = vector.load %arg1[%c0_1, %c0_2, %c0_3] : memref<9x128x256xbf16, #tpu.memory_space<vmem>>, vector<1x128x256xbf16>
    %2 = vector.shape_cast %1 : vector<1x128x256xbf16> to vector<128x256xbf16>
    %cst = arith.constant dense<0.000000e+00> : vector<128x128xf32>
    %3 = tpu.matmul %2, %0, %cst {dimension_numbers = #tpu.dot_dimension_numbers<[1], [0], [0], [1], [0, 0, 1, 1], [], []>} : vector<128x256xbf16>, vector<256x128xbf16>, vector<128x128xf32> -> vector<128x128xf32>
    %4 = arith.truncf %3 : vector<128x128xf32> to vector<128x128xbf16>
    %c0_4 = arith.constant 0 : index
    %c0_5 = arith.constant 0 : index
    %5 = vector.load %arg10[%c0_4, %c0_5] : memref<128x1152xbf16, #tpu.memory_space<vmem>>, vector<128x128xbf16>
    tpu.vector_store %arg10[%c0_4, %c0_5], %4 {strides = array<i32>} : memref<128x1152xbf16, #tpu.memory_space<vmem>>, vector<128x128xbf16>,
    %c1 = arith.constant 1 : index
    %c0_6 = arith.constant 0 : index
    %c0_7 = arith.constant 0 : index
    %6 = vector.load %arg1[%c1, %c0_6, %c0_7] : memref<9x128x256xbf16, #tpu.memory_space<vmem>>, vector<1x128x256xbf16>
    %7 = vector.shape_cast %6 : vector<1x128x256xbf16> to vector<128x256xbf16>
    %cst_8 = arith.constant dense<0.000000e+00> : vector<128x128xf32>
    %8 = tpu.matmul %7, %0, %cst_8 {dimension_numbers = #tpu.dot_dimension_numbers<[1], [0], [0], [1], [0, 0, 1, 1], [], []>} : vector<128x256xbf16>, vector<256x128xbf16>, vector<128x128xf32> -> vector<128x128xf32>
    %9 = arith.truncf %8 : vector<128x128xf32> to vector<128x128xbf16>
    %c0_9 = arith.constant 0 : index
    %c128 = arith.constant 128 : index
    %10 = vector.load %arg10[%c0_9, %c128] : memref<128x1152xbf16, #tpu.memory_space<vmem>>, vector<128x128xbf16>
    tpu.vector_store %arg10[%c0_9, %c128], %9 {strides = array<i32>} : memref<128x1152xbf16, #tpu.memory_space<vmem>>, vector<128x128xbf16>,
    %c2 = arith.constant 2 : index
    %c0_10 = arith.constant 0 : index
    %c0_11 = arith.constant 0 : index
    %11 = vector.load %arg1[%c2, %c0_10, %c0_11] : memref<9x128x256xbf16, #tpu.memory_space<vmem>>, vector<1x128x256xbf16>
    %12 = vector.shape_cast %11 : vector<1x128x256xbf16> to vector<128x256xbf16>
    %cst_12 = arith.constant dense<0.000000e+00> : vector<128x128xf32>
    %13 = tpu.matmul %12, %0, %cst_12 {dimension_numbers = #tpu.dot_dimension_numbers<[1], [0], [0], [1], [0, 0, 1, 1], [], []>} : vector<128x256xbf16>, vector<256x128xbf16>, vector<128x128xf32> -> vector<128x128xf32>
    %14 = arith.truncf %13 : vector<128x128xf32> to vector<128x128xbf16>
    %c0_13 = arith.constant 0 : index
    %c256 = arith.constant 256 : index
    %15 = vector.load %arg10[%c0_13, %c256] : memref<128x1152xbf16, #tpu.memory_space<vmem>>, vector<128x128xbf16>
    tpu.vector_store %arg10[%c0_13, %c256], %14 {strides = array<i32>} : memref<128x1152xbf16, #tpu.memory_space<vmem>>, vector<128x128xbf16>,
    %c3 = arith.constant 3 : index
    %c0_14 = arith.constant 0 : index
    %c0_15 = arith.constant 0 : index
    %16 = vector.load %arg1[%c3, %c0_14, %c0_15] : memref<9x128x256xbf16, #tpu.memory_space<vmem>>, vector<1x128x256xbf16>
    %17 = vector.shape_cast %16 : vector<1x128x256xbf16> to vector<128x256xbf16>
    %cst_16 = arith.constant dense<0.000000e+00> : vector<128x128xf32>
    %18 = tpu.matmul %17, %0, %cst_16 {dimension_numbers = #tpu.dot_dimension_numbers<[1], [0], [0], [1], [0, 0, 1, 1], [], []>} : vector<128x256xbf16>, vector<256x128xbf16>, vector<128x128xf32> -> vector<128x128xf32>
    %19 = arith.truncf %18 : vector<128x128xf32> to vector<128x128xbf16>
    %c0_17 = arith.constant 0 : index
    %c384 = arith.constant 384 : index
    %20 = vector.load %arg10[%c0_17, %c384] : memref<128x1152xbf16, #tpu.memory_space<vmem>>, vector<128x128xbf16>
    tpu.vector_store %arg10[%c0_17, %c384], %19 {strides = array<i32>} : memref<128x1152xbf16, #tpu.memory_space<vmem>>, vector<128x128xbf16>,
    %c4 = arith.constant 4 : index
    %c0_18 = arith.constant 0 : index
    %c0_19 = arith.constant 0 : index
    %21 = vector.load %arg1[%c4, %c0_18, %c0_19] : memref<9x128x256xbf16, #tpu.memory_space<vmem>>, vector<1x128x256xbf16>
    %22 = vector.shape_cast %21 : vector<1x128x256xbf16> to vector<128x256xbf16>
    %cst_20 = arith.constant dense<0.000000e+00> : vector<128x128xf32>
    %23 = tpu.matmul %22, %0, %cst_20 {dimension_numbers = #tpu.dot_dimension_numbers<[1], [0], [0], [1], [0, 0, 1, 1], [], []>} : vector<128x256xbf16>, vector<256x128xbf16>, vector<128x128xf32> -> vector<128x128xf32>
    %24 = arith.truncf %23 : vector<128x128xf32> to vector<128x128xbf16>
    %c0_21 = arith.constant 0 : index
    %c512 = arith.constant 512 : index
    %25 = vector.load %arg10[%c0_21, %c512] : memref<128x1152xbf16, #tpu.memory_space<vmem>>, vector<128x128xbf16>
    tpu.vector_store %arg10[%c0_21, %c512], %24 {strides = array<i32>} : memref<128x1152xbf16, #tpu.memory_space<vmem>>, vector<128x128xbf16>,
    %c5 = arith.constant 5 : index
    %c0_22 = arith.constant 0 : index
    %c0_23 = arith.constant 0 : index
    %26 = vector.load %arg1[%c5, %c0_22, %c0_23] : memref<9x128x256xbf16, #tpu.memory_space<vmem>>, vector<1x128x256xbf16>
    %27 = vector.shape_cast %26 : vector<1x128x256xbf16> to vector<128x256xbf16>
    %cst_24 = arith.constant dense<0.000000e+00> : vector<128x128xf32>
    %28 = tpu.matmul %27, %0, %cst_24 {dimension_numbers = #tpu.dot_dimension_numbers<[1], [0], [0], [1], [0, 0, 1, 1], [], []>} : vector<128x256xbf16>, vector<256x128xbf16>, vector<128x128xf32> -> vector<128x128xf32>
    %29 = arith.truncf %28 : vector<128x128xf32> to vector<128x128xbf16>
    %c0_25 = arith.constant 0 : index
    %c640 = arith.constant 640 : index
    %30 = vector.load %arg10[%c0_25, %c640] : memref<128x1152xbf16, #tpu.memory_space<vmem>>, vector<128x128xbf16>
    tpu.vector_store %arg10[%c0_25, %c640], %29 {strides = array<i32>} : memref<128x1152xbf16, #tpu.memory_space<vmem>>, vector<128x128xbf16>,
    %c6 = arith.constant 6 : index
    %c0_26 = arith.constant 0 : index
    %c0_27 = arith.constant 0 : index
    %31 = vector.load %arg1[%c6, %c0_26, %c0_27] : memref<9x128x256xbf16, #tpu.memory_space<vmem>>, vector<1x128x256xbf16>
    %32 = vector.shape_cast %31 : vector<1x128x256xbf16> to vector<128x256xbf16>
    %cst_28 = arith.constant dense<0.000000e+00> : vector<128x128xf32>
    %33 = tpu.matmul %32, %0, %cst_28 {dimension_numbers = #tpu.dot_dimension_numbers<[1], [0], [0], [1], [0, 0, 1, 1], [], []>} : vector<128x256xbf16>, vector<256x128xbf16>, vector<128x128xf32> -> vector<128x128xf32>
    %34 = arith.truncf %33 : vector<128x128xf32> to vector<128x128xbf16>
    %c0_29 = arith.constant 0 : index
    %c768 = arith.constant 768 : index
    %35 = vector.load %arg10[%c0_29, %c768] : memref<128x1152xbf16, #tpu.memory_space<vmem>>, vector<128x128xbf16>
    tpu.vector_store %arg10[%c0_29, %c768], %34 {strides = array<i32>} : memref<128x1152xbf16, #tpu.memory_space<vmem>>, vector<128x128xbf16>,
    %c7 = arith.constant 7 : index
    %c0_30 = arith.constant 0 : index
    %c0_31 = arith.constant 0 : index
    %36 = vector.load %arg1[%c7, %c0_30, %c0_31] : memref<9x128x256xbf16, #tpu.memory_space<vmem>>, vector<1x128x256xbf16>
    %37 = vector.shape_cast %36 : vector<1x128x256xbf16> to vector<128x256xbf16>
    %cst_32 = arith.constant dense<0.000000e+00> : vector<128x128xf32>
    %38 = tpu.matmul %37, %0, %cst_32 {dimension_numbers = #tpu.dot_dimension_numbers<[1], [0], [0], [1], [0, 0, 1, 1], [], []>} : vector<128x256xbf16>, vector<256x128xbf16>, vector<128x128xf32> -> vector<128x128xf32>
    %39 = arith.truncf %38 : vector<128x128xf32> to vector<128x128xbf16>
    %c0_33 = arith.constant 0 : index
    %c896 = arith.constant 896 : index
    %40 = vector.load %arg10[%c0_33, %c896] : memref<128x1152xbf16, #tpu.memory_space<vmem>>, vector<128x128xbf16>
    tpu.vector_store %arg10[%c0_33, %c896], %39 {strides = array<i32>} : memref<128x1152xbf16, #tpu.memory_space<vmem>>, vector<128x128xbf16>,
    %c8 = arith.constant 8 : index
    %c0_34 = arith.constant 0 : index
    %c0_35 = arith.constant 0 : index
    %41 = vector.load %arg1[%c8, %c0_34, %c0_35] : memref<9x128x256xbf16, #tpu.memory_space<vmem>>, vector<1x128x256xbf16>
    %42 = vector.shape_cast %41 : vector<1x128x256xbf16> to vector<128x256xbf16>
    %cst_36 = arith.constant dense<0.000000e+00> : vector<128x128xf32>
    %43 = tpu.matmul %42, %0, %cst_36 {dimension_numbers = #tpu.dot_dimension_numbers<[1], [0], [0], [1], [0, 0, 1, 1], [], []>} : vector<128x256xbf16>, vector<256x128xbf16>, vector<128x128xf32> -> vector<128x128xf32>
    %44 = arith.truncf %43 : vector<128x128xf32> to vector<128x128xbf16>
    %c0_37 = arith.constant 0 : index
    %c1024 = arith.constant 1024 : index
    %45 = vector.load %arg10[%c0_37, %c1024] : memref<128x1152xbf16, #tpu.memory_space<vmem>>, vector<128x128xbf16>
    tpu.vector_store %arg10[%c0_37, %c1024], %44 {strides = array<i32>} : memref<128x1152xbf16, #tpu.memory_space<vmem>>, vector<128x128xbf16>,
    %c128_i32 = arith.constant 128 : i32
    %46 = arith.muli %arg0, %c128_i32 : i32
    %47 = tpu.assume_multiple %46, 128 : i32
    %48 = arith.index_cast %47 : i32 to index
    %c0_38 = arith.constant 0 : index
    %49 = vector.load %arg2[%48, %c0_38] : memref<256x128xbf16, #tpu.memory_space<vmem>>, vector<128x128xbf16>
    %c0_39 = arith.constant 0 : index
    %c0_40 = arith.constant 0 : index
    %50 = vector.load %arg4[%c0_39, %c0_40] : memref<128x128xbf16, #tpu.memory_space<vmem>>, vector<128x128xbf16>
    %cst_41 = arith.constant dense<0.000000e+00> : vector<128x128xf32>
    %51 = tpu.matmul %49, %50, %cst_41 {dimension_numbers = #tpu.dot_dimension_numbers<[1], [0], [0], [1], [0, 0, 1, 1], [], []>} : vector<128x128xbf16>, vector<128x128xbf16>, vector<128x128xf32> -> vector<128x128xf32>
    %c0_42 = arith.constant 0 : index
    %c0_43 = arith.constant 0 : index
    %52 = vector.load %arg10[%c0_42, %c0_43] : memref<128x1152xbf16, #tpu.memory_space<vmem>>, vector<128x1152xbf16>
    %c0_44 = arith.constant 0 : index
    %c0_45 = arith.constant 0 : index
    %53 = vector.load %arg3[%c0_44, %c0_45] : memref<1152x128xbf16, #tpu.memory_space<vmem>>, vector<1152x128xbf16>
    %cst_46 = arith.constant dense<0.000000e+00> : vector<128x128xf32>
    %54 = tpu.matmul %52, %53, %cst_46 {dimension_numbers = #tpu.dot_dimension_numbers<[1], [0], [0], [1], [0, 0, 1, 1], [], []>} : vector<128x1152xbf16>, vector<1152x128xbf16>, vector<128x128xf32> -> vector<128x128xf32>
    %55 = arith.addf %51, %54 : vector<128x128xf32>
    %c0_47 = arith.constant 0 : index
    %c0_48 = arith.constant 0 : index
    %56 = vector.load %arg5[%c0_47, %c0_48] : memref<128x128xbf16, #tpu.memory_space<vmem>>, vector<128x128xbf16>
    %c0_49 = arith.constant 0 : index
    %c0_50 = arith.constant 0 : index
    %57 = vector.load %arg6[%c0_49, %c0_50] : memref<128x128xbf16, #tpu.memory_space<vmem>>, vector<128x128xbf16>
    %cst_51 = arith.constant dense<0.000000e+00> : vector<128x128xf32>
    %58 = tpu.matmul %56, %57, %cst_51 {dimension_numbers = #tpu.dot_dimension_numbers<[1], [0], [0], [1], [0, 0, 1, 1], [], []>} : vector<128x128xbf16>, vector<128x128xbf16>, vector<128x128xf32> -> vector<128x128xf32>
    %c0_52 = arith.constant 0 : index
    %c0_53 = arith.constant 0 : index
    %59 = vector.load %arg7[%c0_52, %c0_53] : memref<128x128xf32, #tpu.memory_space<vmem>>, vector<128x128xf32>
    tpu.vector_store %arg7[%c0_52, %c0_53], %55 {strides = array<i32>} : memref<128x128xf32, #tpu.memory_space<vmem>>, vector<128x128xf32>,
    %c0_54 = arith.constant 0 : index
    %c0_55 = arith.constant 0 : index
    %60 = vector.load %arg8[%c0_54, %c0_55] : memref<128x128xf32, #tpu.memory_space<vmem>>, vector<128x128xf32>
    tpu.vector_store %arg8[%c0_54, %c0_55], %58 {strides = array<i32>} : memref<128x128xf32, #tpu.memory_space<vmem>>, vector<128x128xf32>,
    %cst_56 = arith.constant dense<0.000000e+00> : vector<128xf32>
    %61 = vector.multi_reduction <add>, %55, %cst_56 [0] : vector<128x128xf32> to vector<128xf32>
    %62 = vector.shape_cast %61 : vector<128xf32> to vector<1x128xf32>
    %63 = arith.mulf %55, %55 : vector<128x128xf32>
    %cst_57 = arith.constant dense<0.000000e+00> : vector<128xf32>
    %64 = vector.multi_reduction <add>, %63, %cst_57 [0] : vector<128x128xf32> to vector<128xf32>
    %65 = vector.shape_cast %64 : vector<128xf32> to vector<1x128xf32>
    %cst_58 = arith.constant dense<0.000000e+00> : vector<128xf32>
    %66 = vector.multi_reduction <add>, %58, %cst_58 [0] : vector<128x128xf32> to vector<128xf32>
    %67 = vector.shape_cast %66 : vector<128xf32> to vector<1x128xf32>
    %68 = arith.mulf %58, %58 : vector<128x128xf32>
    %cst_59 = arith.constant dense<0.000000e+00> : vector<128xf32>
    %69 = vector.multi_reduction <add>, %68, %cst_59 [0] : vector<128x128xf32> to vector<128xf32>
    %70 = vector.shape_cast %69 : vector<128xf32> to vector<1x128xf32>
    %cst_60 = arith.constant 0.000000e+00 : f32
    %71 = vector.broadcast %cst_60 : f32 to vector<4x128xf32>
    %72 = tpu.concatenate %62, %65, %67, %70, %71 in 0 : vector<1x128xf32>, vector<1x128xf32>, vector<1x128xf32>, vector<1x128xf32>, vector<4x128xf32> -> vector<8x128xf32>
    %c0_61 = arith.constant 0 : index
    %c0_62 = arith.constant 0 : index
    %73 = vector.load %arg9[%c0_61, %c0_62] : memref<8x128xf32, #tpu.memory_space<vmem>>, vector<8x128xf32>
    tpu.vector_store %arg9[%c0_61, %c0_62], %72 {strides = array<i32>} : memref<8x128xf32, #tpu.memory_space<vmem>>, vector<8x128xf32>,
    return
  }
  func.func @transform_0(%arg0: i32) -> (i32, i32, i32) {
    %c0_i32 = arith.constant 0 : i32
    %c0_i32_0 = arith.constant 0 : i32
    %c0_i32_1 = arith.constant 0 : i32
    return %c0_i32, %arg0, %c0_i32_0 : i32, i32, i32
  }
  func.func @transform_1(%arg0: i32) -> (i32, i32) {
    %c0_i32 = arith.constant 0 : i32
    %c0_i32_0 = arith.constant 0 : i32
    %c0_i32_1 = arith.constant 0 : i32
    return %c0_i32, %c0_i32_0 : i32, i32
  }
  func.func @transform_2(%arg0: i32) -> (i32, i32) {
    %c0_i32 = arith.constant 0 : i32
    %c0_i32_0 = arith.constant 0 : i32
    %c0_i32_1 = arith.constant 0 : i32
    return %c0_i32, %c0_i32_0 : i32, i32
  }
  func.func @transform_3(%arg0: i32) -> (i32, i32) {
    %c0_i32 = arith.constant 0 : i32
    %c0_i32_0 = arith.constant 0 : i32
    %c0_i32_1 = arith.constant 0 : i32
    return %c0_i32, %c0_i32_0 : i32, i32
  }
  func.func @transform_4(%arg0: i32) -> (i32, i32) {
    %c0_i32 = arith.constant 0 : i32
    %c0_i32_0 = arith.constant 0 : i32
    return %arg0, %c0_i32 : i32, i32
  }
  func.func @transform_5(%arg0: i32) -> (i32, i32) {
    %c0_i32 = arith.constant 0 : i32
    %c0_i32_0 = arith.constant 0 : i32
    %c0_i32_1 = arith.constant 0 : i32
    return %c0_i32, %c0_i32_0 : i32, i32
  }
  func.func @transform_6(%arg0: i32) -> (i32, i32) {
    %c0_i32 = arith.constant 0 : i32
    %c0_i32_0 = arith.constant 0 : i32
    return %arg0, %c0_i32 : i32, i32
  }
  func.func @transform_7(%arg0: i32) -> (i32, i32) {
    %c0_i32 = arith.constant 0 : i32
    %c0_i32_0 = arith.constant 0 : i32
    return %arg0, %c0_i32 : i32, i32
  }
  func.func @transform_8(%arg0: i32) -> (i32, i32) {
    %c0_i32 = arith.constant 0 : i32
    %c0_i32_0 = arith.constant 0 : i32
    return %arg0, %c0_i32 : i32, i32
  }
}

</mosaic_0001>

<llo_original>
// kernel: tpu_custom_call.1
$region0: #{tpu_custom_call.1}
  #allocation0 [shape = 'u32[]', space=smem, size = 0x4, offset = 0x4, fixed_abs, tag = 'smem constant byte address 0x4 - core index']
  #allocation1 [shape = 'u32[144,128]{1,0:T(1,128)}', space=vmem, size = 0x12000, scoped, tag = 'internal scratch']
  #allocation2 [shape = 'bf16[128,1152]{1,0:T(8,128)(2,1)}', space=vmem, size = 0x48000, scoped, tag = 'scratch operand']
  #allocation17 [shape = 's32[]', space=sflag, size = 0x4, offset = 0, fixed_abs, tag = 'sflag constant byte address 0x0 - dummy sync flag']
  %s0 = inlined_call_operand.hbm [shape: bf16[9,256,256], index: 0, kind: input, shape index: {}]
  %s1 = inlined_call_operand.hbm [shape: bf16[256,128], index: 1, kind: input, shape index: {}]
  %s2 = inlined_call_operand.hbm [shape: bf16[1152,128], index: 2, kind: input, shape index: {}]
  %s3 = inlined_call_operand.hbm [shape: bf16[128,128], index: 3, kind: input, shape index: {}]
  %s4 = inlined_call_operand.hbm [shape: bf16[256,128], index: 4, kind: input, shape index: {}]
  %s5 = inlined_call_operand.hbm [shape: bf16[128,128], index: 5, kind: input, shape index: {}]
  %s6 = inlined_call_operand.hbm [shape: f32[256,128], index: 6, kind: output, shape index: {0}]
  %s7 = inlined_call_operand.hbm [shape: f32[256,128], index: 7, kind: output, shape index: {1}]
  %s8 = inlined_call_operand.hbm [shape: f32[16,128], index: 8, kind: output, shape index: {2}]
  %9 = xla_tuple %s6, %s7, %s8
  %s10 = sld [smem:[#allocation0]]
  $region97: #{tpu_custom_call.1} parent=0
    _
  %s12 = ssub.s32 1, %s10
  %s13 = scalar_select 0, %s12, %s10
  $region1: #{tpu_custom_call.1} parent=0
    #allocation3 [shape = 'u8[1179648]{0}', space=vmem, size = 0x120000, scoped, tag = 'input window, operand 0']
    #allocation4 [shape = 's32[2]{0}', space=sflag, size = 0x8, scoped, tag = 'scoped memory for tpu_custom_call.1']
    #allocation5 [shape = 's32[2]{0}', space=sflag, size = 0x8, scoped, tag = 'scoped memory for tpu_custom_call.1']
    #allocation6 [shape = 'u8[65536]{0}', space=vmem, size = 0x10000, scoped, tag = 'input window, operand 1, single buffered']
    #allocation7 [shape = 's32[1]{0}', space=sflag, size = 0x4, scoped, tag = 'scoped memory for tpu_custom_call.1']
    #allocation8 [shape = 'u8[294912]{0}', space=vmem, size = 0x48000, scoped, tag = 'input window, operand 2, single buffered']
    #allocation9 [shape = 'u8[32768]{0}', space=vmem, size = 0x8000, scoped, tag = 'input window, operand 3, single buffered']
    #allocation10 [shape = 's32[1]{0}', space=sflag, size = 0x4, scoped, tag = 'scoped memory for tpu_custom_call.1']
    #allocation11 [shape = 'u8[65536]{0}', space=vmem, size = 0x10000, scoped, tag = 'input window, operand 4']
    #allocation12 [shape = 'u8[32768]{0}', space=vmem, size = 0x8000, scoped, tag = 'input window, operand 5, single buffered']
    #allocation13 [shape = 'u8[131072]{0}', space=vmem, size = 0x20000, scoped, tag = 'output window, operand 0']
    #allocation14 [shape = 'u8[131072]{0}', space=vmem, size = 0x20000, scoped, tag = 'output window, operand 1']
    #allocation15 [shape = 's32[2]{0}', space=sflag, size = 0x8, scoped, tag = 'scoped memory for tpu_custom_call.1']
    #allocation16 [shape = 'u8[8192]{0}', space=vmem, size = 0x2000, scoped, tag = 'output window, operand 2']
    %14 = vsyncpa [#allocation4], 0
    %s15 = scalar_lea.sflag [#allocation4], 1
    %16 = vsyncpa %s15, 0
    %17 = vsyncpa [#allocation7], 0
    %18 = vsyncpa [#allocation10], 0
    %19 = vsyncpa [#allocation5], 0
    %s20 = scalar_lea.sflag [#allocation5], 1
    %21 = vsyncpa %s20, 0
    %22 = vsyncpa [#allocation15], 0
    %s23 = scalar_lea.sflag [#allocation15], 1
    %24 = vsyncpa %s23, 0
    loop: start=0, step=1, limit=4
    $region2: #{tpu_custom_call.1} parent=1 // loop_pre_header
      _
    $region3: #{tpu_custom_call.1} parent=1 // loop_header
      %s26 = sphi 0, %s30
      %p27 = scmp.ge.s32.totalorder %s26, 4
      %s36 = sphi 0, %s38
      %s39 = sphi 0, %s36
      %s40 = sphi 0, %s39
      %s56 = sphi 0, %s40
      %s60 = sphi 0, %s60
      %s62 = sphi 0, %s60
      %s63 = sphi 0, %s62
      %s77 = sphi 0, %s63
      %s81 = sphi 0, %s81
      %s83 = sphi 0, %s81
      %s84 = sphi 0, %s83
      %s98 = sphi 0, %s84
      %s102 = sphi 0, %s102
      %s104 = sphi 0, %s102
      %s105 = sphi 0, %s104
      %s119 = sphi 0, %s105
      %s125 = sphi 0, %s127
      %s128 = sphi 0, %s125
      %s129 = sphi 0, %s128
      %s145 = sphi 0, %s129
      %s149 = sphi 0, %s149
      %s151 = sphi 0, %s149
      %s152 = sphi 0, %s151
      %s166 = sphi 0, %s152
      %s172 = sphi 0, %s174
      %s175 = sphi 0, %s172
      %s176 = sphi 0, %s175
      %s192 = sphi 0, %s176
      %s198 = sphi 0, %s200
      %s201 = sphi 0, %s198
      %s202 = sphi 0, %s201
      %s218 = sphi 0, %s202
      %s224 = sphi 0, %s226
      %s227 = sphi 0, %s224
      %s228 = sphi 0, %s227
      %s244 = sphi 0, %s228
    $region4: #{tpu_custom_call.1} parent=1 // loop_header_branch
      %29 = sbr.rel (%p27) target = $region8
    $region5: #{tpu_custom_call.1} parent=1 // loop_body
      %s31 = ssub.s32 %s26, 1
      %s32 = ssub.s32 %s26, 2
      %s33 = sadd.s32 %s26, 1
      %s34 = ssub.s32 %s26, %s33
      %p35 = scmp.eq.s32.totalorder %s34, 0
      %s37 = sadd.s32 %s36, 1
      %s38 = scalar_select %p35, %s36, %s37
      %p41 = pneg %p35
      %p42 = scmp.eq.s32.totalorder %s26, 1
      %p43 = por %p41, %p42
      %p44 = scmp.ne.s32.totalorder %s36, %s39
      %p45 = scmp.eq.s32.totalorder %s26, 0
      %p46 = por %p44, %p45
      %p47 = scmp.ne.s32.totalorder %s36, %s39
      %p48 = scmp.eq.s32.totalorder %s31, 1
      %p49 = por %p47, %p48
      %p50 = scmp.ne.s32.totalorder %s39, %s40
      %p51 = scmp.eq.s32.totalorder %s31, 0
      %p52 = por %p50, %p51
      %p53 = scmp.ne.s32.totalorder %s39, %s40
      %p54 = scmp.eq.s32.totalorder %s32, 1
      %p55 = por %p53, %p54
      %p57 = scmp.ne.s32.totalorder %s40, %s56
      %p58 = scmp.eq.s32.totalorder %s32, 0
      %p59 = por %p57, %p58
      %s61 = sadd.s32 %s60, 1
      %p64 = scmp.eq.s32.totalorder %s26, 1
      %p65 = scmp.ne.s32.totalorder %s60, %s62
      %p66 = scmp.eq.s32.totalorder %s26, 0
      %p67 = por %p65, %p66
      %p68 = scmp.ne.s32.totalorder %s60, %s62
      %p69 = scmp.eq.s32.totalorder %s31, 1
      %p70 = por %p68, %p69
      %p71 = scmp.ne.s32.totalorder %s62, %s63
      %p72 = scmp.eq.s32.totalorder %s31, 0
      %p73 = por %p71, %p72
      %p74 = scmp.ne.s32.totalorder %s62, %s63
      %p75 = scmp.eq.s32.totalorder %s32, 1
      %p76 = por %p74, %p75
      %p78 = scmp.ne.s32.totalorder %s63, %s77
      %p79 = scmp.eq.s32.totalorder %s32, 0
      %p80 = por %p78, %p79
      %s82 = sadd.s32 %s81, 1
      %p85 = scmp.eq.s32.totalorder %s26, 1
      %p86 = scmp.ne.s32.totalorder %s81, %s83
      %p87 = scmp.eq.s32.totalorder %s26, 0
      %p88 = por %p86, %p87
      %p89 = scmp.ne.s32.totalorder %s81, %s83
      %p90 = scmp.eq.s32.totalorder %s31, 1
      %p91 = por %p89, %p90
      %p92 = scmp.ne.s32.totalorder %s83, %s84
      %p93 = scmp.eq.s32.totalorder %s31, 0
      %p94 = por %p92, %p93
      %p95 = scmp.ne.s32.totalorder %s83, %s84
      %p96 = scmp.eq.s32.totalorder %s32, 1
      %p97 = por %p95, %p96
      %p99 = scmp.ne.s32.totalorder %s84, %s98
      %p100 = scmp.eq.s32.totalorder %s32, 0
      %p101 = por %p99, %p100
      %s103 = sadd.s32 %s102, 1
      %p106 = scmp.eq.s32.totalorder %s26, 1
      %p107 = scmp.ne.s32.totalorder %s102, %s104
      %p108 = scmp.eq.s32.totalorder %s26, 0
      %p109 = por %p107, %p108
      %p110 = scmp.ne.s32.totalorder %s102, %s104
      %p111 = scmp.eq.s32.totalorder %s31, 1
      %p112 = por %p110, %p111
      %p113 = scmp.ne.s32.totalorder %s104, %s105
      %p114 = scmp.eq.s32.totalorder %s31, 0
      %p115 = por %p113, %p114
      %p116 = scmp.ne.s32.totalorder %s104, %s105
      %p117 = scmp.eq.s32.totalorder %s32, 1
      %p118 = por %p116, %p117
      %p120 = scmp.ne.s32.totalorder %s105, %s119
      %p121 = scmp.eq.s32.totalorder %s32, 0
      %p122 = por %p120, %p121
      %s123 = ssub.s32 %s26, %s33
      %p124 = scmp.eq.s32.totalorder %s123, 0
      %s126 = sadd.s32 %s125, 1
      %s127 = scalar_select %p124, %s125, %s126
      %p130 = pneg %p124
      %p131 = scmp.eq.s32.totalorder %s26, 1
      %p132 = por %p130, %p131
      %p133 = scmp.ne.s32.totalorder %s125, %s128
      %p134 = scmp.eq.s32.totalorder %s26, 0
      %p135 = por %p133, %p134
      %p136 = scmp.ne.s32.totalorder %s125, %s128
      %p137 = scmp.eq.s32.totalorder %s31, 1
      %p138 = por %p136, %p137
      %p139 = scmp.ne.s32.totalorder %s128, %s129
      %p140 = scmp.eq.s32.totalorder %s31, 0
      %p141 = por %p139, %p140
      %p142 = scmp.ne.s32.totalorder %s128, %s129
      %p143 = scmp.eq.s32.totalorder %s32, 1
      %p144 = por %p142, %p143
      %p146 = scmp.ne.s32.totalorder %s129, %s145
      %p147 = scmp.eq.s32.totalorder %s32, 0
      %p148 = por %p146, %p147
      %s150 = sadd.s32 %s149, 1
      %p153 = scmp.eq.s32.totalorder %s26, 1
      %p154 = scmp.ne.s32.totalorder %s149, %s151
      %p155 = scmp.eq.s32.totalorder %s26, 0
      %p156 = por %p154, %p155
      %p157 = scmp.ne.s32.totalorder %s149, %s151
      %p158 = scmp.eq.s32.totalorder %s31, 1
      %p159 = por %p157, %p158
      %p160 = scmp.ne.s32.totalorder %s151, %s152
      %p161 = scmp.eq.s32.totalorder %s31, 0
      %p162 = por %p160, %p161
      %p163 = scmp.ne.s32.totalorder %s151, %s152
      %p164 = scmp.eq.s32.totalorder %s32, 1
      %p165 = por %p163, %p164
      %p167 = scmp.ne.s32.totalorder %s152, %s166
      %p168 = scmp.eq.s32.totalorder %s32, 0
      %p169 = por %p167, %p168
      %s170 = ssub.s32 %s26, %s33
      %p171 = scmp.eq.s32.totalorder %s170, 0
      %s173 = sadd.s32 %s172, 1
      %s174 = scalar_select %p171, %s172, %s173
      %p177 = pneg %p171
      %p178 = scmp.eq.s32.totalorder %s26, 1
      %p179 = por %p177, %p178
      %p180 = scmp.ne.s32.totalorder %s172, %s175
      %p181 = scmp.eq.s32.totalorder %s26, 0
      %p182 = por %p180, %p181
      %p183 = scmp.ne.s32.totalorder %s172, %s175
      %p184 = scmp.eq.s32.totalorder %s31, 1
      %p185 = por %p183, %p184
      %p186 = scmp.ne.s32.totalorder %s175, %s176
      %p187 = scmp.eq.s32.totalorder %s31, 0
      %p188 = por %p186, %p187
      %p189 = scmp.ne.s32.totalorder %s175, %s176
      %p190 = scmp.eq.s32.totalorder %s32, 1
      %p191 = por %p189, %p190
      %p193 = scmp.ne.s32.totalorder %s176, %s192
      %p194 = scmp.eq.s32.totalorder %s32, 0
      %p195 = por %p193, %p194
      %s196 = ssub.s32 %s26, %s33
      %p197 = scmp.eq.s32.totalorder %s196, 0
      %s199 = sadd.s32 %s198, 1
      %s200 = scalar_select %p197, %s198, %s199
      %p203 = pneg %p197
      %p204 = scmp.eq.s32.totalorder %s26, 1
      %p205 = por %p203, %p204
      %p206 = scmp.ne.s32.totalorder %s198, %s201
      %p207 = scmp.eq.s32.totalorder %s26, 0
      %p208 = por %p206, %p207
      %p209 = scmp.ne.s32.totalorder %s198, %s201
      %p210 = scmp.eq.s32.totalorder %s31, 1
      %p211 = por %p209, %p210
      %p212 = scmp.ne.s32.totalorder %s201, %s202
      %p213 = scmp.eq.s32.totalorder %s31, 0
      %p214 = por %p212, %p213
      %p215 = scmp.ne.s32.totalorder %s201, %s202
      %p216 = scmp.eq.s32.totalorder %s32, 1
      %p217 = por %p215, %p216
      %p219 = scmp.ne.s32.totalorder %s202, %s218
      %p220 = scmp.eq.s32.totalorder %s32, 0
      %p221 = por %p219, %p220
      %s222 = ssub.s32 %s26, %s33
      %p223 = scmp.eq.s32.totalorder %s222, 0
      %s225 = sadd.s32 %s224, 1
      %s226 = scalar_select %p223, %s224, %s225
      %p229 = pneg %p223
      %p230 = scmp.eq.s32.totalorder %s26, 1
      %p231 = por %p229, %p230
      %p232 = scmp.ne.s32.totalorder %s224, %s227
      %p233 = scmp.eq.s32.totalorder %s26, 0
      %p234 = por %p232, %p233
      %p235 = scmp.ne.s32.totalorder %s224, %s227
      %p236 = scmp.eq.s32.totalorder %s31, 1
      %p237 = por %p235, %p236
      %p238 = scmp.ne.s32.totalorder %s227, %s228
      %p239 = scmp.eq.s32.totalorder %s31, 0
      %p240 = por %p238, %p239
      %p241 = scmp.ne.s32.totalorder %s227, %s228
      %p242 = scmp.eq.s32.totalorder %s32, 1
      %p243 = por %p241, %p242
      %p245 = scmp.ne.s32.totalorder %s228, %s244
      %p246 = scmp.eq.s32.totalorder %s32, 0
      %p247 = por %p245, %p246
      %p248 = scmp.le.s32.totalorder 1, %s26
      %p249 = scmp.lt.s32.totalorder %s26, 3
      %p250 = pnand %p248, %p249
      %p251 = pneg %p250
      // Predicated region
      $region9: #{tpu_custom_call.1} parent=5 // pred_check
        _
      $region10: #{tpu_custom_call.1} parent=5 // pred_check_branch
        %253 = sbr.rel (%p250) target = $region12
      $region11: #{tpu_custom_call.1} parent=5 // pred_region
        %s254 = ssub.s32 %s26, 1
        // Predicated region
        $region13: #{tpu_custom_call.1} parent=11 // pred_check
          %p255 = pneg %p73
        $region14: #{tpu_custom_call.1} parent=11 // pred_check_branch
          %257 = sbr.rel (%p255) target = $region16
        $region15: #{tpu_custom_call.1} parent=11 // pred_region
          %s259 = ssub.s32 2048, 2048
          %260 = vsyncadd [#allocation7], %s259
          %s261 = sshll.u32 [#allocation6], 4
          %s262 = int_to_ptr.vmem [resolvable:$true] %s261
          %267 = dma.hbm_to_vmem [thread:$0]  %s1, 2048, %s262, [#allocation7], 64, 64, 4
        $region16: #{tpu_custom_call.1} parent=11 // pred_fallthru
          _
        // Predicated region
        $region17: #{tpu_custom_call.1} parent=11 // pred_check
          %p268 = pneg %p94
        $region18: #{tpu_custom_call.1} parent=11 // pred_check_branch
          %270 = sbr.rel (%p268) target = $region20
        $region19: #{tpu_custom_call.1} parent=11 // pred_region
          %s272 = ssub.s32 9216, 9216
          %273 = vsyncadd [#allocation7], %s272
          %s274 = sshll.u32 [#allocation8], 4
          %s275 = int_to_ptr.vmem [resolvable:$true] %s274
          %280 = dma.hbm_to_vmem [thread:$0]  %s2, 9216, %s275, [#allocation7], 64, 64, 4
        $region20: #{tpu_custom_call.1} parent=11 // pred_fallthru
          _
        // Predicated region
        $region21: #{tpu_custom_call.1} parent=11 // pred_check
          %p281 = pneg %p115
        $region22: #{tpu_custom_call.1} parent=11 // pred_check_branch
          %283 = sbr.rel (%p281) target = $region24
        $region23: #{tpu_custom_call.1} parent=11 // pred_region
          %s285 = ssub.s32 1024, 1024
          %286 = vsyncadd [#allocation10], %s285
          %s287 = sshll.u32 [#allocation9], 4
          %s288 = int_to_ptr.vmem [resolvable:$true] %s287
          %293 = dma.hbm_to_vmem [thread:$0]  %s3, 1024, %s288, [#allocation10], 64, 64, 4
        $region24: #{tpu_custom_call.1} parent=11 // pred_fallthru
          _
        // Predicated region
        $region25: #{tpu_custom_call.1} parent=11 // pred_check
          %p294 = pneg %p162
        $region26: #{tpu_custom_call.1} parent=11 // pred_check_branch
          %296 = sbr.rel (%p294) target = $region28
        $region27: #{tpu_custom_call.1} parent=11 // pred_region
          %s298 = ssub.s32 1024, 1024
          %299 = vsyncadd [#allocation7], %s298
          %s300 = sshll.u32 [#allocation12], 4
          %s301 = int_to_ptr.vmem [resolvable:$true] %s300
          %306 = dma.hbm_to_vmem [thread:$0]  %s5, 1024, %s301, [#allocation7], 64, 64, 4
        $region28: #{tpu_custom_call.1} parent=11 // pred_fallthru
          _
      $region12: #{tpu_custom_call.1} parent=5 // pred_fallthru
        _
      %p307 = scmp.lt.s32.totalorder %s26, 2
      // Predicated region
      $region29: #{tpu_custom_call.1} parent=5 // pred_check
        %p308 = pneg %p307
      $region30: #{tpu_custom_call.1} parent=5 // pred_check_branch
        %310 = sbr.rel (%p308) target = $region32
      $region31: #{tpu_custom_call.1} parent=5 // pred_region
        // Predicated region
        $region33: #{tpu_custom_call.1} parent=31 // pred_check
          %p311 = pneg %p46
        $region34: #{tpu_custom_call.1} parent=31 // pred_check_branch
          %313 = sbr.rel (%p311) target = $region36
        $region35: #{tpu_custom_call.1} parent=31 // pred_region
          #allocation18 [shape = 'u32[6]{0}', space=smem, size = 0x18, scoped, tag = 'DMA stride descriptor']
          %s314 = sand.u32 %s26, 1
          %s315 = scalar_lea.sflag [#allocation4], %s314
          %s316 = sand.u32 %s36, 1
          %s317 = smul.addr %s316, 1152
          %s318 = scalar_lea.vmem [#allocation3], %s317
          %s319 = smul.u32 16, %s26
          %s321 = ssub.s32 18432, 18432
          %322 = vsyncadd %s315, %s321
          %s323 = smul.addr %s319, 2
          %s324 = smul.addr %s323, 64
          %s325 = scalar_lea.hbm %s0, %s324
          %s327 = sshll.u32 1, 14
          %s328 = sxor.u32 4294967295, %s327
          %s330 = sld [smem:[#allocation0]]
          %s331 = sadd.s32 2, %s330
          %s333 = sshll.u32 7, 26
          %s334 = sxor.u32 4294967295, %s333
          %s335 = sand.u32 0, %s334
          %s336 = sshll.u32 %s331, 26
          %s337 = sor.u32 %s335, %s336
          %s338 = sshll.u32 %s318, 4
          %s339 = int_to_ptr.vmem [resolvable:$true] %s338
          %345 = sst [smem:[#allocation18]] 4096
          %s346 = scalar_lea.smem [#allocation18], 1
          %347 = sst [smem:[%s346]] 2048
          %s348 = scalar_lea.smem [#allocation18], 2
          %349 = sst [smem:[%s348]] 16
          %s350 = scalar_lea.smem [#allocation18], 3
          %351 = sst [smem:[%s350]] 128
          %s352 = scalar_lea.smem [#allocation18], 4
          %353 = sst [smem:[%s352]] 128
          %s354 = scalar_lea.smem [#allocation18], 5
          %355 = sst [smem:[%s354]] 8
          %357 = dma.general %s325, 18432, %s339, %s315, 131072, [#allocation18], %s337, 0
        $region36: #{tpu_custom_call.1} parent=31 // pred_fallthru
          _
        // Predicated region
        $region37: #{tpu_custom_call.1} parent=31 // pred_check
          %p358 = pneg %p135
        $region38: #{tpu_custom_call.1} parent=31 // pred_check_branch
          %360 = sbr.rel (%p358) target = $region40
        $region39: #{tpu_custom_call.1} parent=31 // pred_region
          %s361 = sand.u32 %s26, 1
          %s362 = scalar_lea.sflag [#allocation4], %s361
          %s363 = sand.u32 %s125, 1
          %s364 = smul.addr %s363, 64
          %s365 = scalar_lea.vmem [#allocation11], %s364
          %s366 = smul.u32 16, %s26
          %s368 = ssub.s32 1024, 1024
          %369 = vsyncadd %s362, %s368
          %s370 = smul.addr %s366, 64
          %s371 = scalar_lea.hbm %s4, %s370
          %s372 = sshll.u32 %s365, 4
          %s373 = int_to_ptr.vmem [resolvable:$true] %s372
          %378 = dma.hbm_to_vmem [thread:$0]  %s371, 1024, %s373, %s362, 64, 64, 4
        $region40: #{tpu_custom_call.1} parent=31 // pred_fallthru
          _
      $region32: #{tpu_custom_call.1} parent=5 // pred_fallthru
        _
      %p379 = scmp.le.s32.totalorder 1, %s26
      %p380 = scmp.lt.s32.totalorder %s26, 3
      %p381 = pnand %p379, %p380
      %p382 = pneg %p381
      // Predicated region
      $region41: #{tpu_custom_call.1} parent=5 // pred_check
        _
      $region42: #{tpu_custom_call.1} parent=5 // pred_check_branch
        %384 = sbr.rel (%p381) target = $region44
      $region43: #{tpu_custom_call.1} parent=5 // pred_region
        %s385 = ssub.s32 %s26, 1
        %s386 = sand.u32 %s31, 1
        %s387 = scalar_lea.sflag [#allocation4], %s386
        %s388 = sand.u32 %s39, 1
        %s389 = smul.addr %s388, 1152
        %s390 = scalar_lea.vmem [#allocation3], %s389
        // Predicated region
        $region45: #{tpu_custom_call.1} parent=43 // pred_check
          %p391 = pneg %p52
        $region46: #{tpu_custom_call.1} parent=43 // pred_check_branch
          %393 = sbr.rel (%p391) target = $region48
        $region47: #{tpu_custom_call.1} parent=43 // pred_region
          %394 = dma.done %s387, 18432
        $region48: #{tpu_custom_call.1} parent=43 // pred_fallthru
          _
        // Predicated region
        $region49: #{tpu_custom_call.1} parent=43 // pred_check
          %p395 = pneg %p73
        $region50: #{tpu_custom_call.1} parent=43 // pred_check_branch
          %397 = sbr.rel (%p395) target = $region52
        $region51: #{tpu_custom_call.1} parent=43 // pred_region
          %398 = dma.done [#allocation7], 2048
        $region52: #{tpu_custom_call.1} parent=43 // pred_fallthru
          _
        // Predicated region
        $region53: #{tpu_custom_call.1} parent=43 // pred_check
          %p399 = pneg %p94
        $region54: #{tpu_custom_call.1} parent=43 // pred_check_branch
          %401 = sbr.rel (%p399) target = $region56
        $region55: #{tpu_custom_call.1} parent=43 // pred_region
          %402 = dma.done [#allocation7], 9216
        $region56: #{tpu_custom_call.1} parent=43 // pred_fallthru
          _
        // Predicated region
        $region57: #{tpu_custom_call.1} parent=43 // pred_check
          %p403 = pneg %p115
        $region58: #{tpu_custom_call.1} parent=43 // pred_check_branch
          %405 = sbr.rel (%p403) target = $region60
        $region59: #{tpu_custom_call.1} parent=43 // pred_region
          %406 = dma.done [#allocation10], 1024
        $region60: #{tpu_custom_call.1} parent=43 // pred_fallthru
          _
        %s407 = sand.u32 %s31, 1
        %s408 = scalar_lea.sflag [#allocation4], %s407
        %s409 = sand.u32 %s128, 1
        %s410 = smul.addr %s409, 64
        %s411 = scalar_lea.vmem [#allocation11], %s410
        // Predicated region
        $region61: #{tpu_custom_call.1} parent=43 // pred_check
          %p412 = pneg %p141
        $region62: #{tpu_custom_call.1} parent=43 // pred_check_branch
          %414 = sbr.rel (%p412) target = $region64
        $region63: #{tpu_custom_call.1} parent=43 // pred_region
          %415 = dma.done %s408, 1024
        $region64: #{tpu_custom_call.1} parent=43 // pred_fallthru
          _
        // Predicated region
        $region65: #{tpu_custom_call.1} parent=43 // pred_check
          %p416 = pneg %p162
        $region66: #{tpu_custom_call.1} parent=43 // pred_check_branch
          %418 = sbr.rel (%p416) target = $region68
        $region67: #{tpu_custom_call.1} parent=43 // pred_region
          %419 = dma.done [#allocation7], 1024
        $region68: #{tpu_custom_call.1} parent=43 // pred_fallthru
          _
        %s420 = sand.u32 %s31, 1
        %s421 = scalar_lea.sflag [#allocation4], %s420
        %s422 = sand.u32 %s39, 1
        %s423 = smul.addr %s422, 1152
        %s424 = scalar_lea.vmem [#allocation3], %s423
        %p425 = pneg %p52
        %p426 = pneg %p49
        %p427 = pneg %p73
        %p428 = pneg %p70
        %p429 = pneg %p94
        %p430 = pneg %p91
        %p431 = pneg %p115
        %p432 = pneg %p112
        %s433 = sand.u32 %s31, 1
        %s434 = scalar_lea.sflag [#allocation4], %s433
        %s435 = sand.u32 %s128, 1
        %s436 = smul.addr %s435, 64
        %s437 = scalar_lea.vmem [#allocation11], %s436
        %p438 = pneg %p141
        %p439 = pneg %p138
        %p440 = pneg %p162
        %p441 = pneg %p159
        %p442 = pneg %p188
        %p443 = pneg %p185
        %s444 = sand.u32 %s175, 1
        %s445 = scalar_lea.sflag [#allocation5], %s444
        %s446 = sand.u32 %s175, 1
        %s447 = smul.addr %s446, 128
        %s448 = scalar_lea.vmem [#allocation13], %s447
        %p449 = pneg %p214
        %p450 = pneg %p211
        %s451 = sand.u32 %s31, 1
        %s452 = scalar_lea.sflag [#allocation15], %s451
        %s453 = sand.u32 %s201, 1
        %s454 = smul.addr %s453, 128
        %s455 = scalar_lea.vmem [#allocation14], %s454
        %p456 = pneg %p240
        %p457 = pneg %p237
        %s458 = sand.u32 %s31, 1
        %s459 = scalar_lea.sflag [#allocation15], %s458
        %s460 = sand.u32 %s227, 1
        %s461 = smul.addr %s460, 8
        %s462 = scalar_lea.vmem [#allocation16], %s461
        %s463 = smul.u32 16, %s31
        %s464 = smul.u32 16, %s31
        %s465 = smul.u32 16, %s31
        %s466 = smul.u32 16, %s31
        %v468 = vld [vmem:[#allocation6] sm:$0xf]
        %v469 = vld [vmem:[#allocation6 + $0x4] sm:$0xf]
        %v470 = vld [vmem:[#allocation6 + $0x8] sm:$0xf]
        %v471 = vld [vmem:[#allocation6 + $0xc] sm:$0xf]
        %v472 = vld [vmem:[#allocation6 + $0x10] sm:$0xf]
        %v473 = vld [vmem:[#allocation6 + $0x14] sm:$0xf]
        %v474 = vld [vmem:[#allocation6 + $0x18] sm:$0xf]
        %v475 = vld [vmem:[#allocation6 + $0x1c] sm:$0xf]
        %v476 = vld [vmem:[#allocation6 + $0x20] sm:$0xf]
        %v477 = vld [vmem:[#allocation6 + $0x24] sm:$0xf]
        %v478 = vld [vmem:[#allocation6 + $0x28] sm:$0xf]
        %v479 = vld [vmem:[#allocation6 + $0x2c] sm:$0xf]
        %v480 = vld [vmem:[#allocation6 + $0x30] sm:$0xf]
        %v481 = vld [vmem:[#allocation6 + $0x34] sm:$0xf]
        %v482 = vld [vmem:[#allocation6 + $0x38] sm:$0xf]
        %v483 = vld [vmem:[#allocation6 + $0x3c] sm:$0xf]
        %v484 = vld [vmem:[#allocation6 + $0x40] sm:$0xf]
        %v485 = vld [vmem:[#allocation6 + $0x44] sm:$0xf]
        %v486 = vld [vmem:[#allocation6 + $0x48] sm:$0xf]
        %v487 = vld [vmem:[#allocation6 + $0x4c] sm:$0xf]
        %v488 = vld [vmem:[#allocation6 + $0x50] sm:$0xf]
        %v489 = vld [vmem:[#allocation6 + $0x54] sm:$0xf]
        %v490 = vld [vmem:[#allocation6 + $0x58] sm:$0xf]
        %v491 = vld [vmem:[#allocation6 + $0x5c] sm:$0xf]
        %v492 = vld [vmem:[#allocation6 + $0x60] sm:$0xf]
        %v493 = vld [vmem:[#allocation6 + $0x64] sm:$0xf]
        %v494 = vld [vmem:[#allocation6 + $0x68] sm:$0xf]
        %v495 = vld [vmem:[#allocation6 + $0x6c] sm:$0xf]
        %v496 = vld [vmem:[#allocation6 + $0x70] sm:$0xf]
        %v497 = vld [vmem:[#allocation6 + $0x74] sm:$0xf]
        %v498 = vld [vmem:[#allocation6 + $0x78] sm:$0xf]
        %v499 = vld [vmem:[#allocation6 + $0x7c] sm:$0xf]
        %v500 = vld [vmem:[%s390] sm:$0xff]
        %v501 = vld [vmem:[%s390 + $0x8] sm:$0xff]
        %v502 = vld [vmem:[%s390 + $0x10] sm:$0xff]
        %v503 = vld [vmem:[%s390 + $0x18] sm:$0xff]
        %v504 = vld [vmem:[%s390 + $0x20] sm:$0xff]
        %v505 = vld [vmem:[%s390 + $0x28] sm:$0xff]
        %v506 = vld [vmem:[%s390 + $0x30] sm:$0xff]
        %v507 = vld [vmem:[%s390 + $0x38] sm:$0xff]
        %v508 = vld [vmem:[%s390 + $0x40] sm:$0xff]
        %v509 = vld [vmem:[%s390 + $0x48] sm:$0xff]
        %v510 = vld [vmem:[%s390 + $0x50] sm:$0xff]
        %v511 = vld [vmem:[%s390 + $0x58] sm:$0xff]
        %v512 = vld [vmem:[%s390 + $0x60] sm:$0xff]
        %v513 = vld [vmem:[%s390 + $0x68] sm:$0xff]
        %v514 = vld [vmem:[%s390 + $0x70] sm:$0xff]
        %v515 = vld [vmem:[%s390 + $0x78] sm:$0xff]
        %v532 = vunpack.c.l.b16 %v500
        %v533 = vunpack.c.h.b16 %v500
        %v534 = vunpack.c.l.b16 %v501
        %v535 = vunpack.c.h.b16 %v501
        %v536 = vunpack.c.l.b16 %v502
        %v537 = vunpack.c.h.b16 %v502
        %v538 = vunpack.c.l.b16 %v503
        %v539 = vunpack.c.h.b16 %v503
        %v540 = vunpack.c.l.b16 %v504
        %v541 = vunpack.c.h.b16 %v504
        %v542 = vunpack.c.l.b16 %v505
        %v543 = vunpack.c.h.b16 %v505
        %v544 = vunpack.c.l.b16 %v506
        %v545 = vunpack.c.h.b16 %v506
        %v546 = vunpack.c.l.b16 %v507
        %v547 = vunpack.c.h.b16 %v507
        %v548 = vunpack.c.l.b16 %v508
        %v549 = vunpack.c.h.b16 %v508
        %v550 = vunpack.c.l.b16 %v509
        %v551 = vunpack.c.h.b16 %v509
        %v552 = vunpack.c.l.b16 %v510
        %v553 = vunpack.c.h.b16 %v510
        %v554 = vunpack.c.l.b16 %v511
        %v555 = vunpack.c.h.b16 %v511
        %v556 = vunpack.c.l.b16 %v512
        %v557 = vunpack.c.h.b16 %v512
        %v558 = vunpack.c.l.b16 %v513
        %v559 = vunpack.c.h.b16 %v513
        %v560 = vunpack.c.l.b16 %v514
        %v561 = vunpack.c.h.b16 %v514
        %v562 = vunpack.c.l.b16 %v515
        %v563 = vunpack.c.h.b16 %v515
        %v564 = vpack.c.b16 %v534, %v532
        %v565 = vpack.c.b16 %v535, %v533
        %v566 = vpack.c.b16 %v538, %v536
        %v567 = vpack.c.b16 %v539, %v537
        %v568 = vpack.c.b16 %v542, %v540
        %v569 = vpack.c.b16 %v543, %v541
        %v570 = vpack.c.b16 %v546, %v544
        %v571 = vpack.c.b16 %v547, %v545
        %v572 = vpack.c.b16 %v550, %v548
        %v573 = vpack.c.b16 %v551, %v549
        %v574 = vpack.c.b16 %v554, %v552
        %v575 = vpack.c.b16 %v555, %v553
        %v576 = vpack.c.b16 %v558, %v556
        %v577 = vpack.c.b16 %v559, %v557
        %v578 = vpack.c.b16 %v562, %v560
        %v579 = vpack.c.b16 %v563, %v561
        %v628 = vunpack.c.l.b16 %v468
        %v629 = vunpack.c.l.b16 %v469
        %v630 = vunpack.c.l.b16 %v470
        %v631 = vunpack.c.l.b16 %v471
        %v632 = vunpack.c.l.b16 %v472
        %v633 = vunpack.c.l.b16 %v473
        %v634 = vunpack.c.l.b16 %v474
        %v635 = vunpack.c.l.b16 %v475
        %v636 = vunpack.c.l.b16 %v476
        %v637 = vunpack.c.l.b16 %v477
        %v638 = vunpack.c.l.b16 %v478
        %v639 = vunpack.c.l.b16 %v479
        %v640 = vunpack.c.l.b16 %v480
        %v641 = vunpack.c.l.b16 %v481
        %v642 = vunpack.c.l.b16 %v482
        %v643 = vunpack.c.l.b16 %v483
        %v644 = vunpack.c.l.b16 %v484
        %v645 = vunpack.c.l.b16 %v485
        %v646 = vunpack.c.l.b16 %v486
        %v647 = vunpack.c.l.b16 %v487
        %v648 = vunpack.c.l.b16 %v488
        %v649 = vunpack.c.l.b16 %v489
        %v650 = vunpack.c.l.b16 %v490
        %v651 = vunpack.c.l.b16 %v491
        %v652 = vunpack.c.l.b16 %v492
        %v653 = vunpack.c.l.b16 %v493
        %v654 = vunpack.c.l.b16 %v494
        %v655 = vunpack.c.l.b16 %v495
        %v656 = vunpack.c.l.b16 %v496
        %v657 = vunpack.c.l.b16 %v497
        %v658 = vunpack.c.l.b16 %v498
        %v659 = vunpack.c.l.b16 %v499
        %v660 = vpack.c.b16 %v629, %v628
        %v661 = vpack.c.b16 %v631, %v630
        %v662 = vpack.c.b16 %v633, %v632
        %v663 = vpack.c.b16 %v635, %v634
        %v664 = vpack.c.b16 %v637, %v636
        %v665 = vpack.c.b16 %v639, %v638
        %v666 = vpack.c.b16 %v641, %v640
        %v667 = vpack.c.b16 %v643, %v642
        %v668 = vpack.c.b16 %v645, %v644
        %v669 = vpack.c.b16 %v647, %v646
        %v670 = vpack.c.b16 %v649, %v648
        %v671 = vpack.c.b16 %v651, %v650
        %v672 = vpack.c.b16 %v653, %v652
        %v673 = vpack.c.b16 %v655, %v654
        %v674 = vpack.c.b16 %v657, %v656
        %v675 = vpack.c.b16 %v659, %v658
        %692 = vmatprep.subr.bf16.mxu0 0
        %693 = vmatpush1.bf16.msra.mxu0 %v667
        %694 = vmatprep.subr.bf16.mxu0 0
        %695 = vmatpush1.bf16.msra.mxu0 %v666
        %696 = vmatprep.subr.bf16.mxu0 0
        %697 = vmatpush1.bf16.msra.mxu0 %v665
        %698 = vmatprep.subr.bf16.mxu0 0
        %699 = vmatpush1.bf16.msra.mxu0 %v664
        %700 = vmatprep.subr.bf16.mxu0 0
        %701 = vmatpush1.bf16.msra.mxu0 %v663
        %702 = vmatprep.subr.bf16.mxu0 0
        %703 = vmatpush1.bf16.msra.mxu0 %v662
        %704 = vmatprep.subr.bf16.mxu0 0
        %705 = vmatpush1.bf16.msra.mxu0 %v661
        %706 = vmatprep.subr.bf16.mxu0 0
        %707 = vmatpush1.bf16.msra.mxu0 %v660
        %708 = vmatprep.subr.bf16.mxu0 0
        %709 = vmatpush2.bf16.msra.mxu0 %v675
        %710 = vmatprep.subr.bf16.mxu0 0
        %711 = vmatpush2.bf16.msra.mxu0 %v674
        %712 = vmatprep.subr.bf16.mxu0 0
        %713 = vmatpush2.bf16.msra.mxu0 %v673
        %714 = vmatprep.subr.bf16.mxu0 0
        %715 = vmatpush2.bf16.msra.mxu0 %v672
        %716 = vmatprep.subr.bf16.mxu0 0
        %717 = vmatpush2.bf16.msra.mxu0 %v671
        %718 = vmatprep.subr.bf16.mxu0 0
        %719 = vmatpush2.bf16.msra.mxu0 %v670
        %720 = vmatprep.subr.bf16.mxu0 0
        %721 = vmatpush2.bf16.msra.mxu0 %v669
        %722 = vmatprep.subr.bf16.mxu0 0
        %723 = vmatpush2.bf16.msra.mxu0 %v668
        %724 = vmatprep.mubr.bf16.mxu0 %v565
        %725 = vmatmul.mubr.bf16.gmra.mxu0 %v564
        %v726 = vpop.f32.mrf.mxu0
        %v727 = vadd.f32 0.0, %v726
        %v728 = vpop.f32.mrf.mxu0
        %v729 = vpop.f32.mrf.mxu0
        %v730 = vadd.f32 0.0, %v729
        %v731 = vpop.f32.mrf.mxu0
        %732 = vmatprep.mubr.bf16.mxu0 %v567
        %733 = vmatmul.mubr.bf16.gmra.mxu0 %v566
        %v734 = vpop.f32.mrf.mxu0
        %v735 = vadd.f32 0.0, %v734
        %v736 = vpop.f32.mrf.mxu0
        %v737 = vpop.f32.mrf.mxu0
        %v738 = vadd.f32 0.0, %v737
        %v739 = vpop.f32.mrf.mxu0
        %740 = vmatprep.mubr.bf16.mxu0 %v569
        %741 = vmatmul.mubr.bf16.gmra.mxu0 %v568
        %v742 = vpop.f32.mrf.mxu0
        %v743 = vadd.f32 0.0, %v742
        %v744 = vpop.f32.mrf.mxu0
        %v745 = vpop.f32.mrf.mxu0
        %v746 = vadd.f32 0.0, %v745
        %v747 = vpop.f32.mrf.mxu0
        %748 = vmatprep.mubr.bf16.mxu0 %v571
        %749 = vmatmul.mubr.bf16.gmra.mxu0 %v570
        %v750 = vpop.f32.mrf.mxu0
        %v751 = vadd.f32 0.0, %v750
        %v752 = vpop.f32.mrf.mxu0
        %v753 = vpop.f32.mrf.mxu0
        %v754 = vadd.f32 0.0, %v753
        %v755 = vpop.f32.mrf.mxu0
        %756 = vmatprep.mubr.bf16.mxu0 %v573
        %757 = vmatmul.mubr.bf16.gmra.mxu0 %v572
        %v758 = vpop.f32.mrf.mxu0
        %v759 = vadd.f32 0.0, %v758
        %v760 = vpop.f32.mrf.mxu0
        %v761 = vpop.f32.mrf.mxu0
        %v762 = vadd.f32 0.0, %v761
        %v763 = vpop.f32.mrf.mxu0
        %764 = vmatprep.mubr.bf16.mxu0 %v575
        %765 = vmatmul.mubr.bf16.gmra.mxu0 %v574
        %v766 = vpop.f32.mrf.mxu0
        %v767 = vadd.f32 0.0, %v766
        %v768 = vpop.f32.mrf.mxu0
        %v769 = vpop.f32.mrf.mxu0
        %v770 = vadd.f32 0.0, %v769
        %v771 = vpop.f32.mrf.mxu0
        %772 = vmatprep.mubr.bf16.mxu0 %v577
        %773 = vmatmul.mubr.bf16.gmra.mxu0 %v576
        %v774 = vpop.f32.mrf.mxu0
        %v775 = vadd.f32 0.0, %v774
        %v776 = vpop.f32.mrf.mxu0
        %v777 = vpop.f32.mrf.mxu0
        %v778 = vadd.f32 0.0, %v777
        %v779 = vpop.f32.mrf.mxu0
        %780 = vmatprep.mubr.bf16.mxu0 %v579
        %781 = vmatmul.mubr.bf16.gmra.mxu0 %v578
        %v782 = vpop.f32.mrf.mxu0
        %v783 = vadd.f32 0.0, %v782
        %v784 = vpop.f32.mrf.mxu0
        %v785 = vpop.f32.mrf.mxu0
        %v786 = vadd.f32 0.0, %v785
        %v787 = vpop.f32.mrf.mxu0
        %788 = vdwg.mxu0
        %v789 = vpack.c.bf16 %v730, %v727
        %v790 = vpack.c.bf16 %v738, %v735
        %v791 = vpack.c.bf16 %v746, %v743
        %v792 = vpack.c.bf16 %v754, %v751
        %v793 = vpack.c.bf16 %v762, %v759
        %v794 = vpack.c.bf16 %v770, %v767
        %v795 = vpack.c.bf16 %v778, %v775
        %v796 = vpack.c.bf16 %v786, %v783
        %v805 = vunpack.c.l.b16 %v789
        %v806 = vunpack.c.h.b16 %v789
        %v807 = vunpack.c.l.b16 %v790
        %v808 = vunpack.c.h.b16 %v790
        %v809 = vunpack.c.l.b16 %v791
        %v810 = vunpack.c.h.b16 %v791
        %v811 = vunpack.c.l.b16 %v792
        %v812 = vunpack.c.h.b16 %v792
        %v813 = vunpack.c.l.b16 %v793
        %v814 = vunpack.c.h.b16 %v793
        %v815 = vunpack.c.l.b16 %v794
        %v816 = vunpack.c.h.b16 %v794
        %v817 = vunpack.c.l.b16 %v795
        %v818 = vunpack.c.h.b16 %v795
        %v819 = vunpack.c.l.b16 %v796
        %v820 = vunpack.c.h.b16 %v796
        %v821 = vpack.c.b16 %v805, %v805
        %v822 = vpack.c.b16 %v806, %v806
        %v823 = vpack.c.b16 %v807, %v807
        %v824 = vpack.c.b16 %v808, %v808
        %v825 = vpack.c.b16 %v809, %v809
        %v826 = vpack.c.b16 %v810, %v810
        %v827 = vpack.c.b16 %v811, %v811
        %v828 = vpack.c.b16 %v812, %v812
        %v829 = vpack.c.b16 %v813, %v813
        %v830 = vpack.c.b16 %v814, %v814
        %v831 = vpack.c.b16 %v815, %v815
        %v832 = vpack.c.b16 %v816, %v816
        %v833 = vpack.c.b16 %v817, %v817
        %v834 = vpack.c.b16 %v818, %v818
        %v835 = vpack.c.b16 %v819, %v819
        %v836 = vpack.c.b16 %v820, %v820
        %853 = vst [vmem:[#allocation2] sm:$0xf] %v821
        %854 = vst [vmem:[#allocation2 + $0x24] sm:$0xf] %v822
        %855 = vst [vmem:[#allocation2 + $0x48] sm:$0xf] %v823
        %856 = vst [vmem:[#allocation2 + $0x6c] sm:$0xf] %v824
        %857 = vst [vmem:[#allocation2 + $0x90] sm:$0xf] %v825
        %858 = vst [vmem:[#allocation2 + $0xb4] sm:$0xf] %v826
        %859 = vst [vmem:[#allocation2 + $0xd8] sm:$0xf] %v827
        %860 = vst [vmem:[#allocation2 + $0xfc] sm:$0xf] %v828
        %861 = vst [vmem:[#allocation2 + $0x120] sm:$0xf] %v829
        %862 = vst [vmem:[#allocation2 + $0x144] sm:$0xf] %v830
        %863 = vst [vmem:[#allocation2 + $0x168] sm:$0xf] %v831
        %864 = vst [vmem:[#allocation2 + $0x18c] sm:$0xf] %v832
        %865 = vst [vmem:[#allocation2 + $0x1b0] sm:$0xf] %v833
        %866 = vst [vmem:[#allocation2 + $0x1d4] sm:$0xf] %v834
        %867 = vst [vmem:[#allocation2 + $0x1f8] sm:$0xf] %v835
        %868 = vst [vmem:[#allocation2 + $0x21c] sm:$0xf] %v836
        %s869 = scalar_lea.vmem %s390, 128 [#allocation3]
        %v870 = vld [vmem:[%s869] sm:$0xff]
        %v871 = vld [vmem:[%s869 + $0x8] sm:$0xff]
        %v872 = vld [vmem:[%s869 + $0x10] sm:$0xff]
        %v873 = vld [vmem:[%s869 + $0x18] sm:$0xff]
        %v874 = vld [vmem:[%s869 + $0x20] sm:$0xff]
        %v875 = vld [vmem:[%s869 + $0x28] sm:$0xff]
        %v876 = vld [vmem:[%s869 + $0x30] sm:$0xff]
        %v877 = vld [vmem:[%s869 + $0x38] sm:$0xff]
        %v878 = vld [vmem:[%s869 + $0x40] sm:$0xff]
        %v879 = vld [vmem:[%s869 + $0x48] sm:$0xff]
        %v880 = vld [vmem:[%s869 + $0x50] sm:$0xff]
        %v881 = vld [vmem:[%s869 + $0x58] sm:$0xff]
        %v882 = vld [vmem:[%s869 + $0x60] sm:$0xff]
        %v883 = vld [vmem:[%s869 + $0x68] sm:$0xff]
        %v884 = vld [vmem:[%s869 + $0x70] sm:$0xff]
        %v885 = vld [vmem:[%s869 + $0x78] sm:$0xff]
        %v902 = vunpack.c.l.b16 %v870
        %v903 = vunpack.c.h.b16 %v870
        %v904 = vunpack.c.l.b16 %v871
        %v905 = vunpack.c.h.b16 %v871
        %v906 = vunpack.c.l.b16 %v872
        %v907 = vunpack.c.h.b16 %v872
        %v908 = vunpack.c.l.b16 %v873
        %v909 = vunpack.c.h.b16 %v873
        %v910 = vunpack.c.l.b16 %v874
        %v911 = vunpack.c.h.b16 %v874
        %v912 = vunpack.c.l.b16 %v875
        %v913 = vunpack.c.h.b16 %v875
        %v914 = vunpack.c.l.b16 %v876
        %v915 = vunpack.c.h.b16 %v876
        %v916 = vunpack.c.l.b16 %v877
        %v917 = vunpack.c.h.b16 %v877
        %v918 = vunpack.c.l.b16 %v878
        %v919 = vunpack.c.h.b16 %v878
        %v920 = vunpack.c.l.b16 %v879
        %v921 = vunpack.c.h.b16 %v879
        %v922 = vunpack.c.l.b16 %v880
        %v923 = vunpack.c.h.b16 %v880
        %v924 = vunpack.c.l.b16 %v881
        %v925 = vunpack.c.h.b16 %v881
        %v926 = vunpack.c.l.b16 %v882
        %v927 = vunpack.c.h.b16 %v882
        %v928 = vunpack.c.l.b16 %v883
        %v929 = vunpack.c.h.b16 %v883
        %v930 = vunpack.c.l.b16 %v884
        %v931 = vunpack.c.h.b16 %v884
        %v932 = vunpack.c.l.b16 %v885
        %v933 = vunpack.c.h.b16 %v885
        %v934 = vpack.c.b16 %v904, %v902
        %v935 = vpack.c.b16 %v905, %v903
        %v936 = vpack.c.b16 %v908, %v906
        %v937 = vpack.c.b16 %v909, %v907
        %v938 = vpack.c.b16 %v912, %v910
        %v939 = vpack.c.b16 %v913, %v911
        %v940 = vpack.c.b16 %v916, %v914
        %v941 = vpack.c.b16 %v917, %v915
        %v942 = vpack.c.b16 %v920, %v918
        %v943 = vpack.c.b16 %v921, %v919
        %v944 = vpack.c.b16 %v924, %v922
        %v945 = vpack.c.b16 %v925, %v923
        %v946 = vpack.c.b16 %v928, %v926
        %v947 = vpack.c.b16 %v929, %v927
        %v948 = vpack.c.b16 %v932, %v930
        %v949 = vpack.c.b16 %v933, %v931
        %966 = vmatprep.subr.bf16.mxu0 0
        %967 = vmatpush1.bf16.msra.mxu0 %v667
        %968 = vmatprep.subr.bf16.mxu0 0
        %969 = vmatpush1.bf16.msra.mxu0 %v666
        %970 = vmatprep.subr.bf16.mxu0 0
        %971 = vmatpush1.bf16.msra.mxu0 %v665
        %972 = vmatprep.subr.bf16.mxu0 0
        %973 = vmatpush1.bf16.msra.mxu0 %v664
        %974 = vmatprep.subr.bf16.mxu0 0
        %975 = vmatpush1.bf16.msra.mxu0 %v663
        %976 = vmatprep.subr.bf16.mxu0 0
        %977 = vmatpush1.bf16.msra.mxu0 %v662
        %978 = vmatprep.subr.bf16.mxu0 0
        %979 = vmatpush1.bf16.msra.mxu0 %v661
        %980 = vmatprep.subr.bf16.mxu0 0
        %981 = vmatpush1.bf16.msra.mxu0 %v660
        %982 = vmatprep.subr.bf16.mxu0 0
        %983 = vmatpush2.bf16.msra.mxu0 %v675
        %984 = vmatprep.subr.bf16.mxu0 0
        %985 = vmatpush2.bf16.msra.mxu0 %v674
        %986 = vmatprep.subr.bf16.mxu0 0
        %987 = vmatpush2.bf16.msra.mxu0 %v673
        %988 = vmatprep.subr.bf16.mxu0 0
        %989 = vmatpush2.bf16.msra.mxu0 %v672
        %990 = vmatprep.subr.bf16.mxu0 0
        %991 = vmatpush2.bf16.msra.mxu0 %v671
        %992 = vmatprep.subr.bf16.mxu0 0
        %993 = vmatpush2.bf16.msra.mxu0 %v670
        %994 = vmatprep.subr.bf16.mxu0 0
        %995 = vmatpush2.bf16.msra.mxu0 %v669
        %996 = vmatprep.subr.bf16.mxu0 0
        %997 = vmatpush2.bf16.msra.mxu0 %v668
        %998 = vmatprep.mubr.bf16.mxu0 %v935
        %999 = vmatmul.mubr.bf16.gmra.mxu0 %v934
        %v1000 = vpop.f32.mrf.mxu0
        %v1001 = vadd.f32 0.0, %v1000
        %v1002 = vpop.f32.mrf.mxu0
        %v1003 = vpop.f32.mrf.mxu0
        %v1004 = vadd.f32 0.0, %v1003
        %v1005 = vpop.f32.mrf.mxu0
        %1006 = vmatprep.mubr.bf16.mxu0 %v937
        %1007 = vmatmul.mubr.bf16.gmra.mxu0 %v936
        %v1008 = vpop.f32.mrf.mxu0
        %v1009 = vadd.f32 0.0, %v1008
        %v1010 = vpop.f32.mrf.mxu0
        %v1011 = vpop.f32.mrf.mxu0
        %v1012 = vadd.f32 0.0, %v1011
        %v1013 = vpop.f32.mrf.mxu0
        %1014 = vmatprep.mubr.bf16.mxu0 %v939
        %1015 = vmatmul.mubr.bf16.gmra.mxu0 %v938
        %v1016 = vpop.f32.mrf.mxu0
        %v1017 = vadd.f32 0.0, %v1016
        %v1018 = vpop.f32.mrf.mxu0
        %v1019 = vpop.f32.mrf.mxu0
        %v1020 = vadd.f32 0.0, %v1019
        %v1021 = vpop.f32.mrf.mxu0
        %1022 = vmatprep.mubr.bf16.mxu0 %v941
        %1023 = vmatmul.mubr.bf16.gmra.mxu0 %v940
        %v1024 = vpop.f32.mrf.mxu0
        %v1025 = vadd.f32 0.0, %v1024
        %v1026 = vpop.f32.mrf.mxu0
        %v1027 = vpop.f32.mrf.mxu0
        %v1028 = vadd.f32 0.0, %v1027
        %v1029 = vpop.f32.mrf.mxu0
        %1030 = vmatprep.mubr.bf16.mxu0 %v943
        %1031 = vmatmul.mubr.bf16.gmra.mxu0 %v942
        %v1032 = vpop.f32.mrf.mxu0
        %v1033 = vadd.f32 0.0, %v1032
        %v1034 = vpop.f32.mrf.mxu0
        %v1035 = vpop.f32.mrf.mxu0
        %v1036 = vadd.f32 0.0, %v1035
        %v1037 = vpop.f32.mrf.mxu0
        %1038 = vmatprep.mubr.bf16.mxu0 %v945
        %1039 = vmatmul.mubr.bf16.gmra.mxu0 %v944
        %v1040 = vpop.f32.mrf.mxu0
        %v1041 = vadd.f32 0.0, %v1040
        %v1042 = vpop.f32.mrf.mxu0
        %v1043 = vpop.f32.mrf.mxu0
        %v1044 = vadd.f32 0.0, %v1043
        %v1045 = vpop.f32.mrf.mxu0
        %1046 = vmatprep.mubr.bf16.mxu0 %v947
        %1047 = vmatmul.mubr.bf16.gmra.mxu0 %v946
        %v1048 = vpop.f32.mrf.mxu0
        %v1049 = vadd.f32 0.0, %v1048
        %v1050 = vpop.f32.mrf.mxu0
        %v1051 = vpop.f32.mrf.mxu0
        %v1052 = vadd.f32 0.0, %v1051
        %v1053 = vpop.f32.mrf.mxu0
        %1054 = vmatprep.mubr.bf16.mxu0 %v949
        %1055 = vmatmul.mubr.bf16.gmra.mxu0 %v948
        %v1056 = vpop.f32.mrf.mxu0
        %v1057 = vadd.f32 0.0, %v1056
        %v1058 = vpop.f32.mrf.mxu0
        %v1059 = vpop.f32.mrf.mxu0
        %v1060 = vadd.f32 0.0, %v1059
        %v1061 = vpop.f32.mrf.mxu0
        %1062 = vdwg.mxu0
        %v1063 = vpack.c.bf16 %v1004, %v1001
        %v1064 = vpack.c.bf16 %v1012, %v1009
        %v1065 = vpack.c.bf16 %v1020, %v1017
        %v1066 = vpack.c.bf16 %v1028, %v1025
        %v1067 = vpack.c.bf16 %v1036, %v1033
        %v1068 = vpack.c.bf16 %v1044, %v1041
        %v1069 = vpack.c.bf16 %v1052, %v1049
        %v1070 = vpack.c.bf16 %v1060, %v1057
        %v1079 = vunpack.c.l.b16 %v1063
        %v1080 = vunpack.c.h.b16 %v1063
        %v1081 = vunpack.c.l.b16 %v1064
        %v1082 = vunpack.c.h.b16 %v1064
        %v1083 = vunpack.c.l.b16 %v1065
        %v1084 = vunpack.c.h.b16 %v1065
        %v1085 = vunpack.c.l.b16 %v1066
        %v1086 = vunpack.c.h.b16 %v1066
        %v1087 = vunpack.c.l.b16 %v1067
        %v1088 = vunpack.c.h.b16 %v1067
        %v1089 = vunpack.c.l.b16 %v1068
        %v1090 = vunpack.c.h.b16 %v1068
        %v1091 = vunpack.c.l.b16 %v1069
        %v1092 = vunpack.c.h.b16 %v1069
        %v1093 = vunpack.c.l.b16 %v1070
        %v1094 = vunpack.c.h.b16 %v1070
        %v1095 = vpack.c.b16 %v1079, %v1079
        %v1096 = vpack.c.b16 %v1080, %v1080
        %v1097 = vpack.c.b16 %v1081, %v1081
        %v1098 = vpack.c.b16 %v1082, %v1082
        %v1099 = vpack.c.b16 %v1083, %v1083
        %v1100 = vpack.c.b16 %v1084, %v1084
        %v1101 = vpack.c.b16 %v1085, %v1085
        %v1102 = vpack.c.b16 %v1086, %v1086
        %v1103 = vpack.c.b16 %v1087, %v1087
        %v1104 = vpack.c.b16 %v1088, %v1088
        %v1105 = vpack.c.b16 %v1089, %v1089
        %v1106 = vpack.c.b16 %v1090, %v1090
        %v1107 = vpack.c.b16 %v1091, %v1091
        %v1108 = vpack.c.b16 %v1092, %v1092
        %v1109 = vpack.c.b16 %v1093, %v1093
        %v1110 = vpack.c.b16 %v1094, %v1094
        %1127 = vst [vmem:[#allocation2 + $0x4] sm:$0xf] %v1095
        %1128 = vst [vmem:[#allocation2 + $0x28] sm:$0xf] %v1096
        %1129 = vst [vmem:[#allocation2 + $0x4c] sm:$0xf] %v1097
        %1130 = vst [vmem:[#allocation2 + $0x70] sm:$0xf] %v1098
        %1131 = vst [vmem:[#allocation2 + $0x94] sm:$0xf] %v1099
        %1132 = vst [vmem:[#allocation2 + $0xb8] sm:$0xf] %v1100
        %1133 = vst [vmem:[#allocation2 + $0xdc] sm:$0xf] %v1101
        %1134 = vst [vmem:[#allocation2 + $0x100] sm:$0xf] %v1102
        %1135 = vst [vmem:[#allocation2 + $0x124] sm:$0xf] %v1103
        %1136 = vst [vmem:[#allocation2 + $0x148] sm:$0xf] %v1104
        %1137 = vst [vmem:[#allocation2 + $0x16c] sm:$0xf] %v1105
        %1138 = vst [vmem:[#allocation2 + $0x190] sm:$0xf] %v1106
        %1139 = vst [vmem:[#allocation2 + $0x1b4] sm:$0xf] %v1107
        %1140 = vst [vmem:[#allocation2 + $0x1d8] sm:$0xf] %v1108
        %1141 = vst [vmem:[#allocation2 + $0x1fc] sm:$0xf] %v1109
        %1142 = vst [vmem:[#allocation2 + $0x220] sm:$0xf] %v1110
        %s1143 = scalar_lea.vmem %s390, 256 [#allocation3]
        %v1144 = vld [vmem:[%s1143] sm:$0xff]
        %v1145 = vld [vmem:[%s1143 + $0x8] sm:$0xff]
        %v1146 = vld [vmem:[%s1143 + $0x10] sm:$0xff]
        %v1147 = vld [vmem:[%s1143 + $0x18] sm:$0xff]
        %v1148 = vld [vmem:[%s1143 + $0x20] sm:$0xff]
        %v1149 = vld [vmem:[%s1143 + $0x28] sm:$0xff]
        %v1150 = vld [vmem:[%s1143 + $0x30] sm:$0xff]
        %v1151 = vld [vmem:[%s1143 + $0x38] sm:$0xff]
        %v1152 = vld [vmem:[%s1143 + $0x40] sm:$0xff]
        %v1153 = vld [vmem:[%s1143 + $0x48] sm:$0xff]
        %v1154 = vld [vmem:[%s1143 + $0x50] sm:$0xff]
        %v1155 = vld [vmem:[%s1143 + $0x58] sm:$0xff]
        %v1156 = vld [vmem:[%s1143 + $0x60] sm:$0xff]
        %v1157 = vld [vmem:[%s1143 + $0x68] sm:$0xff]
        %v1158 = vld [vmem:[%s1143 + $0x70] sm:$0xff]
        %v1159 = vld [vmem:[%s1143 + $0x78] sm:$0xff]
        %v1176 = vunpack.c.l.b16 %v1144
        %v1177 = vunpack.c.h.b16 %v1144
        %v1178 = vunpack.c.l.b16 %v1145
        %v1179 = vunpack.c.h.b16 %v1145
        %v1180 = vunpack.c.l.b16 %v1146
        %v1181 = vunpack.c.h.b16 %v1146
        %v1182 = vunpack.c.l.b16 %v1147
        %v1183 = vunpack.c.h.b16 %v1147
        %v1184 = vunpack.c.l.b16 %v1148
        %v1185 = vunpack.c.h.b16 %v1148
        %v1186 = vunpack.c.l.b16 %v1149
        %v1187 = vunpack.c.h.b16 %v1149
        %v1188 = vunpack.c.l.b16 %v1150
        %v1189 = vunpack.c.h.b16 %v1150
        %v1190 = vunpack.c.l.b16 %v1151
        %v1191 = vunpack.c.h.b16 %v1151
        %v1192 = vunpack.c.l.b16 %v1152
        %v1193 = vunpack.c.h.b16 %v1152
        %v1194 = vunpack.c.l.b16 %v1153
        %v1195 = vunpack.c.h.b16 %v1153
        %v1196 = vunpack.c.l.b16 %v1154
        %v1197 = vunpack.c.h.b16 %v1154
        %v1198 = vunpack.c.l.b16 %v1155
        %v1199 = vunpack.c.h.b16 %v1155
        %v1200 = vunpack.c.l.b16 %v1156
        %v1201 = vunpack.c.h.b16 %v1156
        %v1202 = vunpack.c.l.b16 %v1157
        %v1203 = vunpack.c.h.b16 %v1157
        %v1204 = vunpack.c.l.b16 %v1158
        %v1205 = vunpack.c.h.b16 %v1158
        %v1206 = vunpack.c.l.b16 %v1159
        %v1207 = vunpack.c.h.b16 %v1159
        %v1208 = vpack.c.b16 %v1178, %v1176
        %v1209 = vpack.c.b16 %v1179, %v1177
        %v1210 = vpack.c.b16 %v1182, %v1180
        %v1211 = vpack.c.b16 %v1183, %v1181
        %v1212 = vpack.c.b16 %v1186, %v1184
        %v1213 = vpack.c.b16 %v1187, %v1185
        %v1214 = vpack.c.b16 %v1190, %v1188
        %v1215 = vpack.c.b16 %v1191, %v1189
        %v1216 = vpack.c.b16 %v1194, %v1192
        %v1217 = vpack.c.b16 %v1195, %v1193
        %v1218 = vpack.c.b16 %v1198, %v1196
        %v1219 = vpack.c.b16 %v1199, %v1197
        %v1220 = vpack.c.b16 %v1202, %v1200
        %v1221 = vpack.c.b16 %v1203, %v1201
        %v1222 = vpack.c.b16 %v1206, %v1204
        %v1223 = vpack.c.b16 %v1207, %v1205
        %1240 = vmatprep.subr.bf16.mxu0 0
        %1241 = vmatpush1.bf16.msra.mxu0 %v667
        %1242 = vmatprep.subr.bf16.mxu0 0
        %1243 = vmatpush1.bf16.msra.mxu0 %v666
        %1244 = vmatprep.subr.bf16.mxu0 0
        %1245 = vmatpush1.bf16.msra.mxu0 %v665
        %1246 = vmatprep.subr.bf16.mxu0 0
        %1247 = vmatpush1.bf16.msra.mxu0 %v664
        %1248 = vmatprep.subr.bf16.mxu0 0
        %1249 = vmatpush1.bf16.msra.mxu0 %v663
        %1250 = vmatprep.subr.bf16.mxu0 0
        %1251 = vmatpush1.bf16.msra.mxu0 %v662
        %1252 = vmatprep.subr.bf16.mxu0 0
        %1253 = vmatpush1.bf16.msra.mxu0 %v661
        %1254 = vmatprep.subr.bf16.mxu0 0
        %1255 = vmatpush1.bf16.msra.mxu0 %v660
        %1256 = vmatprep.subr.bf16.mxu0 0
        %1257 = vmatpush2.bf16.msra.mxu0 %v675
        %1258 = vmatprep.subr.bf16.mxu0 0
        %1259 = vmatpush2.bf16.msra.mxu0 %v674
        %1260 = vmatprep.subr.bf16.mxu0 0
        %1261 = vmatpush2.bf16.msra.mxu0 %v673
        %1262 = vmatprep.subr.bf16.mxu0 0
        %1263 = vmatpush2.bf16.msra.mxu0 %v672
        %1264 = vmatprep.subr.bf16.mxu0 0
        %1265 = vmatpush2.bf16.msra.mxu0 %v671
        %1266 = vmatprep.subr.bf16.mxu0 0
        %1267 = vmatpush2.bf16.msra.mxu0 %v670
        %1268 = vmatprep.subr.bf16.mxu0 0
        %1269 = vmatpush2.bf16.msra.mxu0 %v669
        %1270 = vmatprep.subr.bf16.mxu0 0
        %1271 = vmatpush2.bf16.msra.mxu0 %v668
        %1272 = vmatprep.mubr.bf16.mxu0 %v1209
        %1273 = vmatmul.mubr.bf16.gmra.mxu0 %v1208
        %v1274 = vpop.f32.mrf.mxu0
        %v1275 = vadd.f32 0.0, %v1274
        %v1276 = vpop.f32.mrf.mxu0
        %v1277 = vpop.f32.mrf.mxu0
        %v1278 = vadd.f32 0.0, %v1277
        %v1279 = vpop.f32.mrf.mxu0
        %1280 = vmatprep.mubr.bf16.mxu0 %v1211
        %1281 = vmatmul.mubr.bf16.gmra.mxu0 %v1210
        %v1282 = vpop.f32.mrf.mxu0
        %v1283 = vadd.f32 0.0, %v1282
        %v1284 = vpop.f32.mrf.mxu0
        %v1285 = vpop.f32.mrf.mxu0
        %v1286 = vadd.f32 0.0, %v1285
        %v1287 = vpop.f32.mrf.mxu0
        %1288 = vmatprep.mubr.bf16.mxu0 %v1213
        %1289 = vmatmul.mubr.bf16.gmra.mxu0 %v1212
        %v1290 = vpop.f32.mrf.mxu0
        %v1291 = vadd.f32 0.0, %v1290
        %v1292 = vpop.f32.mrf.mxu0
        %v1293 = vpop.f32.mrf.mxu0
        %v1294 = vadd.f32 0.0, %v1293
        %v1295 = vpop.f32.mrf.mxu0
        %1296 = vmatprep.mubr.bf16.mxu0 %v1215
        %1297 = vmatmul.mubr.bf16.gmra.mxu0 %v1214
        %v1298 = vpop.f32.mrf.mxu0
        %v1299 = vadd.f32 0.0, %v1298
        %v1300 = vpop.f32.mrf.mxu0
        %v1301 = vpop.f32.mrf.mxu0
        %v1302 = vadd.f32 0.0, %v1301
        %v1303 = vpop.f32.mrf.mxu0
        %1304 = vmatprep.mubr.bf16.mxu0 %v1217
        %1305 = vmatmul.mubr.bf16.gmra.mxu0 %v1216
        %v1306 = vpop.f32.mrf.mxu0
        %v1307 = vadd.f32 0.0, %v1306
        %v1308 = vpop.f32.mrf.mxu0
        %v1309 = vpop.f32.mrf.mxu0
        %v1310 = vadd.f32 0.0, %v1309
        %v1311 = vpop.f32.mrf.mxu0
        %1312 = vmatprep.mubr.bf16.mxu0 %v1219
        %1313 = vmatmul.mubr.bf16.gmra.mxu0 %v1218
        %v1314 = vpop.f32.mrf.mxu0
        %v1315 = vadd.f32 0.0, %v1314
        %v1316 = vpop.f32.mrf.mxu0
        %v1317 = vpop.f32.mrf.mxu0
        %v1318 = vadd.f32 0.0, %v1317
        %v1319 = vpop.f32.mrf.mxu0
        %1320 = vmatprep.mubr.bf16.mxu0 %v1221
        %1321 = vmatmul.mubr.bf16.gmra.mxu0 %v1220
        %v1322 = vpop.f32.mrf.mxu0
        %v1323 = vadd.f32 0.0, %v1322
        %v1324 = vpop.f32.mrf.mxu0
        %v1325 = vpop.f32.mrf.mxu0
        %v1326 = vadd.f32 0.0, %v1325
        %v1327 = vpop.f32.mrf.mxu0
        %1328 = vmatprep.mubr.bf16.mxu0 %v1223
        %1329 = vmatmul.mubr.bf16.gmra.mxu0 %v1222
        %v1330 = vpop.f32.mrf.mxu0
        %v1331 = vadd.f32 0.0, %v1330
        %v1332 = vpop.f32.mrf.mxu0
        %v1333 = vpop.f32.mrf.mxu0
        %v1334 = vadd.f32 0.0, %v1333
        %v1335 = vpop.f32.mrf.mxu0
        %1336 = vdwg.mxu0
        %v1337 = vpack.c.bf16 %v1278, %v1275
        %v1338 = vpack.c.bf16 %v1286, %v1283
        %v1339 = vpack.c.bf16 %v1294, %v1291
        %v1340 = vpack.c.bf16 %v1302, %v1299
        %v1341 = vpack.c.bf16 %v1310, %v1307
        %v1342 = vpack.c.bf16 %v1318, %v1315
        %v1343 = vpack.c.bf16 %v1326, %v1323
        %v1344 = vpack.c.bf16 %v1334, %v1331
        %v1353 = vunpack.c.l.b16 %v1337
        %v1354 = vunpack.c.h.b16 %v1337
        %v1355 = vunpack.c.l.b16 %v1338
        %v1356 = vunpack.c.h.b16 %v1338
        %v1357 = vunpack.c.l.b16 %v1339
        %v1358 = vunpack.c.h.b16 %v1339
        %v1359 = vunpack.c.l.b16 %v1340
        %v1360 = vunpack.c.h.b16 %v1340
        %v1361 = vunpack.c.l.b16 %v1341
        %v1362 = vunpack.c.h.b16 %v1341
        %v1363 = vunpack.c.l.b16 %v1342
        %v1364 = vunpack.c.h.b16 %v1342
        %v1365 = vunpack.c.l.b16 %v1343
        %v1366 = vunpack.c.h.b16 %v1343
        %v1367 = vunpack.c.l.b16 %v1344
        %v1368 = vunpack.c.h.b16 %v1344
        %v1369 = vpack.c.b16 %v1353, %v1353
        %v1370 = vpack.c.b16 %v1354, %v1354
        %v1371 = vpack.c.b16 %v1355, %v1355
        %v1372 = vpack.c.b16 %v1356, %v1356
        %v1373 = vpack.c.b16 %v1357, %v1357
        %v1374 = vpack.c.b16 %v1358, %v1358
        %v1375 = vpack.c.b16 %v1359, %v1359
        %v1376 = vpack.c.b16 %v1360, %v1360
        %v1377 = vpack.c.b16 %v1361, %v1361
        %v1378 = vpack.c.b16 %v1362, %v1362
        %v1379 = vpack.c.b16 %v1363, %v1363
        %v1380 = vpack.c.b16 %v1364, %v1364
        %v1381 = vpack.c.b16 %v1365, %v1365
        %v1382 = vpack.c.b16 %v1366, %v1366
        %v1383 = vpack.c.b16 %v1367, %v1367
        %v1384 = vpack.c.b16 %v1368, %v1368
        %1401 = vst [vmem:[#allocation2 + $0x8] sm:$0xf] %v1369
        %1402 = vst [vmem:[#allocation2 + $0x2c] sm:$0xf] %v1370
        %1403 = vst [vmem:[#allocation2 + $0x50] sm:$0xf] %v1371
        %1404 = vst [vmem:[#allocation2 + $0x74] sm:$0xf] %v1372
        %1405 = vst [vmem:[#allocation2 + $0x98] sm:$0xf] %v1373
        %1406 = vst [vmem:[#allocation2 + $0xbc] sm:$0xf] %v1374
        %1407 = vst [vmem:[#allocation2 + $0xe0] sm:$0xf] %v1375
        %1408 = vst [vmem:[#allocation2 + $0x104] sm:$0xf] %v1376
        %1409 = vst [vmem:[#allocation2 + $0x128] sm:$0xf] %v1377
        %1410 = vst [vmem:[#allocation2 + $0x14c] sm:$0xf] %v1378
        %1411 = vst [vmem:[#allocation2 + $0x170] sm:$0xf] %v1379
        %1412 = vst [vmem:[#allocation2 + $0x194] sm:$0xf] %v1380
        %1413 = vst [vmem:[#allocation2 + $0x1b8] sm:$0xf] %v1381
        %1414 = vst [vmem:[#allocation2 + $0x1dc] sm:$0xf] %v1382
        %1415 = vst [vmem:[#allocation2 + $0x200] sm:$0xf] %v1383
        %1416 = vst [vmem:[#allocation2 + $0x224] sm:$0xf] %v1384
        %s1417 = scalar_lea.vmem %s390, 384 [#allocation3]
        %v1418 = vld [vmem:[%s1417] sm:$0xff]
        %v1419 = vld [vmem:[%s1417 + $0x8] sm:$0xff]
        %v1420 = vld [vmem:[%s1417 + $0x10] sm:$0xff]
        %v1421 = vld [vmem:[%s1417 + $0x18] sm:$0xff]
        %v1422 = vld [vmem:[%s1417 + $0x20] sm:$0xff]
        %v1423 = vld [vmem:[%s1417 + $0x28] sm:$0xff]
        %v1424 = vld [vmem:[%s1417 + $0x30] sm:$0xff]
        %v1425 = vld [vmem:[%s1417 + $0x38] sm:$0xff]
        %v1426 = vld [vmem:[%s1417 + $0x40] sm:$0xff]
        %v1427 = vld [vmem:[%s1417 + $0x48] sm:$0xff]
        %v1428 = vld [vmem:[%s1417 + $0x50] sm:$0xff]
        %v1429 = vld [vmem:[%s1417 + $0x58] sm:$0xff]
        %v1430 = vld [vmem:[%s1417 + $0x60] sm:$0xff]
        %v1431 = vld [vmem:[%s1417 + $0x68] sm:$0xff]
        %v1432 = vld [vmem:[%s1417 + $0x70] sm:$0xff]
        %v1433 = vld [vmem:[%s1417 + $0x78] sm:$0xff]
        %v1450 = vunpack.c.l.b16 %v1418
        %v1451 = vunpack.c.h.b16 %v1418
        %v1452 = vunpack.c.l.b16 %v1419
        %v1453 = vunpack.c.h.b16 %v1419
        %v1454 = vunpack.c.l.b16 %v1420
        %v1455 = vunpack.c.h.b16 %v1420
        %v1456 = vunpack.c.l.b16 %v1421
        %v1457 = vunpack.c.h.b16 %v1421
        %v1458 = vunpack.c.l.b16 %v1422
        %v1459 = vunpack.c.h.b16 %v1422
        %v1460 = vunpack.c.l.b16 %v1423
        %v1461 = vunpack.c.h.b16 %v1423
        %v1462 = vunpack.c.l.b16 %v1424
        %v1463 = vunpack.c.h.b16 %v1424
        %v1464 = vunpack.c.l.b16 %v1425
        %v1465 = vunpack.c.h.b16 %v1425
        %v1466 = vunpack.c.l.b16 %v1426
        %v1467 = vunpack.c.h.b16 %v1426
        %v1468 = vunpack.c.l.b16 %v1427
        %v1469 = vunpack.c.h.b16 %v1427
        %v1470 = vunpack.c.l.b16 %v1428
        %v1471 = vunpack.c.h.b16 %v1428
        %v1472 = vunpack.c.l.b16 %v1429
        %v1473 = vunpack.c.h.b16 %v1429
        %v1474 = vunpack.c.l.b16 %v1430
        %v1475 = vunpack.c.h.b16 %v1430
        %v1476 = vunpack.c.l.b16 %v1431
        %v1477 = vunpack.c.h.b16 %v1431
        %v1478 = vunpack.c.l.b16 %v1432
        %v1479 = vunpack.c.h.b16 %v1432
        %v1480 = vunpack.c.l.b16 %v1433
        %v1481 = vunpack.c.h.b16 %v1433
        %v1482 = vpack.c.b16 %v1452, %v1450
        %v1483 = vpack.c.b16 %v1453, %v1451
        %v1484 = vpack.c.b16 %v1456, %v1454
        %v1485 = vpack.c.b16 %v1457, %v1455
        %v1486 = vpack.c.b16 %v1460, %v1458
        %v1487 = vpack.c.b16 %v1461, %v1459
        %v1488 = vpack.c.b16 %v1464, %v1462
        %v1489 = vpack.c.b16 %v1465, %v1463
        %v1490 = vpack.c.b16 %v1468, %v1466
        %v1491 = vpack.c.b16 %v1469, %v1467
        %v1492 = vpack.c.b16 %v1472, %v1470
        %v1493 = vpack.c.b16 %v1473, %v1471
        %v1494 = vpack.c.b16 %v1476, %v1474
        %v1495 = vpack.c.b16 %v1477, %v1475
        %v1496 = vpack.c.b16 %v1480, %v1478
        %v1497 = vpack.c.b16 %v1481, %v1479
        %1514 = vmatprep.subr.bf16.mxu0 0
        %1515 = vmatpush1.bf16.msra.mxu0 %v667
        %1516 = vmatprep.subr.bf16.mxu0 0
        %1517 = vmatpush1.bf16.msra.mxu0 %v666
        %1518 = vmatprep.subr.bf16.mxu0 0
        %1519 = vmatpush1.bf16.msra.mxu0 %v665
        %1520 = vmatprep.subr.bf16.mxu0 0
        %1521 = vmatpush1.bf16.msra.mxu0 %v664
        %1522 = vmatprep.subr.bf16.mxu0 0
        %1523 = vmatpush1.bf16.msra.mxu0 %v663
        %1524 = vmatprep.subr.bf16.mxu0 0
        %1525 = vmatpush1.bf16.msra.mxu0 %v662
        %1526 = vmatprep.subr.bf16.mxu0 0
        %1527 = vmatpush1.bf16.msra.mxu0 %v661
        %1528 = vmatprep.subr.bf16.mxu0 0
        %1529 = vmatpush1.bf16.msra.mxu0 %v660
        %1530 = vmatprep.subr.bf16.mxu0 0
        %1531 = vmatpush2.bf16.msra.mxu0 %v675
        %1532 = vmatprep.subr.bf16.mxu0 0
        %1533 = vmatpush2.bf16.msra.mxu0 %v674
        %1534 = vmatprep.subr.bf16.mxu0 0
        %1535 = vmatpush2.bf16.msra.mxu0 %v673
        %1536 = vmatprep.subr.bf16.mxu0 0
        %1537 = vmatpush2.bf16.msra.mxu0 %v672
        %1538 = vmatprep.subr.bf16.mxu0 0
        %1539 = vmatpush2.bf16.msra.mxu0 %v671
        %1540 = vmatprep.subr.bf16.mxu0 0
        %1541 = vmatpush2.bf16.msra.mxu0 %v670
        %1542 = vmatprep.subr.bf16.mxu0 0
        %1543 = vmatpush2.bf16.msra.mxu0 %v669
        %1544 = vmatprep.subr.bf16.mxu0 0
        %1545 = vmatpush2.bf16.msra.mxu0 %v668
        %1546 = vmatprep.mubr.bf16.mxu0 %v1483
        %1547 = vmatmul.mubr.bf16.gmra.mxu0 %v1482
        %v1548 = vpop.f32.mrf.mxu0
        %v1549 = vadd.f32 0.0, %v1548
        %v1550 = vpop.f32.mrf.mxu0
        %v1551 = vpop.f32.mrf.mxu0
        %v1552 = vadd.f32 0.0, %v1551
        %v1553 = vpop.f32.mrf.mxu0
        %1554 = vmatprep.mubr.bf16.mxu0 %v1485
        %1555 = vmatmul.mubr.bf16.gmra.mxu0 %v1484
        %v1556 = vpop.f32.mrf.mxu0
        %v1557 = vadd.f32 0.0, %v1556
        %v1558 = vpop.f32.mrf.mxu0
        %v1559 = vpop.f32.mrf.mxu0
        %v1560 = vadd.f32 0.0, %v1559
        %v1561 = vpop.f32.mrf.mxu0
        %1562 = vmatprep.mubr.bf16.mxu0 %v1487
        %1563 = vmatmul.mubr.bf16.gmra.mxu0 %v1486
        %v1564 = vpop.f32.mrf.mxu0
        %v1565 = vadd.f32 0.0, %v1564
        %v1566 = vpop.f32.mrf.mxu0
        %v1567 = vpop.f32.mrf.mxu0
        %v1568 = vadd.f32 0.0, %v1567
        %v1569 = vpop.f32.mrf.mxu0
        %1570 = vmatprep.mubr.bf16.mxu0 %v1489
        %1571 = vmatmul.mubr.bf16.gmra.mxu0 %v1488
        %v1572 = vpop.f32.mrf.mxu0
        %v1573 = vadd.f32 0.0, %v1572
        %v1574 = vpop.f32.mrf.mxu0
        %v1575 = vpop.f32.mrf.mxu0
        %v1576 = vadd.f32 0.0, %v1575
        %v1577 = vpop.f32.mrf.mxu0
        %1578 = vmatprep.mubr.bf16.mxu0 %v1491
        %1579 = vmatmul.mubr.bf16.gmra.mxu0 %v1490
        %v1580 = vpop.f32.mrf.mxu0
        %v1581 = vadd.f32 0.0, %v1580
        %v1582 = vpop.f32.mrf.mxu0
        %v1583 = vpop.f32.mrf.mxu0
        %v1584 = vadd.f32 0.0, %v1583
        %v1585 = vpop.f32.mrf.mxu0
        %1586 = vmatprep.mubr.bf16.mxu0 %v1493
        %1587 = vmatmul.mubr.bf16.gmra.mxu0 %v1492
        %v1588 = vpop.f32.mrf.mxu0
        %v1589 = vadd.f32 0.0, %v1588
        %v1590 = vpop.f32.mrf.mxu0
        %v1591 = vpop.f32.mrf.mxu0
        %v1592 = vadd.f32 0.0, %v1591
        %v1593 = vpop.f32.mrf.mxu0
        %1594 = vmatprep.mubr.bf16.mxu0 %v1495
        %1595 = vmatmul.mubr.bf16.gmra.mxu0 %v1494
        %v1596 = vpop.f32.mrf.mxu0
        %v1597 = vadd.f32 0.0, %v1596
        %v1598 = vpop.f32.mrf.mxu0
        %v1599 = vpop.f32.mrf.mxu0
        %v1600 = vadd.f32 0.0, %v1599
        %v1601 = vpop.f32.mrf.mxu0
        %1602 = vmatprep.mubr.bf16.mxu0 %v1497
        %1603 = vmatmul.mubr.bf16.gmra.mxu0 %v1496
        %v1604 = vpop.f32.mrf.mxu0
        %v1605 = vadd.f32 0.0, %v1604
        %v1606 = vpop.f32.mrf.mxu0
        %v1607 = vpop.f32.mrf.mxu0
        %v1608 = vadd.f32 0.0, %v1607
        %v1609 = vpop.f32.mrf.mxu0
        %1610 = vdwg.mxu0
        %v1611 = vpack.c.bf16 %v1552, %v1549
        %v1612 = vpack.c.bf16 %v1560, %v1557
        %v1613 = vpack.c.bf16 %v1568, %v1565
        %v1614 = vpack.c.bf16 %v1576, %v1573
        %v1615 = vpack.c.bf16 %v1584, %v1581
        %v1616 = vpack.c.bf16 %v1592, %v1589
        %v1617 = vpack.c.bf16 %v1600, %v1597
        %v1618 = vpack.c.bf16 %v1608, %v1605
        %v1627 = vunpack.c.l.b16 %v1611
        %v1628 = vunpack.c.h.b16 %v1611
        %v1629 = vunpack.c.l.b16 %v1612
        %v1630 = vunpack.c.h.b16 %v1612
        %v1631 = vunpack.c.l.b16 %v1613
        %v1632 = vunpack.c.h.b16 %v1613
        %v1633 = vunpack.c.l.b16 %v1614
        %v1634 = vunpack.c.h.b16 %v1614
        %v1635 = vunpack.c.l.b16 %v1615
        %v1636 = vunpack.c.h.b16 %v1615
        %v1637 = vunpack.c.l.b16 %v1616
        %v1638 = vunpack.c.h.b16 %v1616
        %v1639 = vunpack.c.l.b16 %v1617
        %v1640 = vunpack.c.h.b16 %v1617
        %v1641 = vunpack.c.l.b16 %v1618
        %v1642 = vunpack.c.h.b16 %v1618
        %v1643 = vpack.c.b16 %v1627, %v1627
        %v1644 = vpack.c.b16 %v1628, %v1628
        %v1645 = vpack.c.b16 %v1629, %v1629
        %v1646 = vpack.c.b16 %v1630, %v1630
        %v1647 = vpack.c.b16 %v1631, %v1631
        %v1648 = vpack.c.b16 %v1632, %v1632
        %v1649 = vpack.c.b16 %v1633, %v1633
        %v1650 = vpack.c.b16 %v1634, %v1634
        %v1651 = vpack.c.b16 %v1635, %v1635
        %v1652 = vpack.c.b16 %v1636, %v1636
        %v1653 = vpack.c.b16 %v1637, %v1637
        %v1654 = vpack.c.b16 %v1638, %v1638
        %v1655 = vpack.c.b16 %v1639, %v1639
        %v1656 = vpack.c.b16 %v1640, %v1640
        %v1657 = vpack.c.b16 %v1641, %v1641
        %v1658 = vpack.c.b16 %v1642, %v1642
        %1675 = vst [vmem:[#allocation2 + $0xc] sm:$0xf] %v1643
        %1676 = vst [vmem:[#allocation2 + $0x30] sm:$0xf] %v1644
        %1677 = vst [vmem:[#allocation2 + $0x54] sm:$0xf] %v1645
        %1678 = vst [vmem:[#allocation2 + $0x78] sm:$0xf] %v1646
        %1679 = vst [vmem:[#allocation2 + $0x9c] sm:$0xf] %v1647
        %1680 = vst [vmem:[#allocation2 + $0xc0] sm:$0xf] %v1648
        %1681 = vst [vmem:[#allocation2 + $0xe4] sm:$0xf] %v1649
        %1682 = vst [vmem:[#allocation2 + $0x108] sm:$0xf] %v1650
        %1683 = vst [vmem:[#allocation2 + $0x12c] sm:$0xf] %v1651
        %1684 = vst [vmem:[#allocation2 + $0x150] sm:$0xf] %v1652
        %1685 = vst [vmem:[#allocation2 + $0x174] sm:$0xf] %v1653
        %1686 = vst [vmem:[#allocation2 + $0x198] sm:$0xf] %v1654
        %1687 = vst [vmem:[#allocation2 + $0x1bc] sm:$0xf] %v1655
        %1688 = vst [vmem:[#allocation2 + $0x1e0] sm:$0xf] %v1656
        %1689 = vst [vmem:[#allocation2 + $0x204] sm:$0xf] %v1657
        %1690 = vst [vmem:[#allocation2 + $0x228] sm:$0xf] %v1658
        %s1691 = scalar_lea.vmem %s390, 512 [#allocation3]
        %v1692 = vld [vmem:[%s1691] sm:$0xff]
        %v1693 = vld [vmem:[%s1691 + $0x8] sm:$0xff]
        %v1694 = vld [vmem:[%s1691 + $0x10] sm:$0xff]
        %v1695 = vld [vmem:[%s1691 + $0x18] sm:$0xff]
        %v1696 = vld [vmem:[%s1691 + $0x20] sm:$0xff]
        %v1697 = vld [vmem:[%s1691 + $0x28] sm:$0xff]
        %v1698 = vld [vmem:[%s1691 + $0x30] sm:$0xff]
        %v1699 = vld [vmem:[%s1691 + $0x38] sm:$0xff]
        %v1700 = vld [vmem:[%s1691 + $0x40] sm:$0xff]
        %v1701 = vld [vmem:[%s1691 + $0x48] sm:$0xff]
        %v1702 = vld [vmem:[%s1691 + $0x50] sm:$0xff]
        %v1703 = vld [vmem:[%s1691 + $0x58] sm:$0xff]
        %v1704 = vld [vmem:[%s1691 + $0x60] sm:$0xff]
        %v1705 = vld [vmem:[%s1691 + $0x68] sm:$0xff]
        %v1706 = vld [vmem:[%s1691 + $0x70] sm:$0xff]
        %v1707 = vld [vmem:[%s1691 + $0x78] sm:$0xff]
        %v1724 = vunpack.c.l.b16 %v1692
        %v1725 = vunpack.c.h.b16 %v1692
        %v1726 = vunpack.c.l.b16 %v1693
        %v1727 = vunpack.c.h.b16 %v1693
        %v1728 = vunpack.c.l.b16 %v1694
        %v1729 = vunpack.c.h.b16 %v1694
        %v1730 = vunpack.c.l.b16 %v1695
        %v1731 = vunpack.c.h.b16 %v1695
        %v1732 = vunpack.c.l.b16 %v1696
        %v1733 = vunpack.c.h.b16 %v1696
        %v1734 = vunpack.c.l.b16 %v1697
        %v1735 = vunpack.c.h.b16 %v1697
        %v1736 = vunpack.c.l.b16 %v1698
        %v1737 = vunpack.c.h.b16 %v1698
        %v1738 = vunpack.c.l.b16 %v1699
        %v1739 = vunpack.c.h.b16 %v1699
        %v1740 = vunpack.c.l.b16 %v1700
        %v1741 = vunpack.c.h.b16 %v1700
        %v1742 = vunpack.c.l.b16 %v1701
        %v1743 = vunpack.c.h.b16 %v1701
        %v1744 = vunpack.c.l.b16 %v1702
        %v1745 = vunpack.c.h.b16 %v1702
        %v1746 = vunpack.c.l.b16 %v1703
        %v1747 = vunpack.c.h.b16 %v1703
        %v1748 = vunpack.c.l.b16 %v1704
        %v1749 = vunpack.c.h.b16 %v1704
        %v1750 = vunpack.c.l.b16 %v1705
        %v1751 = vunpack.c.h.b16 %v1705
        %v1752 = vunpack.c.l.b16 %v1706
        %v1753 = vunpack.c.h.b16 %v1706
        %v1754 = vunpack.c.l.b16 %v1707
        %v1755 = vunpack.c.h.b16 %v1707
        %v1756 = vpack.c.b16 %v1726, %v1724
        %v1757 = vpack.c.b16 %v1727, %v1725
        %v1758 = vpack.c.b16 %v1730, %v1728
        %v1759 = vpack.c.b16 %v1731, %v1729
        %v1760 = vpack.c.b16 %v1734, %v1732
        %v1761 = vpack.c.b16 %v1735, %v1733
        %v1762 = vpack.c.b16 %v1738, %v1736
        %v1763 = vpack.c.b16 %v1739, %v1737
        %v1764 = vpack.c.b16 %v1742, %v1740
        %v1765 = vpack.c.b16 %v1743, %v1741
        %v1766 = vpack.c.b16 %v1746, %v1744
        %v1767 = vpack.c.b16 %v1747, %v1745
        %v1768 = vpack.c.b16 %v1750, %v1748
        %v1769 = vpack.c.b16 %v1751, %v1749
        %v1770 = vpack.c.b16 %v1754, %v1752
        %v1771 = vpack.c.b16 %v1755, %v1753
        %1788 = vmatprep.subr.bf16.mxu0 0
        %1789 = vmatpush1.bf16.msra.mxu0 %v667
        %1790 = vmatprep.subr.bf16.mxu0 0
        %1791 = vmatpush1.bf16.msra.mxu0 %v666
        %1792 = vmatprep.subr.bf16.mxu0 0
        %1793 = vmatpush1.bf16.msra.mxu0 %v665
        %1794 = vmatprep.subr.bf16.mxu0 0
        %1795 = vmatpush1.bf16.msra.mxu0 %v664
        %1796 = vmatprep.subr.bf16.mxu0 0
        %1797 = vmatpush1.bf16.msra.mxu0 %v663
        %1798 = vmatprep.subr.bf16.mxu0 0
        %1799 = vmatpush1.bf16.msra.mxu0 %v662
        %1800 = vmatprep.subr.bf16.mxu0 0
        %1801 = vmatpush1.bf16.msra.mxu0 %v661
        %1802 = vmatprep.subr.bf16.mxu0 0
        %1803 = vmatpush1.bf16.msra.mxu0 %v660
        %1804 = vmatprep.subr.bf16.mxu0 0
        %1805 = vmatpush2.bf16.msra.mxu0 %v675
        %1806 = vmatprep.subr.bf16.mxu0 0
        %1807 = vmatpush2.bf16.msra.mxu0 %v674
        %1808 = vmatprep.subr.bf16.mxu0 0
        %1809 = vmatpush2.bf16.msra.mxu0 %v673
        %1810 = vmatprep.subr.bf16.mxu0 0
        %1811 = vmatpush2.bf16.msra.mxu0 %v672
        %1812 = vmatprep.subr.bf16.mxu0 0
        %1813 = vmatpush2.bf16.msra.mxu0 %v671
        %1814 = vmatprep.subr.bf16.mxu0 0
        %1815 = vmatpush2.bf16.msra.mxu0 %v670
        %1816 = vmatprep.subr.bf16.mxu0 0
        %1817 = vmatpush2.bf16.msra.mxu0 %v669
        %1818 = vmatprep.subr.bf16.mxu0 0
        %1819 = vmatpush2.bf16.msra.mxu0 %v668
        %1820 = vmatprep.mubr.bf16.mxu0 %v1757
        %1821 = vmatmul.mubr.bf16.gmra.mxu0 %v1756
        %v1822 = vpop.f32.mrf.mxu0
        %v1823 = vadd.f32 0.0, %v1822
        %v1824 = vpop.f32.mrf.mxu0
        %v1825 = vpop.f32.mrf.mxu0
        %v1826 = vadd.f32 0.0, %v1825
        %v1827 = vpop.f32.mrf.mxu0
        %1828 = vmatprep.mubr.bf16.mxu0 %v1759
        %1829 = vmatmul.mubr.bf16.gmra.mxu0 %v1758
        %v1830 = vpop.f32.mrf.mxu0
        %v1831 = vadd.f32 0.0, %v1830
        %v1832 = vpop.f32.mrf.mxu0
        %v1833 = vpop.f32.mrf.mxu0
        %v1834 = vadd.f32 0.0, %v1833
        %v1835 = vpop.f32.mrf.mxu0
        %1836 = vmatprep.mubr.bf16.mxu0 %v1761
        %1837 = vmatmul.mubr.bf16.gmra.mxu0 %v1760
        %v1838 = vpop.f32.mrf.mxu0
        %v1839 = vadd.f32 0.0, %v1838
        %v1840 = vpop.f32.mrf.mxu0
        %v1841 = vpop.f32.mrf.mxu0
        %v1842 = vadd.f32 0.0, %v1841
        %v1843 = vpop.f32.mrf.mxu0
        %1844 = vmatprep.mubr.bf16.mxu0 %v1763
        %1845 = vmatmul.mubr.bf16.gmra.mxu0 %v1762
        %v1846 = vpop.f32.mrf.mxu0
        %v1847 = vadd.f32 0.0, %v1846
        %v1848 = vpop.f32.mrf.mxu0
        %v1849 = vpop.f32.mrf.mxu0
        %v1850 = vadd.f32 0.0, %v1849
        %v1851 = vpop.f32.mrf.mxu0
        %1852 = vmatprep.mubr.bf16.mxu0 %v1765
        %1853 = vmatmul.mubr.bf16.gmra.mxu0 %v1764
        %v1854 = vpop.f32.mrf.mxu0
        %v1855 = vadd.f32 0.0, %v1854
        %v1856 = vpop.f32.mrf.mxu0
        %v1857 = vpop.f32.mrf.mxu0
        %v1858 = vadd.f32 0.0, %v1857
        %v1859 = vpop.f32.mrf.mxu0
        %1860 = vmatprep.mubr.bf16.mxu0 %v1767
        %1861 = vmatmul.mubr.bf16.gmra.mxu0 %v1766
        %v1862 = vpop.f32.mrf.mxu0
        %v1863 = vadd.f32 0.0, %v1862
        %v1864 = vpop.f32.mrf.mxu0
        %v1865 = vpop.f32.mrf.mxu0
        %v1866 = vadd.f32 0.0, %v1865
        %v1867 = vpop.f32.mrf.mxu0
        %1868 = vmatprep.mubr.bf16.mxu0 %v1769
        %1869 = vmatmul.mubr.bf16.gmra.mxu0 %v1768
        %v1870 = vpop.f32.mrf.mxu0
        %v1871 = vadd.f32 0.0, %v1870
        %v1872 = vpop.f32.mrf.mxu0
        %v1873 = vpop.f32.mrf.mxu0
        %v1874 = vadd.f32 0.0, %v1873
        %v1875 = vpop.f32.mrf.mxu0
        %1876 = vmatprep.mubr.bf16.mxu0 %v1771
        %1877 = vmatmul.mubr.bf16.gmra.mxu0 %v1770
        %v1878 = vpop.f32.mrf.mxu0
        %v1879 = vadd.f32 0.0, %v1878
        %v1880 = vpop.f32.mrf.mxu0
        %v1881 = vpop.f32.mrf.mxu0
        %v1882 = vadd.f32 0.0, %v1881
        %v1883 = vpop.f32.mrf.mxu0
        %1884 = vdwg.mxu0
        %v1885 = vpack.c.bf16 %v1826, %v1823
        %v1886 = vpack.c.bf16 %v1834, %v1831
        %v1887 = vpack.c.bf16 %v1842, %v1839
        %v1888 = vpack.c.bf16 %v1850, %v1847
        %v1889 = vpack.c.bf16 %v1858, %v1855
        %v1890 = vpack.c.bf16 %v1866, %v1863
        %v1891 = vpack.c.bf16 %v1874, %v1871
        %v1892 = vpack.c.bf16 %v1882, %v1879
        %v1901 = vunpack.c.l.b16 %v1885
        %v1902 = vunpack.c.h.b16 %v1885
        %v1903 = vunpack.c.l.b16 %v1886
        %v1904 = vunpack.c.h.b16 %v1886
        %v1905 = vunpack.c.l.b16 %v1887
        %v1906 = vunpack.c.h.b16 %v1887
        %v1907 = vunpack.c.l.b16 %v1888
        %v1908 = vunpack.c.h.b16 %v1888
        %v1909 = vunpack.c.l.b16 %v1889
        %v1910 = vunpack.c.h.b16 %v1889
        %v1911 = vunpack.c.l.b16 %v1890
        %v1912 = vunpack.c.h.b16 %v1890
        %v1913 = vunpack.c.l.b16 %v1891
        %v1914 = vunpack.c.h.b16 %v1891
        %v1915 = vunpack.c.l.b16 %v1892
        %v1916 = vunpack.c.h.b16 %v1892
        %v1917 = vpack.c.b16 %v1901, %v1901
        %v1918 = vpack.c.b16 %v1902, %v1902
        %v1919 = vpack.c.b16 %v1903, %v1903
        %v1920 = vpack.c.b16 %v1904, %v1904
        %v1921 = vpack.c.b16 %v1905, %v1905
        %v1922 = vpack.c.b16 %v1906, %v1906
        %v1923 = vpack.c.b16 %v1907, %v1907
        %v1924 = vpack.c.b16 %v1908, %v1908
        %v1925 = vpack.c.b16 %v1909, %v1909
        %v1926 = vpack.c.b16 %v1910, %v1910
        %v1927 = vpack.c.b16 %v1911, %v1911
        %v1928 = vpack.c.b16 %v1912, %v1912
        %v1929 = vpack.c.b16 %v1913, %v1913
        %v1930 = vpack.c.b16 %v1914, %v1914
        %v1931 = vpack.c.b16 %v1915, %v1915
        %v1932 = vpack.c.b16 %v1916, %v1916
        %1949 = vst [vmem:[#allocation2 + $0x10] sm:$0xf] %v1917
        %1950 = vst [vmem:[#allocation2 + $0x34] sm:$0xf] %v1918
        %1951 = vst [vmem:[#allocation2 + $0x58] sm:$0xf] %v1919
        %1952 = vst [vmem:[#allocation2 + $0x7c] sm:$0xf] %v1920
        %1953 = vst [vmem:[#allocation2 + $0xa0] sm:$0xf] %v1921
        %1954 = vst [vmem:[#allocation2 + $0xc4] sm:$0xf] %v1922
        %1955 = vst [vmem:[#allocation2 + $0xe8] sm:$0xf] %v1923
        %1956 = vst [vmem:[#allocation2 + $0x10c] sm:$0xf] %v1924
        %1957 = vst [vmem:[#allocation2 + $0x130] sm:$0xf] %v1925
        %1958 = vst [vmem:[#allocation2 + $0x154] sm:$0xf] %v1926
        %1959 = vst [vmem:[#allocation2 + $0x178] sm:$0xf] %v1927
        %1960 = vst [vmem:[#allocation2 + $0x19c] sm:$0xf] %v1928
        %1961 = vst [vmem:[#allocation2 + $0x1c0] sm:$0xf] %v1929
        %1962 = vst [vmem:[#allocation2 + $0x1e4] sm:$0xf] %v1930
        %1963 = vst [vmem:[#allocation2 + $0x208] sm:$0xf] %v1931
        %1964 = vst [vmem:[#allocation2 + $0x22c] sm:$0xf] %v1932
        %s1965 = scalar_lea.vmem %s390, 640 [#allocation3]
        %v1966 = vld [vmem:[%s1965] sm:$0xff]
        %v1967 = vld [vmem:[%s1965 + $0x8] sm:$0xff]
        %v1968 = vld [vmem:[%s1965 + $0x10] sm:$0xff]
        %v1969 = vld [vmem:[%s1965 + $0x18] sm:$0xff]
        %v1970 = vld [vmem:[%s1965 + $0x20] sm:$0xff]
        %v1971 = vld [vmem:[%s1965 + $0x28] sm:$0xff]
        %v1972 = vld [vmem:[%s1965 + $0x30] sm:$0xff]
        %v1973 = vld [vmem:[%s1965 + $0x38] sm:$0xff]
        %v1974 = vld [vmem:[%s1965 + $0x40] sm:$0xff]
        %v1975 = vld [vmem:[%s1965 + $0x48] sm:$0xff]
        %v1976 = vld [vmem:[%s1965 + $0x50] sm:$0xff]
        %v1977 = vld [vmem:[%s1965 + $0x58] sm:$0xff]
        %v1978 = vld [vmem:[%s1965 + $0x60] sm:$0xff]
        %v1979 = vld [vmem:[%s1965 + $0x68] sm:$0xff]
        %v1980 = vld [vmem:[%s1965 + $0x70] sm:$0xff]
        %v1981 = vld [vmem:[%s1965 + $0x78] sm:$0xff]
        %v1998 = vunpack.c.l.b16 %v1966
        %v1999 = vunpack.c.h.b16 %v1966
        %v2000 = vunpack.c.l.b16 %v1967
        %v2001 = vunpack.c.h.b16 %v1967
        %v2002 = vunpack.c.l.b16 %v1968
        %v2003 = vunpack.c.h.b16 %v1968
        %v2004 = vunpack.c.l.b16 %v1969
        %v2005 = vunpack.c.h.b16 %v1969
        %v2006 = vunpack.c.l.b16 %v1970
        %v2007 = vunpack.c.h.b16 %v1970
        %v2008 = vunpack.c.l.b16 %v1971
        %v2009 = vunpack.c.h.b16 %v1971
        %v2010 = vunpack.c.l.b16 %v1972
        %v2011 = vunpack.c.h.b16 %v1972
        %v2012 = vunpack.c.l.b16 %v1973
        %v2013 = vunpack.c.h.b16 %v1973
        %v2014 = vunpack.c.l.b16 %v1974
        %v2015 = vunpack.c.h.b16 %v1974
        %v2016 = vunpack.c.l.b16 %v1975
        %v2017 = vunpack.c.h.b16 %v1975
        %v2018 = vunpack.c.l.b16 %v1976
        %v2019 = vunpack.c.h.b16 %v1976
        %v2020 = vunpack.c.l.b16 %v1977
        %v2021 = vunpack.c.h.b16 %v1977
        %v2022 = vunpack.c.l.b16 %v1978
        %v2023 = vunpack.c.h.b16 %v1978
        %v2024 = vunpack.c.l.b16 %v1979
        %v2025 = vunpack.c.h.b16 %v1979
        %v2026 = vunpack.c.l.b16 %v1980
        %v2027 = vunpack.c.h.b16 %v1980
        %v2028 = vunpack.c.l.b16 %v1981
        %v2029 = vunpack.c.h.b16 %v1981
        %v2030 = vpack.c.b16 %v2000, %v1998
        %v2031 = vpack.c.b16 %v2001, %v1999
        %v2032 = vpack.c.b16 %v2004, %v2002
        %v2033 = vpack.c.b16 %v2005, %v2003
        %v2034 = vpack.c.b16 %v2008, %v2006
        %v2035 = vpack.c.b16 %v2009, %v2007
        %v2036 = vpack.c.b16 %v2012, %v2010
        %v2037 = vpack.c.b16 %v2013, %v2011
        %v2038 = vpack.c.b16 %v2016, %v2014
        %v2039 = vpack.c.b16 %v2017, %v2015
        %v2040 = vpack.c.b16 %v2020, %v2018
        %v2041 = vpack.c.b16 %v2021, %v2019
        %v2042 = vpack.c.b16 %v2024, %v2022
        %v2043 = vpack.c.b16 %v2025, %v2023
        %v2044 = vpack.c.b16 %v2028, %v2026
        %v2045 = vpack.c.b16 %v2029, %v2027
        %2062 = vmatprep.subr.bf16.mxu0 0
        %2063 = vmatpush1.bf16.msra.mxu0 %v667
        %2064 = vmatprep.subr.bf16.mxu0 0
        %2065 = vmatpush1.bf16.msra.mxu0 %v666
        %2066 = vmatprep.subr.bf16.mxu0 0
        %2067 = vmatpush1.bf16.msra.mxu0 %v665
        %2068 = vmatprep.subr.bf16.mxu0 0
        %2069 = vmatpush1.bf16.msra.mxu0 %v664
        %2070 = vmatprep.subr.bf16.mxu0 0
        %2071 = vmatpush1.bf16.msra.mxu0 %v663
        %2072 = vmatprep.subr.bf16.mxu0 0
        %2073 = vmatpush1.bf16.msra.mxu0 %v662
        %2074 = vmatprep.subr.bf16.mxu0 0
        %2075 = vmatpush1.bf16.msra.mxu0 %v661
        %2076 = vmatprep.subr.bf16.mxu0 0
        %2077 = vmatpush1.bf16.msra.mxu0 %v660
        %2078 = vmatprep.subr.bf16.mxu0 0
        %2079 = vmatpush2.bf16.msra.mxu0 %v675
        %2080 = vmatprep.subr.bf16.mxu0 0
        %2081 = vmatpush2.bf16.msra.mxu0 %v674
        %2082 = vmatprep.subr.bf16.mxu0 0
        %2083 = vmatpush2.bf16.msra.mxu0 %v673
        %2084 = vmatprep.subr.bf16.mxu0 0
        %2085 = vmatpush2.bf16.msra.mxu0 %v672
        %2086 = vmatprep.subr.bf16.mxu0 0
        %2087 = vmatpush2.bf16.msra.mxu0 %v671
        %2088 = vmatprep.subr.bf16.mxu0 0
        %2089 = vmatpush2.bf16.msra.mxu0 %v670
        %2090 = vmatprep.subr.bf16.mxu0 0
        %2091 = vmatpush2.bf16.msra.mxu0 %v669
        %2092 = vmatprep.subr.bf16.mxu0 0
        %2093 = vmatpush2.bf16.msra.mxu0 %v668
        %2094 = vmatprep.mubr.bf16.mxu0 %v2031
        %2095 = vmatmul.mubr.bf16.gmra.mxu0 %v2030
        %v2096 = vpop.f32.mrf.mxu0
        %v2097 = vadd.f32 0.0, %v2096
        %v2098 = vpop.f32.mrf.mxu0
        %v2099 = vpop.f32.mrf.mxu0
        %v2100 = vadd.f32 0.0, %v2099
        %v2101 = vpop.f32.mrf.mxu0
        %2102 = vmatprep.mubr.bf16.mxu0 %v2033
        %2103 = vmatmul.mubr.bf16.gmra.mxu0 %v2032
        %v2104 = vpop.f32.mrf.mxu0
        %v2105 = vadd.f32 0.0, %v2104
        %v2106 = vpop.f32.mrf.mxu0
        %v2107 = vpop.f32.mrf.mxu0
        %v2108 = vadd.f32 0.0, %v2107
        %v2109 = vpop.f32.mrf.mxu0
        %2110 = vmatprep.mubr.bf16.mxu0 %v2035
        %2111 = vmatmul.mubr.bf16.gmra.mxu0 %v2034
        %v2112 = vpop.f32.mrf.mxu0
        %v2113 = vadd.f32 0.0, %v2112
        %v2114 = vpop.f32.mrf.mxu0
        %v2115 = vpop.f32.mrf.mxu0
        %v2116 = vadd.f32 0.0, %v2115
        %v2117 = vpop.f32.mrf.mxu0
        %2118 = vmatprep.mubr.bf16.mxu0 %v2037
        %2119 = vmatmul.mubr.bf16.gmra.mxu0 %v2036
        %v2120 = vpop.f32.mrf.mxu0
        %v2121 = vadd.f32 0.0, %v2120
        %v2122 = vpop.f32.mrf.mxu0
        %v2123 = vpop.f32.mrf.mxu0
        %v2124 = vadd.f32 0.0, %v2123
        %v2125 = vpop.f32.mrf.mxu0
        %2126 = vmatprep.mubr.bf16.mxu0 %v2039
        %2127 = vmatmul.mubr.bf16.gmra.mxu0 %v2038
        %v2128 = vpop.f32.mrf.mxu0
        %v2129 = vadd.f32 0.0, %v2128
        %v2130 = vpop.f32.mrf.mxu0
        %v2131 = vpop.f32.mrf.mxu0
        %v2132 = vadd.f32 0.0, %v2131
        %v2133 = vpop.f32.mrf.mxu0
        %2134 = vmatprep.mubr.bf16.mxu0 %v2041
        %2135 = vmatmul.mubr.bf16.gmra.mxu0 %v2040
        %v2136 = vpop.f32.mrf.mxu0
        %v2137 = vadd.f32 0.0, %v2136
        %v2138 = vpop.f32.mrf.mxu0
        %v2139 = vpop.f32.mrf.mxu0
        %v2140 = vadd.f32 0.0, %v2139
        %v2141 = vpop.f32.mrf.mxu0
        %2142 = vmatprep.mubr.bf16.mxu0 %v2043
        %2143 = vmatmul.mubr.bf16.gmra.mxu0 %v2042
        %v2144 = vpop.f32.mrf.mxu0
        %v2145 = vadd.f32 0.0, %v2144
        %v2146 = vpop.f32.mrf.mxu0
        %v2147 = vpop.f32.mrf.mxu0
        %v2148 = vadd.f32 0.0, %v2147
        %v2149 = vpop.f32.mrf.mxu0
        %2150 = vmatprep.mubr.bf16.mxu0 %v2045
        %2151 = vmatmul.mubr.bf16.gmra.mxu0 %v2044
        %v2152 = vpop.f32.mrf.mxu0
        %v2153 = vadd.f32 0.0, %v2152
        %v2154 = vpop.f32.mrf.mxu0
        %v2155 = vpop.f32.mrf.mxu0
        %v2156 = vadd.f32 0.0, %v2155
        %v2157 = vpop.f32.mrf.mxu0
        %2158 = vdwg.mxu0
        %v2159 = vpack.c.bf16 %v2100, %v2097
        %v2160 = vpack.c.bf16 %v2108, %v2105
        %v2161 = vpack.c.bf16 %v2116, %v2113
        %v2162 = vpack.c.bf16 %v2124, %v2121
        %v2163 = vpack.c.bf16 %v2132, %v2129
        %v2164 = vpack.c.bf16 %v2140, %v2137
        %v2165 = vpack.c.bf16 %v2148, %v2145
        %v2166 = vpack.c.bf16 %v2156, %v2153
        %v2175 = vunpack.c.l.b16 %v2159
        %v2176 = vunpack.c.h.b16 %v2159
        %v2177 = vunpack.c.l.b16 %v2160
        %v2178 = vunpack.c.h.b16 %v2160
        %v2179 = vunpack.c.l.b16 %v2161
        %v2180 = vunpack.c.h.b16 %v2161
        %v2181 = vunpack.c.l.b16 %v2162
        %v2182 = vunpack.c.h.b16 %v2162
        %v2183 = vunpack.c.l.b16 %v2163
        %v2184 = vunpack.c.h.b16 %v2163
        %v2185 = vunpack.c.l.b16 %v2164
        %v2186 = vunpack.c.h.b16 %v2164
        %v2187 = vunpack.c.l.b16 %v2165
        %v2188 = vunpack.c.h.b16 %v2165
        %v2189 = vunpack.c.l.b16 %v2166
        %v2190 = vunpack.c.h.b16 %v2166
        %v2191 = vpack.c.b16 %v2175, %v2175
        %v2192 = vpack.c.b16 %v2176, %v2176
        %v2193 = vpack.c.b16 %v2177, %v2177
        %v2194 = vpack.c.b16 %v2178, %v2178
        %v2195 = vpack.c.b16 %v2179, %v2179
        %v2196 = vpack.c.b16 %v2180, %v2180
        %v2197 = vpack.c.b16 %v2181, %v2181
        %v2198 = vpack.c.b16 %v2182, %v2182
        %v2199 = vpack.c.b16 %v2183, %v2183
        %v2200 = vpack.c.b16 %v2184, %v2184
        %v2201 = vpack.c.b16 %v2185, %v2185
        %v2202 = vpack.c.b16 %v2186, %v2186
        %v2203 = vpack.c.b16 %v2187, %v2187
        %v2204 = vpack.c.b16 %v2188, %v2188
        %v2205 = vpack.c.b16 %v2189, %v2189
        %v2206 = vpack.c.b16 %v2190, %v2190
        %2223 = vst [vmem:[#allocation2 + $0x14] sm:$0xf] %v2191
        %2224 = vst [vmem:[#allocation2 + $0x38] sm:$0xf] %v2192
        %2225 = vst [vmem:[#allocation2 + $0x5c] sm:$0xf] %v2193
        %2226 = vst [vmem:[#allocation2 + $0x80] sm:$0xf] %v2194
        %2227 = vst [vmem:[#allocation2 + $0xa4] sm:$0xf] %v2195
        %2228 = vst [vmem:[#allocation2 + $0xc8] sm:$0xf] %v2196
        %2229 = vst [vmem:[#allocation2 + $0xec] sm:$0xf] %v2197
        %2230 = vst [vmem:[#allocation2 + $0x110] sm:$0xf] %v2198
        %2231 = vst [vmem:[#allocation2 + $0x134] sm:$0xf] %v2199
        %2232 = vst [vmem:[#allocation2 + $0x158] sm:$0xf] %v2200
        %2233 = vst [vmem:[#allocation2 + $0x17c] sm:$0xf] %v2201
        %2234 = vst [vmem:[#allocation2 + $0x1a0] sm:$0xf] %v2202
        %2235 = vst [vmem:[#allocation2 + $0x1c4] sm:$0xf] %v2203
        %2236 = vst [vmem:[#allocation2 + $0x1e8] sm:$0xf] %v2204
        %2237 = vst [vmem:[#allocation2 + $0x20c] sm:$0xf] %v2205
        %2238 = vst [vmem:[#allocation2 + $0x230] sm:$0xf] %v2206
        %s2239 = scalar_lea.vmem %s390, 768 [#allocation3]
        %v2240 = vld [vmem:[%s2239] sm:$0xff]
        %v2241 = vld [vmem:[%s2239 + $0x8] sm:$0xff]
        %v2242 = vld [vmem:[%s2239 + $0x10] sm:$0xff]
        %v2243 = vld [vmem:[%s2239 + $0x18] sm:$0xff]
        %v2244 = vld [vmem:[%s2239 + $0x20] sm:$0xff]
        %v2245 = vld [vmem:[%s2239 + $0x28] sm:$0xff]
        %v2246 = vld [vmem:[%s2239 + $0x30] sm:$0xff]
        %v2247 = vld [vmem:[%s2239 + $0x38] sm:$0xff]
        %v2248 = vld [vmem:[%s2239 + $0x40] sm:$0xff]
        %v2249 = vld [vmem:[%s2239 + $0x48] sm:$0xff]
        %v2250 = vld [vmem:[%s2239 + $0x50] sm:$0xff]
        %v2251 = vld [vmem:[%s2239 + $0x58] sm:$0xff]
        %v2252 = vld [vmem:[%s2239 + $0x60] sm:$0xff]
        %v2253 = vld [vmem:[%s2239 + $0x68] sm:$0xff]
        %v2254 = vld [vmem:[%s2239 + $0x70] sm:$0xff]
        %v2255 = vld [vmem:[%s2239 + $0x78] sm:$0xff]
        %v2272 = vunpack.c.l.b16 %v2240
        %v2273 = vunpack.c.h.b16 %v2240
        %v2274 = vunpack.c.l.b16 %v2241
        %v2275 = vunpack.c.h.b16 %v2241
        %v2276 = vunpack.c.l.b16 %v2242
        %v2277 = vunpack.c.h.b16 %v2242
        %v2278 = vunpack.c.l.b16 %v2243
        %v2279 = vunpack.c.h.b16 %v2243
        %v2280 = vunpack.c.l.b16 %v2244
        %v2281 = vunpack.c.h.b16 %v2244
        %v2282 = vunpack.c.l.b16 %v2245
        %v2283 = vunpack.c.h.b16 %v2245
        %v2284 = vunpack.c.l.b16 %v2246
        %v2285 = vunpack.c.h.b16 %v2246
        %v2286 = vunpack.c.l.b16 %v2247
        %v2287 = vunpack.c.h.b16 %v2247
        %v2288 = vunpack.c.l.b16 %v2248
        %v2289 = vunpack.c.h.b16 %v2248
        %v2290 = vunpack.c.l.b16 %v2249
        %v2291 = vunpack.c.h.b16 %v2249
        %v2292 = vunpack.c.l.b16 %v2250
        %v2293 = vunpack.c.h.b16 %v2250
        %v2294 = vunpack.c.l.b16 %v2251
        %v2295 = vunpack.c.h.b16 %v2251
        %v2296 = vunpack.c.l.b16 %v2252
        %v2297 = vunpack.c.h.b16 %v2252
        %v2298 = vunpack.c.l.b16 %v2253
        %v2299 = vunpack.c.h.b16 %v2253
        %v2300 = vunpack.c.l.b16 %v2254
        %v2301 = vunpack.c.h.b16 %v2254
        %v2302 = vunpack.c.l.b16 %v2255
        %v2303 = vunpack.c.h.b16 %v2255
        %v2304 = vpack.c.b16 %v2274, %v2272
        %v2305 = vpack.c.b16 %v2275, %v2273
        %v2306 = vpack.c.b16 %v2278, %v2276
        %v2307 = vpack.c.b16 %v2279, %v2277
        %v2308 = vpack.c.b16 %v2282, %v2280
        %v2309 = vpack.c.b16 %v2283, %v2281
        %v2310 = vpack.c.b16 %v2286, %v2284
        %v2311 = vpack.c.b16 %v2287, %v2285
        %v2312 = vpack.c.b16 %v2290, %v2288
        %v2313 = vpack.c.b16 %v2291, %v2289
        %v2314 = vpack.c.b16 %v2294, %v2292
        %v2315 = vpack.c.b16 %v2295, %v2293
        %v2316 = vpack.c.b16 %v2298, %v2296
        %v2317 = vpack.c.b16 %v2299, %v2297
        %v2318 = vpack.c.b16 %v2302, %v2300
        %v2319 = vpack.c.b16 %v2303, %v2301
        %2336 = vmatprep.subr.bf16.mxu0 0
        %2337 = vmatpush1.bf16.msra.mxu0 %v667
        %2338 = vmatprep.subr.bf16.mxu0 0
        %2339 = vmatpush1.bf16.msra.mxu0 %v666
        %2340 = vmatprep.subr.bf16.mxu0 0
        %2341 = vmatpush1.bf16.msra.mxu0 %v665
        %2342 = vmatprep.subr.bf16.mxu0 0
        %2343 = vmatpush1.bf16.msra.mxu0 %v664
        %2344 = vmatprep.subr.bf16.mxu0 0
        %2345 = vmatpush1.bf16.msra.mxu0 %v663
        %2346 = vmatprep.subr.bf16.mxu0 0
        %2347 = vmatpush1.bf16.msra.mxu0 %v662
        %2348 = vmatprep.subr.bf16.mxu0 0
        %2349 = vmatpush1.bf16.msra.mxu0 %v661
        %2350 = vmatprep.subr.bf16.mxu0 0
        %2351 = vmatpush1.bf16.msra.mxu0 %v660
        %2352 = vmatprep.subr.bf16.mxu0 0
        %2353 = vmatpush2.bf16.msra.mxu0 %v675
        %2354 = vmatprep.subr.bf16.mxu0 0
        %2355 = vmatpush2.bf16.msra.mxu0 %v674
        %2356 = vmatprep.subr.bf16.mxu0 0
        %2357 = vmatpush2.bf16.msra.mxu0 %v673
        %2358 = vmatprep.subr.bf16.mxu0 0
        %2359 = vmatpush2.bf16.msra.mxu0 %v672
        %2360 = vmatprep.subr.bf16.mxu0 0
        %2361 = vmatpush2.bf16.msra.mxu0 %v671
        %2362 = vmatprep.subr.bf16.mxu0 0
        %2363 = vmatpush2.bf16.msra.mxu0 %v670
        %2364 = vmatprep.subr.bf16.mxu0 0
        %2365 = vmatpush2.bf16.msra.mxu0 %v669
        %2366 = vmatprep.subr.bf16.mxu0 0
        %2367 = vmatpush2.bf16.msra.mxu0 %v668
        %2368 = vmatprep.mubr.bf16.mxu0 %v2305
        %2369 = vmatmul.mubr.bf16.gmra.mxu0 %v2304
        %v2370 = vpop.f32.mrf.mxu0
        %v2371 = vadd.f32 0.0, %v2370
        %v2372 = vpop.f32.mrf.mxu0
        %v2373 = vpop.f32.mrf.mxu0
        %v2374 = vadd.f32 0.0, %v2373
        %v2375 = vpop.f32.mrf.mxu0
        %2376 = vmatprep.mubr.bf16.mxu0 %v2307
        %2377 = vmatmul.mubr.bf16.gmra.mxu0 %v2306
        %v2378 = vpop.f32.mrf.mxu0
        %v2379 = vadd.f32 0.0, %v2378
        %v2380 = vpop.f32.mrf.mxu0
        %v2381 = vpop.f32.mrf.mxu0
        %v2382 = vadd.f32 0.0, %v2381
        %v2383 = vpop.f32.mrf.mxu0
        %2384 = vmatprep.mubr.bf16.mxu0 %v2309
        %2385 = vmatmul.mubr.bf16.gmra.mxu0 %v2308
        %v2386 = vpop.f32.mrf.mxu0
        %v2387 = vadd.f32 0.0, %v2386
        %v2388 = vpop.f32.mrf.mxu0
        %v2389 = vpop.f32.mrf.mxu0
        %v2390 = vadd.f32 0.0, %v2389
        %v2391 = vpop.f32.mrf.mxu0
        %2392 = vmatprep.mubr.bf16.mxu0 %v2311
        %2393 = vmatmul.mubr.bf16.gmra.mxu0 %v2310
        %v2394 = vpop.f32.mrf.mxu0
        %v2395 = vadd.f32 0.0, %v2394
        %v2396 = vpop.f32.mrf.mxu0
        %v2397 = vpop.f32.mrf.mxu0
        %v2398 = vadd.f32 0.0, %v2397
        %v2399 = vpop.f32.mrf.mxu0
        %2400 = vmatprep.mubr.bf16.mxu0 %v2313
        %2401 = vmatmul.mubr.bf16.gmra.mxu0 %v2312
        %v2402 = vpop.f32.mrf.mxu0
        %v2403 = vadd.f32 0.0, %v2402
        %v2404 = vpop.f32.mrf.mxu0
        %v2405 = vpop.f32.mrf.mxu0
        %v2406 = vadd.f32 0.0, %v2405
        %v2407 = vpop.f32.mrf.mxu0
        %2408 = vmatprep.mubr.bf16.mxu0 %v2315
        %2409 = vmatmul.mubr.bf16.gmra.mxu0 %v2314
        %v2410 = vpop.f32.mrf.mxu0
        %v2411 = vadd.f32 0.0, %v2410
        %v2412 = vpop.f32.mrf.mxu0
        %v2413 = vpop.f32.mrf.mxu0
        %v2414 = vadd.f32 0.0, %v2413
        %v2415 = vpop.f32.mrf.mxu0
        %2416 = vmatprep.mubr.bf16.mxu0 %v2317
        %2417 = vmatmul.mubr.bf16.gmra.mxu0 %v2316
        %v2418 = vpop.f32.mrf.mxu0
        %v2419 = vadd.f32 0.0, %v2418
        %v2420 = vpop.f32.mrf.mxu0
        %v2421 = vpop.f32.mrf.mxu0
        %v2422 = vadd.f32 0.0, %v2421
        %v2423 = vpop.f32.mrf.mxu0
        %2424 = vmatprep.mubr.bf16.mxu0 %v2319
        %2425 = vmatmul.mubr.bf16.gmra.mxu0 %v2318
        %v2426 = vpop.f32.mrf.mxu0
        %v2427 = vadd.f32 0.0, %v2426
        %v2428 = vpop.f32.mrf.mxu0
        %v2429 = vpop.f32.mrf.mxu0
        %v2430 = vadd.f32 0.0, %v2429
        %v2431 = vpop.f32.mrf.mxu0
        %2432 = vdwg.mxu0
        %v2433 = vpack.c.bf16 %v2374, %v2371
        %v2434 = vpack.c.bf16 %v2382, %v2379
        %v2435 = vpack.c.bf16 %v2390, %v2387
        %v2436 = vpack.c.bf16 %v2398, %v2395
        %v2437 = vpack.c.bf16 %v2406, %v2403
        %v2438 = vpack.c.bf16 %v2414, %v2411
        %v2439 = vpack.c.bf16 %v2422, %v2419
        %v2440 = vpack.c.bf16 %v2430, %v2427
        %v2449 = vunpack.c.l.b16 %v2433
        %v2450 = vunpack.c.h.b16 %v2433
        %v2451 = vunpack.c.l.b16 %v2434
        %v2452 = vunpack.c.h.b16 %v2434
        %v2453 = vunpack.c.l.b16 %v2435
        %v2454 = vunpack.c.h.b16 %v2435
        %v2455 = vunpack.c.l.b16 %v2436
        %v2456 = vunpack.c.h.b16 %v2436
        %v2457 = vunpack.c.l.b16 %v2437
        %v2458 = vunpack.c.h.b16 %v2437
        %v2459 = vunpack.c.l.b16 %v2438
        %v2460 = vunpack.c.h.b16 %v2438
        %v2461 = vunpack.c.l.b16 %v2439
        %v2462 = vunpack.c.h.b16 %v2439
        %v2463 = vunpack.c.l.b16 %v2440
        %v2464 = vunpack.c.h.b16 %v2440
        %v2465 = vpack.c.b16 %v2449, %v2449
        %v2466 = vpack.c.b16 %v2450, %v2450
        %v2467 = vpack.c.b16 %v2451, %v2451
        %v2468 = vpack.c.b16 %v2452, %v2452
        %v2469 = vpack.c.b16 %v2453, %v2453
        %v2470 = vpack.c.b16 %v2454, %v2454
        %v2471 = vpack.c.b16 %v2455, %v2455
        %v2472 = vpack.c.b16 %v2456, %v2456
        %v2473 = vpack.c.b16 %v2457, %v2457
        %v2474 = vpack.c.b16 %v2458, %v2458
        %v2475 = vpack.c.b16 %v2459, %v2459
        %v2476 = vpack.c.b16 %v2460, %v2460
        %v2477 = vpack.c.b16 %v2461, %v2461
        %v2478 = vpack.c.b16 %v2462, %v2462
        %v2479 = vpack.c.b16 %v2463, %v2463
        %v2480 = vpack.c.b16 %v2464, %v2464
        %2497 = vst [vmem:[#allocation2 + $0x18] sm:$0xf] %v2465
        %2498 = vst [vmem:[#allocation2 + $0x3c] sm:$0xf] %v2466
        %2499 = vst [vmem:[#allocation2 + $0x60] sm:$0xf] %v2467
        %2500 = vst [vmem:[#allocation2 + $0x84] sm:$0xf] %v2468
        %2501 = vst [vmem:[#allocation2 + $0xa8] sm:$0xf] %v2469
        %2502 = vst [vmem:[#allocation2 + $0xcc] sm:$0xf] %v2470
        %2503 = vst [vmem:[#allocation2 + $0xf0] sm:$0xf] %v2471
        %2504 = vst [vmem:[#allocation2 + $0x114] sm:$0xf] %v2472
        %2505 = vst [vmem:[#allocation2 + $0x138] sm:$0xf] %v2473
        %2506 = vst [vmem:[#allocation2 + $0x15c] sm:$0xf] %v2474
        %2507 = vst [vmem:[#allocation2 + $0x180] sm:$0xf] %v2475
        %2508 = vst [vmem:[#allocation2 + $0x1a4] sm:$0xf] %v2476
        %2509 = vst [vmem:[#allocation2 + $0x1c8] sm:$0xf] %v2477
        %2510 = vst [vmem:[#allocation2 + $0x1ec] sm:$0xf] %v2478
        %2511 = vst [vmem:[#allocation2 + $0x210] sm:$0xf] %v2479
        %2512 = vst [vmem:[#allocation2 + $0x234] sm:$0xf] %v2480
        %s2513 = scalar_lea.vmem %s390, 896 [#allocation3]
        %v2514 = vld [vmem:[%s2513] sm:$0xff]
        %v2515 = vld [vmem:[%s2513 + $0x8] sm:$0xff]
        %v2516 = vld [vmem:[%s2513 + $0x10] sm:$0xff]
        %v2517 = vld [vmem:[%s2513 + $0x18] sm:$0xff]
        %v2518 = vld [vmem:[%s2513 + $0x20] sm:$0xff]
        %v2519 = vld [vmem:[%s2513 + $0x28] sm:$0xff]
        %v2520 = vld [vmem:[%s2513 + $0x30] sm:$0xff]
        %v2521 = vld [vmem:[%s2513 + $0x38] sm:$0xff]
        %v2522 = vld [vmem:[%s2513 + $0x40] sm:$0xff]
        %v2523 = vld [vmem:[%s2513 + $0x48] sm:$0xff]
        %v2524 = vld [vmem:[%s2513 + $0x50] sm:$0xff]
        %v2525 = vld [vmem:[%s2513 + $0x58] sm:$0xff]
        %v2526 = vld [vmem:[%s2513 + $0x60] sm:$0xff]
        %v2527 = vld [vmem:[%s2513 + $0x68] sm:$0xff]
        %v2528 = vld [vmem:[%s2513 + $0x70] sm:$0xff]
        %v2529 = vld [vmem:[%s2513 + $0x78] sm:$0xff]
        %v2546 = vunpack.c.l.b16 %v2514
        %v2547 = vunpack.c.h.b16 %v2514
        %v2548 = vunpack.c.l.b16 %v2515
        %v2549 = vunpack.c.h.b16 %v2515
        %v2550 = vunpack.c.l.b16 %v2516
        %v2551 = vunpack.c.h.b16 %v2516
        %v2552 = vunpack.c.l.b16 %v2517
        %v2553 = vunpack.c.h.b16 %v2517
        %v2554 = vunpack.c.l.b16 %v2518
        %v2555 = vunpack.c.h.b16 %v2518
        %v2556 = vunpack.c.l.b16 %v2519
        %v2557 = vunpack.c.h.b16 %v2519
        %v2558 = vunpack.c.l.b16 %v2520
        %v2559 = vunpack.c.h.b16 %v2520
        %v2560 = vunpack.c.l.b16 %v2521
        %v2561 = vunpack.c.h.b16 %v2521
        %v2562 = vunpack.c.l.b16 %v2522
        %v2563 = vunpack.c.h.b16 %v2522
        %v2564 = vunpack.c.l.b16 %v2523
        %v2565 = vunpack.c.h.b16 %v2523
        %v2566 = vunpack.c.l.b16 %v2524
        %v2567 = vunpack.c.h.b16 %v2524
        %v2568 = vunpack.c.l.b16 %v2525
        %v2569 = vunpack.c.h.b16 %v2525
        %v2570 = vunpack.c.l.b16 %v2526
        %v2571 = vunpack.c.h.b16 %v2526
        %v2572 = vunpack.c.l.b16 %v2527
        %v2573 = vunpack.c.h.b16 %v2527
        %v2574 = vunpack.c.l.b16 %v2528
        %v2575 = vunpack.c.h.b16 %v2528
        %v2576 = vunpack.c.l.b16 %v2529
        %v2577 = vunpack.c.h.b16 %v2529
        %v2578 = vpack.c.b16 %v2548, %v2546
        %v2579 = vpack.c.b16 %v2549, %v2547
        %v2580 = vpack.c.b16 %v2552, %v2550
        %v2581 = vpack.c.b16 %v2553, %v2551
        %v2582 = vpack.c.b16 %v2556, %v2554
        %v2583 = vpack.c.b16 %v2557, %v2555
        %v2584 = vpack.c.b16 %v2560, %v2558
        %v2585 = vpack.c.b16 %v2561, %v2559
        %v2586 = vpack.c.b16 %v2564, %v2562
        %v2587 = vpack.c.b16 %v2565, %v2563
        %v2588 = vpack.c.b16 %v2568, %v2566
        %v2589 = vpack.c.b16 %v2569, %v2567
        %v2590 = vpack.c.b16 %v2572, %v2570
        %v2591 = vpack.c.b16 %v2573, %v2571
        %v2592 = vpack.c.b16 %v2576, %v2574
        %v2593 = vpack.c.b16 %v2577, %v2575
        %2610 = vmatprep.subr.bf16.mxu0 0
        %2611 = vmatpush1.bf16.msra.mxu0 %v667
        %2612 = vmatprep.subr.bf16.mxu0 0
        %2613 = vmatpush1.bf16.msra.mxu0 %v666
        %2614 = vmatprep.subr.bf16.mxu0 0
        %2615 = vmatpush1.bf16.msra.mxu0 %v665
        %2616 = vmatprep.subr.bf16.mxu0 0
        %2617 = vmatpush1.bf16.msra.mxu0 %v664
        %2618 = vmatprep.subr.bf16.mxu0 0
        %2619 = vmatpush1.bf16.msra.mxu0 %v663
        %2620 = vmatprep.subr.bf16.mxu0 0
        %2621 = vmatpush1.bf16.msra.mxu0 %v662
        %2622 = vmatprep.subr.bf16.mxu0 0
        %2623 = vmatpush1.bf16.msra.mxu0 %v661
        %2624 = vmatprep.subr.bf16.mxu0 0
        %2625 = vmatpush1.bf16.msra.mxu0 %v660
        %2626 = vmatprep.subr.bf16.mxu0 0
        %2627 = vmatpush2.bf16.msra.mxu0 %v675
        %2628 = vmatprep.subr.bf16.mxu0 0
        %2629 = vmatpush2.bf16.msra.mxu0 %v674
        %2630 = vmatprep.subr.bf16.mxu0 0
        %2631 = vmatpush2.bf16.msra.mxu0 %v673
        %2632 = vmatprep.subr.bf16.mxu0 0
        %2633 = vmatpush2.bf16.msra.mxu0 %v672
        %2634 = vmatprep.subr.bf16.mxu0 0
        %2635 = vmatpush2.bf16.msra.mxu0 %v671
        %2636 = vmatprep.subr.bf16.mxu0 0
        %2637 = vmatpush2.bf16.msra.mxu0 %v670
        %2638 = vmatprep.subr.bf16.mxu0 0
        %2639 = vmatpush2.bf16.msra.mxu0 %v669
        %2640 = vmatprep.subr.bf16.mxu0 0
        %2641 = vmatpush2.bf16.msra.mxu0 %v668
        %2642 = vmatprep.mubr.bf16.mxu0 %v2579
        %2643 = vmatmul.mubr.bf16.gmra.mxu0 %v2578
        %v2644 = vpop.f32.mrf.mxu0
        %v2645 = vadd.f32 0.0, %v2644
        %v2646 = vpop.f32.mrf.mxu0
        %v2647 = vpop.f32.mrf.mxu0
        %v2648 = vadd.f32 0.0, %v2647
        %v2649 = vpop.f32.mrf.mxu0
        %2650 = vmatprep.mubr.bf16.mxu0 %v2581
        %2651 = vmatmul.mubr.bf16.gmra.mxu0 %v2580
        %v2652 = vpop.f32.mrf.mxu0
        %v2653 = vadd.f32 0.0, %v2652
        %v2654 = vpop.f32.mrf.mxu0
        %v2655 = vpop.f32.mrf.mxu0
        %v2656 = vadd.f32 0.0, %v2655
        %v2657 = vpop.f32.mrf.mxu0
        %2658 = vmatprep.mubr.bf16.mxu0 %v2583
        %2659 = vmatmul.mubr.bf16.gmra.mxu0 %v2582
        %v2660 = vpop.f32.mrf.mxu0
        %v2661 = vadd.f32 0.0, %v2660
        %v2662 = vpop.f32.mrf.mxu0
        %v2663 = vpop.f32.mrf.mxu0
        %v2664 = vadd.f32 0.0, %v2663
        %v2665 = vpop.f32.mrf.mxu0
        %2666 = vmatprep.mubr.bf16.mxu0 %v2585
        %2667 = vmatmul.mubr.bf16.gmra.mxu0 %v2584
        %v2668 = vpop.f32.mrf.mxu0
        %v2669 = vadd.f32 0.0, %v2668
        %v2670 = vpop.f32.mrf.mxu0
        %v2671 = vpop.f32.mrf.mxu0
        %v2672 = vadd.f32 0.0, %v2671
        %v2673 = vpop.f32.mrf.mxu0
        %2674 = vmatprep.mubr.bf16.mxu0 %v2587
        %2675 = vmatmul.mubr.bf16.gmra.mxu0 %v2586
        %v2676 = vpop.f32.mrf.mxu0
        %v2677 = vadd.f32 0.0, %v2676
        %v2678 = vpop.f32.mrf.mxu0
        %v2679 = vpop.f32.mrf.mxu0
        %v2680 = vadd.f32 0.0, %v2679
        %v2681 = vpop.f32.mrf.mxu0
        %2682 = vmatprep.mubr.bf16.mxu0 %v2589
        %2683 = vmatmul.mubr.bf16.gmra.mxu0 %v2588
        %v2684 = vpop.f32.mrf.mxu0
        %v2685 = vadd.f32 0.0, %v2684
        %v2686 = vpop.f32.mrf.mxu0
        %v2687 = vpop.f32.mrf.mxu0
        %v2688 = vadd.f32 0.0, %v2687
        %v2689 = vpop.f32.mrf.mxu0
        %2690 = vmatprep.mubr.bf16.mxu0 %v2591
        %2691 = vmatmul.mubr.bf16.gmra.mxu0 %v2590
        %v2692 = vpop.f32.mrf.mxu0
        %v2693 = vadd.f32 0.0, %v2692
        %v2694 = vpop.f32.mrf.mxu0
        %v2695 = vpop.f32.mrf.mxu0
        %v2696 = vadd.f32 0.0, %v2695
        %v2697 = vpop.f32.mrf.mxu0
        %2698 = vmatprep.mubr.bf16.mxu0 %v2593
        %2699 = vmatmul.mubr.bf16.gmra.mxu0 %v2592
        %v2700 = vpop.f32.mrf.mxu0
        %v2701 = vadd.f32 0.0, %v2700
        %v2702 = vpop.f32.mrf.mxu0
        %v2703 = vpop.f32.mrf.mxu0
        %v2704 = vadd.f32 0.0, %v2703
        %v2705 = vpop.f32.mrf.mxu0
        %2706 = vdwg.mxu0
        %v2707 = vpack.c.bf16 %v2648, %v2645
        %v2708 = vpack.c.bf16 %v2656, %v2653
        %v2709 = vpack.c.bf16 %v2664, %v2661
        %v2710 = vpack.c.bf16 %v2672, %v2669
        %v2711 = vpack.c.bf16 %v2680, %v2677
        %v2712 = vpack.c.bf16 %v2688, %v2685
        %v2713 = vpack.c.bf16 %v2696, %v2693
        %v2714 = vpack.c.bf16 %v2704, %v2701
        %v2723 = vunpack.c.l.b16 %v2707
        %v2724 = vunpack.c.h.b16 %v2707
        %v2725 = vunpack.c.l.b16 %v2708
        %v2726 = vunpack.c.h.b16 %v2708
        %v2727 = vunpack.c.l.b16 %v2709
        %v2728 = vunpack.c.h.b16 %v2709
        %v2729 = vunpack.c.l.b16 %v2710
        %v2730 = vunpack.c.h.b16 %v2710
        %v2731 = vunpack.c.l.b16 %v2711
        %v2732 = vunpack.c.h.b16 %v2711
        %v2733 = vunpack.c.l.b16 %v2712
        %v2734 = vunpack.c.h.b16 %v2712
        %v2735 = vunpack.c.l.b16 %v2713
        %v2736 = vunpack.c.h.b16 %v2713
        %v2737 = vunpack.c.l.b16 %v2714
        %v2738 = vunpack.c.h.b16 %v2714
        %v2739 = vpack.c.b16 %v2723, %v2723
        %v2740 = vpack.c.b16 %v2724, %v2724
        %v2741 = vpack.c.b16 %v2725, %v2725
        %v2742 = vpack.c.b16 %v2726, %v2726
        %v2743 = vpack.c.b16 %v2727, %v2727
        %v2744 = vpack.c.b16 %v2728, %v2728
        %v2745 = vpack.c.b16 %v2729, %v2729
        %v2746 = vpack.c.b16 %v2730, %v2730
        %v2747 = vpack.c.b16 %v2731, %v2731
        %v2748 = vpack.c.b16 %v2732, %v2732
        %v2749 = vpack.c.b16 %v2733, %v2733
        %v2750 = vpack.c.b16 %v2734, %v2734
        %v2751 = vpack.c.b16 %v2735, %v2735
        %v2752 = vpack.c.b16 %v2736, %v2736
        %v2753 = vpack.c.b16 %v2737, %v2737
        %v2754 = vpack.c.b16 %v2738, %v2738
        %2771 = vst [vmem:[#allocation2 + $0x1c] sm:$0xf] %v2739
        %2772 = vst [vmem:[#allocation2 + $0x40] sm:$0xf] %v2740
        %2773 = vst [vmem:[#allocation2 + $0x64] sm:$0xf] %v2741
        %2774 = vst [vmem:[#allocation2 + $0x88] sm:$0xf] %v2742
        %2775 = vst [vmem:[#allocation2 + $0xac] sm:$0xf] %v2743
        %2776 = vst [vmem:[#allocation2 + $0xd0] sm:$0xf] %v2744
        %2777 = vst [vmem:[#allocation2 + $0xf4] sm:$0xf] %v2745
        %2778 = vst [vmem:[#allocation2 + $0x118] sm:$0xf] %v2746
        %2779 = vst [vmem:[#allocation2 + $0x13c] sm:$0xf] %v2747
        %2780 = vst [vmem:[#allocation2 + $0x160] sm:$0xf] %v2748
        %2781 = vst [vmem:[#allocation2 + $0x184] sm:$0xf] %v2749
        %2782 = vst [vmem:[#allocation2 + $0x1a8] sm:$0xf] %v2750
        %2783 = vst [vmem:[#allocation2 + $0x1cc] sm:$0xf] %v2751
        %2784 = vst [vmem:[#allocation2 + $0x1f0] sm:$0xf] %v2752
        %2785 = vst [vmem:[#allocation2 + $0x214] sm:$0xf] %v2753
        %2786 = vst [vmem:[#allocation2 + $0x238] sm:$0xf] %v2754
        %s2787 = scalar_lea.vmem %s390, 1024 [#allocation3]
        %v2788 = vld [vmem:[%s2787] sm:$0xff]
        %v2789 = vld [vmem:[%s2787 + $0x8] sm:$0xff]
        %v2790 = vld [vmem:[%s2787 + $0x10] sm:$0xff]
        %v2791 = vld [vmem:[%s2787 + $0x18] sm:$0xff]
        %v2792 = vld [vmem:[%s2787 + $0x20] sm:$0xff]
        %v2793 = vld [vmem:[%s2787 + $0x28] sm:$0xff]
        %v2794 = vld [vmem:[%s2787 + $0x30] sm:$0xff]
        %v2795 = vld [vmem:[%s2787 + $0x38] sm:$0xff]
        %v2796 = vld [vmem:[%s2787 + $0x40] sm:$0xff]
        %v2797 = vld [vmem:[%s2787 + $0x48] sm:$0xff]
        %v2798 = vld [vmem:[%s2787 + $0x50] sm:$0xff]
        %v2799 = vld [vmem:[%s2787 + $0x58] sm:$0xff]
        %v2800 = vld [vmem:[%s2787 + $0x60] sm:$0xff]
        %v2801 = vld [vmem:[%s2787 + $0x68] sm:$0xff]
        %v2802 = vld [vmem:[%s2787 + $0x70] sm:$0xff]
        %v2803 = vld [vmem:[%s2787 + $0x78] sm:$0xff]
        %v2820 = vunpack.c.l.b16 %v2788
        %v2821 = vunpack.c.h.b16 %v2788
        %v2822 = vunpack.c.l.b16 %v2789
        %v2823 = vunpack.c.h.b16 %v2789
        %v2824 = vunpack.c.l.b16 %v2790
        %v2825 = vunpack.c.h.b16 %v2790
        %v2826 = vunpack.c.l.b16 %v2791
        %v2827 = vunpack.c.h.b16 %v2791
        %v2828 = vunpack.c.l.b16 %v2792
        %v2829 = vunpack.c.h.b16 %v2792
        %v2830 = vunpack.c.l.b16 %v2793
        %v2831 = vunpack.c.h.b16 %v2793
        %v2832 = vunpack.c.l.b16 %v2794
        %v2833 = vunpack.c.h.b16 %v2794
        %v2834 = vunpack.c.l.b16 %v2795
        %v2835 = vunpack.c.h.b16 %v2795
        %v2836 = vunpack.c.l.b16 %v2796
        %v2837 = vunpack.c.h.b16 %v2796
        %v2838 = vunpack.c.l.b16 %v2797
        %v2839 = vunpack.c.h.b16 %v2797
        %v2840 = vunpack.c.l.b16 %v2798
        %v2841 = vunpack.c.h.b16 %v2798
        %v2842 = vunpack.c.l.b16 %v2799
        %v2843 = vunpack.c.h.b16 %v2799
        %v2844 = vunpack.c.l.b16 %v2800
        %v2845 = vunpack.c.h.b16 %v2800
        %v2846 = vunpack.c.l.b16 %v2801
        %v2847 = vunpack.c.h.b16 %v2801
        %v2848 = vunpack.c.l.b16 %v2802
        %v2849 = vunpack.c.h.b16 %v2802
        %v2850 = vunpack.c.l.b16 %v2803
        %v2851 = vunpack.c.h.b16 %v2803
        %v2852 = vpack.c.b16 %v2822, %v2820
        %v2853 = vpack.c.b16 %v2823, %v2821
        %v2854 = vpack.c.b16 %v2826, %v2824
        %v2855 = vpack.c.b16 %v2827, %v2825
        %v2856 = vpack.c.b16 %v2830, %v2828
        %v2857 = vpack.c.b16 %v2831, %v2829
        %v2858 = vpack.c.b16 %v2834, %v2832
        %v2859 = vpack.c.b16 %v2835, %v2833
        %v2860 = vpack.c.b16 %v2838, %v2836
        %v2861 = vpack.c.b16 %v2839, %v2837
        %v2862 = vpack.c.b16 %v2842, %v2840
        %v2863 = vpack.c.b16 %v2843, %v2841
        %v2864 = vpack.c.b16 %v2846, %v2844
        %v2865 = vpack.c.b16 %v2847, %v2845
        %v2866 = vpack.c.b16 %v2850, %v2848
        %v2867 = vpack.c.b16 %v2851, %v2849
        %2884 = vmatprep.subr.bf16.mxu0 0
        %2885 = vmatpush1.bf16.msra.mxu0 %v667
        %2886 = vmatprep.subr.bf16.mxu0 0
        %2887 = vmatpush1.bf16.msra.mxu0 %v666
        %2888 = vmatprep.subr.bf16.mxu0 0
        %2889 = vmatpush1.bf16.msra.mxu0 %v665
        %2890 = vmatprep.subr.bf16.mxu0 0
        %2891 = vmatpush1.bf16.msra.mxu0 %v664
        %2892 = vmatprep.subr.bf16.mxu0 0
        %2893 = vmatpush1.bf16.msra.mxu0 %v663
        %2894 = vmatprep.subr.bf16.mxu0 0
        %2895 = vmatpush1.bf16.msra.mxu0 %v662
        %2896 = vmatprep.subr.bf16.mxu0 0
        %2897 = vmatpush1.bf16.msra.mxu0 %v661
        %2898 = vmatprep.subr.bf16.mxu0 0
        %2899 = vmatpush1.bf16.msra.mxu0 %v660
        %2900 = vmatprep.subr.bf16.mxu0 0
        %2901 = vmatpush2.bf16.msra.mxu0 %v675
        %2902 = vmatprep.subr.bf16.mxu0 0
        %2903 = vmatpush2.bf16.msra.mxu0 %v674
        %2904 = vmatprep.subr.bf16.mxu0 0
        %2905 = vmatpush2.bf16.msra.mxu0 %v673
        %2906 = vmatprep.subr.bf16.mxu0 0
        %2907 = vmatpush2.bf16.msra.mxu0 %v672
        %2908 = vmatprep.subr.bf16.mxu0 0
        %2909 = vmatpush2.bf16.msra.mxu0 %v671
        %2910 = vmatprep.subr.bf16.mxu0 0
        %2911 = vmatpush2.bf16.msra.mxu0 %v670
        %2912 = vmatprep.subr.bf16.mxu0 0
        %2913 = vmatpush2.bf16.msra.mxu0 %v669
        %2914 = vmatprep.subr.bf16.mxu0 0
        %2915 = vmatpush2.bf16.msra.mxu0 %v668
        %2916 = vmatprep.mubr.bf16.mxu0 %v2853
        %2917 = vmatmul.mubr.bf16.gmra.mxu0 %v2852
        %v2918 = vpop.f32.mrf.mxu0
        %v2919 = vadd.f32 0.0, %v2918
        %v2920 = vpop.f32.mrf.mxu0
        %v2921 = vpop.f32.mrf.mxu0
        %v2922 = vadd.f32 0.0, %v2921
        %v2923 = vpop.f32.mrf.mxu0
        %2924 = vmatprep.mubr.bf16.mxu0 %v2855
        %2925 = vmatmul.mubr.bf16.gmra.mxu0 %v2854
        %v2926 = vpop.f32.mrf.mxu0
        %v2927 = vadd.f32 0.0, %v2926
        %v2928 = vpop.f32.mrf.mxu0
        %v2929 = vpop.f32.mrf.mxu0
        %v2930 = vadd.f32 0.0, %v2929
        %v2931 = vpop.f32.mrf.mxu0
        %2932 = vmatprep.mubr.bf16.mxu0 %v2857
        %2933 = vmatmul.mubr.bf16.gmra.mxu0 %v2856
        %v2934 = vpop.f32.mrf.mxu0
        %v2935 = vadd.f32 0.0, %v2934
        %v2936 = vpop.f32.mrf.mxu0
        %v2937 = vpop.f32.mrf.mxu0
        %v2938 = vadd.f32 0.0, %v2937
        %v2939 = vpop.f32.mrf.mxu0
        %2940 = vmatprep.mubr.bf16.mxu0 %v2859
        %2941 = vmatmul.mubr.bf16.gmra.mxu0 %v2858
        %v2942 = vpop.f32.mrf.mxu0
        %v2943 = vadd.f32 0.0, %v2942
        %v2944 = vpop.f32.mrf.mxu0
        %v2945 = vpop.f32.mrf.mxu0
        %v2946 = vadd.f32 0.0, %v2945
        %v2947 = vpop.f32.mrf.mxu0
        %2948 = vmatprep.mubr.bf16.mxu0 %v2861
        %2949 = vmatmul.mubr.bf16.gmra.mxu0 %v2860
        %v2950 = vpop.f32.mrf.mxu0
        %v2951 = vadd.f32 0.0, %v2950
        %v2952 = vpop.f32.mrf.mxu0
        %v2953 = vpop.f32.mrf.mxu0
        %v2954 = vadd.f32 0.0, %v2953
        %v2955 = vpop.f32.mrf.mxu0
        %2956 = vmatprep.mubr.bf16.mxu0 %v2863
        %2957 = vmatmul.mubr.bf16.gmra.mxu0 %v2862
        %v2958 = vpop.f32.mrf.mxu0
        %v2959 = vadd.f32 0.0, %v2958
        %v2960 = vpop.f32.mrf.mxu0
        %v2961 = vpop.f32.mrf.mxu0
        %v2962 = vadd.f32 0.0, %v2961
        %v2963 = vpop.f32.mrf.mxu0
        %2964 = vmatprep.mubr.bf16.mxu0 %v2865
        %2965 = vmatmul.mubr.bf16.gmra.mxu0 %v2864
        %v2966 = vpop.f32.mrf.mxu0
        %v2967 = vadd.f32 0.0, %v2966
        %v2968 = vpop.f32.mrf.mxu0
        %v2969 = vpop.f32.mrf.mxu0
        %v2970 = vadd.f32 0.0, %v2969
        %v2971 = vpop.f32.mrf.mxu0
        %2972 = vmatprep.mubr.bf16.mxu0 %v2867
        %2973 = vmatmul.mubr.bf16.gmra.mxu0 %v2866
        %v2974 = vpop.f32.mrf.mxu0
        %v2975 = vadd.f32 0.0, %v2974
        %v2976 = vpop.f32.mrf.mxu0
        %v2977 = vpop.f32.mrf.mxu0
        %v2978 = vadd.f32 0.0, %v2977
        %v2979 = vpop.f32.mrf.mxu0
        %2980 = vdwg.mxu0
        %v2981 = vpack.c.bf16 %v2922, %v2919
        %v2982 = vpack.c.bf16 %v2930, %v2927
        %v2983 = vpack.c.bf16 %v2938, %v2935
        %v2984 = vpack.c.bf16 %v2946, %v2943
        %v2985 = vpack.c.bf16 %v2954, %v2951
        %v2986 = vpack.c.bf16 %v2962, %v2959
        %v2987 = vpack.c.bf16 %v2970, %v2967
        %v2988 = vpack.c.bf16 %v2978, %v2975
        %v2997 = vunpack.c.l.b16 %v2981
        %v2998 = vunpack.c.h.b16 %v2981
        %v2999 = vunpack.c.l.b16 %v2982
        %v3000 = vunpack.c.h.b16 %v2982
        %v3001 = vunpack.c.l.b16 %v2983
        %v3002 = vunpack.c.h.b16 %v2983
        %v3003 = vunpack.c.l.b16 %v2984
        %v3004 = vunpack.c.h.b16 %v2984
        %v3005 = vunpack.c.l.b16 %v2985
        %v3006 = vunpack.c.h.b16 %v2985
        %v3007 = vunpack.c.l.b16 %v2986
        %v3008 = vunpack.c.h.b16 %v2986
        %v3009 = vunpack.c.l.b16 %v2987
        %v3010 = vunpack.c.h.b16 %v2987
        %v3011 = vunpack.c.l.b16 %v2988
        %v3012 = vunpack.c.h.b16 %v2988
        %v3013 = vpack.c.b16 %v2997, %v2997
        %v3014 = vpack.c.b16 %v2998, %v2998
        %v3015 = vpack.c.b16 %v2999, %v2999
        %v3016 = vpack.c.b16 %v3000, %v3000
        %v3017 = vpack.c.b16 %v3001, %v3001
        %v3018 = vpack.c.b16 %v3002, %v3002
        %v3019 = vpack.c.b16 %v3003, %v3003
        %v3020 = vpack.c.b16 %v3004, %v3004
        %v3021 = vpack.c.b16 %v3005, %v3005
        %v3022 = vpack.c.b16 %v3006, %v3006
        %v3023 = vpack.c.b16 %v3007, %v3007
        %v3024 = vpack.c.b16 %v3008, %v3008
        %v3025 = vpack.c.b16 %v3009, %v3009
        %v3026 = vpack.c.b16 %v3010, %v3010
        %v3027 = vpack.c.b16 %v3011, %v3011
        %v3028 = vpack.c.b16 %v3012, %v3012
        %3045 = vst [vmem:[#allocation2 + $0x20] sm:$0xf] %v3013
        %3046 = vst [vmem:[#allocation2 + $0x44] sm:$0xf] %v3014
        %3047 = vst [vmem:[#allocation2 + $0x68] sm:$0xf] %v3015
        %3048 = vst [vmem:[#allocation2 + $0x8c] sm:$0xf] %v3016
        %3049 = vst [vmem:[#allocation2 + $0xb0] sm:$0xf] %v3017
        %3050 = vst [vmem:[#allocation2 + $0xd4] sm:$0xf] %v3018
        %3051 = vst [vmem:[#allocation2 + $0xf8] sm:$0xf] %v3019
        %3052 = vst [vmem:[#allocation2 + $0x11c] sm:$0xf] %v3020
        %3053 = vst [vmem:[#allocation2 + $0x140] sm:$0xf] %v3021
        %3054 = vst [vmem:[#allocation2 + $0x164] sm:$0xf] %v3022
        %3055 = vst [vmem:[#allocation2 + $0x188] sm:$0xf] %v3023
        %3056 = vst [vmem:[#allocation2 + $0x1ac] sm:$0xf] %v3024
        %3057 = vst [vmem:[#allocation2 + $0x1d0] sm:$0xf] %v3025
        %3058 = vst [vmem:[#allocation2 + $0x1f4] sm:$0xf] %v3026
        %3059 = vst [vmem:[#allocation2 + $0x218] sm:$0xf] %v3027
        %3060 = vst [vmem:[#allocation2 + $0x23c] sm:$0xf] %v3028
        %s3061 = smul.u32 %s31, 128
        %s3062 = sshra.s32 %s3061, 3
        %s3063 = sand.u32 %s3061, 7
        %s3064 = smul.addr %s3062, 4
        %s3065 = scalar_lea.vmem [#allocation6], %s3064
        %v3066 = vld [vmem:[%s3065] sm:$0xf]
        %v3067 = vld [vmem:[%s3065 + $0x4] sm:$0xf]
        %v3068 = vld [vmem:[%s3065 + $0x8] sm:$0xf]
        %v3069 = vld [vmem:[%s3065 + $0xc] sm:$0xf]
        %v3070 = vld [vmem:[%s3065 + $0x10] sm:$0xf]
        %v3071 = vld [vmem:[%s3065 + $0x14] sm:$0xf]
        %v3072 = vld [vmem:[%s3065 + $0x18] sm:$0xf]
        %v3073 = vld [vmem:[%s3065 + $0x1c] sm:$0xf]
        %v3074 = vld [vmem:[%s3065 + $0x20] sm:$0xf]
        %v3075 = vld [vmem:[%s3065 + $0x24] sm:$0xf]
        %v3076 = vld [vmem:[%s3065 + $0x28] sm:$0xf]
        %v3077 = vld [vmem:[%s3065 + $0x2c] sm:$0xf]
        %v3078 = vld [vmem:[%s3065 + $0x30] sm:$0xf]
        %v3079 = vld [vmem:[%s3065 + $0x34] sm:$0xf]
        %v3080 = vld [vmem:[%s3065 + $0x38] sm:$0xf]
        %v3081 = vld [vmem:[%s3065 + $0x3c] sm:$0xf]
        %v3082 = vld [vmem:[#allocation9] sm:$0xf]
        %v3083 = vld [vmem:[#allocation9 + $0x4] sm:$0xf]
        %v3084 = vld [vmem:[#allocation9 + $0x8] sm:$0xf]
        %v3085 = vld [vmem:[#allocation9 + $0xc] sm:$0xf]
        %v3086 = vld [vmem:[#allocation9 + $0x10] sm:$0xf]
        %v3087 = vld [vmem:[#allocation9 + $0x14] sm:$0xf]
        %v3088 = vld [vmem:[#allocation9 + $0x18] sm:$0xf]
        %v3089 = vld [vmem:[#allocation9 + $0x1c] sm:$0xf]
        %v3090 = vld [vmem:[#allocation9 + $0x20] sm:$0xf]
        %v3091 = vld [vmem:[#allocation9 + $0x24] sm:$0xf]
        %v3092 = vld [vmem:[#allocation9 + $0x28] sm:$0xf]
        %v3093 = vld [vmem:[#allocation9 + $0x2c] sm:$0xf]
        %v3094 = vld [vmem:[#allocation9 + $0x30] sm:$0xf]
        %v3095 = vld [vmem:[#allocation9 + $0x34] sm:$0xf]
        %v3096 = vld [vmem:[#allocation9 + $0x38] sm:$0xf]
        %v3097 = vld [vmem:[#allocation9 + $0x3c] sm:$0xf]
        %v3098 = vld [vmem:[#allocation2] sm:$0xff]
        %v3099 = vld [vmem:[#allocation2 + $0x8] sm:$0xff]
        %v3100 = vld [vmem:[#allocation2 + $0x10] sm:$0xff]
        %v3101 = vld [vmem:[#allocation2 + $0x18] sm:$0xff]
        %v3102 = vld [vmem:[#allocation2 + $0x20] sm:$0xf]
        %v3103 = vld [vmem:[#allocation2 + $0x24] sm:$0xff]
        %v3104 = vld [vmem:[#allocation2 + $0x2c] sm:$0xff]
        %v3105 = vld [vmem:[#allocation2 + $0x34] sm:$0xff]
        %v3106 = vld [vmem:[#allocation2 + $0x3c] sm:$0xff]
        %v3107 = vld [vmem:[#allocation2 + $0x44] sm:$0xf]
        %v3108 = vld [vmem:[#allocation2 + $0x48] sm:$0xff]
        %v3109 = vld [vmem:[#allocation2 + $0x50] sm:$0xff]
        %v3110 = vld [vmem:[#allocation2 + $0x58] sm:$0xff]
        %v3111 = vld [vmem:[#allocation2 + $0x60] sm:$0xff]
        %v3112 = vld [vmem:[#allocation2 + $0x68] sm:$0xf]
        %v3113 = vld [vmem:[#allocation2 + $0x6c] sm:$0xff]
        %v3114 = vld [vmem:[#allocation2 + $0x74] sm:$0xff]
        %v3115 = vld [vmem:[#allocation2 + $0x7c] sm:$0xff]
        %v3116 = vld [vmem:[#allocation2 + $0x84] sm:$0xff]
        %v3117 = vld [vmem:[#allocation2 + $0x8c] sm:$0xf]
        %v3118 = vld [vmem:[#allocation2 + $0x90] sm:$0xff]
        %v3119 = vld [vmem:[#allocation2 + $0x98] sm:$0xff]
        %v3120 = vld [vmem:[#allocation2 + $0xa0] sm:$0xff]
        %v3121 = vld [vmem:[#allocation2 + $0xa8] sm:$0xff]
        %v3122 = vld [vmem:[#allocation2 + $0xb0] sm:$0xf]
        %v3123 = vld [vmem:[#allocation2 + $0xb4] sm:$0xff]
        %v3124 = vld [vmem:[#allocation2 + $0xbc] sm:$0xff]
        %v3125 = vld [vmem:[#allocation2 + $0xc4] sm:$0xff]
        %v3126 = vld [vmem:[#allocation2 + $0xcc] sm:$0xff]
        %v3127 = vld [vmem:[#allocation2 + $0xd4] sm:$0xf]
        %v3128 = vld [vmem:[#allocation2 + $0xd8] sm:$0xff]
        %v3129 = vld [vmem:[#allocation2 + $0xe0] sm:$0xff]
        %v3130 = vld [vmem:[#allocation2 + $0xe8] sm:$0xff]
        %v3131 = vld [vmem:[#allocation2 + $0xf0] sm:$0xff]
        %v3132 = vld [vmem:[#allocation2 + $0xf8] sm:$0xf]
        %v3133 = vld [vmem:[#allocation2 + $0xfc] sm:$0xff]
        %v3134 = vld [vmem:[#allocation2 + $0x104] sm:$0xff]
        %v3135 = vld [vmem:[#allocation2 + $0x10c] sm:$0xff]
        %v3136 = vld [vmem:[#allocation2 + $0x114] sm:$0xff]
        %v3137 = vld [vmem:[#allocation2 + $0x11c] sm:$0xf]
        %v3138 = vld [vmem:[#allocation2 + $0x120] sm:$0xff]
        %v3139 = vld [vmem:[#allocation2 + $0x128] sm:$0xff]
        %v3140 = vld [vmem:[#allocation2 + $0x130] sm:$0xff]
        %v3141 = vld [vmem:[#allocation2 + $0x138] sm:$0xff]
        %v3142 = vld [vmem:[#allocation2 + $0x140] sm:$0xf]
        %v3143 = vld [vmem:[#allocation2 + $0x144] sm:$0xff]
        %v3144 = vld [vmem:[#allocation2 + $0x14c] sm:$0xff]
        %v3145 = vld [vmem:[#allocation2 + $0x154] sm:$0xff]
        %v3146 = vld [vmem:[#allocation2 + $0x15c] sm:$0xff]
        %v3147 = vld [vmem:[#allocation2 + $0x164] sm:$0xf]
        %v3148 = vld [vmem:[#allocation2 + $0x168] sm:$0xff]
        %v3149 = vld [vmem:[#allocation2 + $0x170] sm:$0xff]
        %v3150 = vld [vmem:[#allocation2 + $0x178] sm:$0xff]
        %v3151 = vld [vmem:[#allocation2 + $0x180] sm:$0xff]
        %v3152 = vld [vmem:[#allocation2 + $0x188] sm:$0xf]
        %v3153 = vld [vmem:[#allocation2 + $0x18c] sm:$0xff]
        %v3154 = vld [vmem:[#allocation2 + $0x194] sm:$0xff]
        %v3155 = vld [vmem:[#allocation2 + $0x19c] sm:$0xff]
        %v3156 = vld [vmem:[#allocation2 + $0x1a4] sm:$0xff]
        %v3157 = vld [vmem:[#allocation2 + $0x1ac] sm:$0xf]
        %v3158 = vld [vmem:[#allocation2 + $0x1b0] sm:$0xff]
        %v3159 = vld [vmem:[#allocation2 + $0x1b8] sm:$0xff]
        %v3160 = vld [vmem:[#allocation2 + $0x1c0] sm:$0xff]
        %v3161 = vld [vmem:[#allocation2 + $0x1c8] sm:$0xff]
        %v3162 = vld [vmem:[#allocation2 + $0x1d0] sm:$0xf]
        %v3163 = vld [vmem:[#allocation2 + $0x1d4] sm:$0xff]
        %v3164 = vld [vmem:[#allocation2 + $0x1dc] sm:$0xff]
        %v3165 = vld [vmem:[#allocation2 + $0x1e4] sm:$0xff]
        %v3166 = vld [vmem:[#allocation2 + $0x1ec] sm:$0xff]
        %v3167 = vld [vmem:[#allocation2 + $0x1f4] sm:$0xf]
        %v3168 = vld [vmem:[#allocation2 + $0x1f8] sm:$0xff]
        %v3169 = vld [vmem:[#allocation2 + $0x200] sm:$0xff]
        %v3170 = vld [vmem:[#allocation2 + $0x208] sm:$0xff]
        %v3171 = vld [vmem:[#allocation2 + $0x210] sm:$0xff]
        %v3172 = vld [vmem:[#allocation2 + $0x218] sm:$0xf]
        %v3173 = vld [vmem:[#allocation2 + $0x21c] sm:$0xff]
        %v3174 = vld [vmem:[#allocation2 + $0x224] sm:$0xff]
        %v3175 = vld [vmem:[#allocation2 + $0x22c] sm:$0xff]
        %v3176 = vld [vmem:[#allocation2 + $0x234] sm:$0xff]
        %v3177 = vld [vmem:[#allocation2 + $0x23c] sm:$0xf]
        %v3178 = vld [vmem:[#allocation8] sm:$0xf]
        %v3179 = vld [vmem:[#allocation8 + $0x4] sm:$0xf]
        %v3180 = vld [vmem:[#allocation8 + $0x8] sm:$0xf]
        %v3181 = vld [vmem:[#allocation8 + $0xc] sm:$0xf]
        %v3182 = vld [vmem:[#allocation8 + $0x10] sm:$0xf]
        %v3183 = vld [vmem:[#allocation8 + $0x14] sm:$0xf]
        %v3184 = vld [vmem:[#allocation8 + $0x18] sm:$0xf]
        %v3185 = vld [vmem:[#allocation8 + $0x1c] sm:$0xf]
        %v3186 = vld [vmem:[#allocation8 + $0x20] sm:$0xf]
        %v3187 = vld [vmem:[#allocation8 + $0x24] sm:$0xf]
        %v3188 = vld [vmem:[#allocation8 + $0x28] sm:$0xf]
        %v3189 = vld [vmem:[#allocation8 + $0x2c] sm:$0xf]
        %v3190 = vld [vmem:[#allocation8 + $0x30] sm:$0xf]
        %v3191 = vld [vmem:[#allocation8 + $0x34] sm:$0xf]
        %v3192 = vld [vmem:[#allocation8 + $0x38] sm:$0xf]
        %v3193 = vld [vmem:[#allocation8 + $0x3c] sm:$0xf]
        %v3194 = vld [vmem:[#allocation8 + $0x40] sm:$0xf]
        %v3195 = vld [vmem:[#allocation8 + $0x44] sm:$0xf]
        %v3196 = vld [vmem:[#allocation8 + $0x48] sm:$0xf]
        %v3197 = vld [vmem:[#allocation8 + $0x4c] sm:$0xf]
        %v3198 = vld [vmem:[#allocation8 + $0x50] sm:$0xf]
        %v3199 = vld [vmem:[#allocation8 + $0x54] sm:$0xf]
        %v3200 = vld [vmem:[#allocation8 + $0x58] sm:$0xf]
        %v3201 = vld [vmem:[#allocation8 + $0x5c] sm:$0xf]
        %v3202 = vld [vmem:[#allocation8 + $0x60] sm:$0xf]
        %v3203 = vld [vmem:[#allocation8 + $0x64] sm:$0xf]
        %v3204 = vld [vmem:[#allocation8 + $0x68] sm:$0xf]
        %v3205 = vld [vmem:[#allocation8 + $0x6c] sm:$0xf]
        %v3206 = vld [vmem:[#allocation8 + $0x70] sm:$0xf]
        %v3207 = vld [vmem:[#allocation8 + $0x74] sm:$0xf]
        %v3208 = vld [vmem:[#allocation8 + $0x78] sm:$0xf]
        %v3209 = vld [vmem:[#allocation8 + $0x7c] sm:$0xf]
        %v3210 = vld [vmem:[#allocation8 + $0x80] sm:$0xf]
        %v3211 = vld [vmem:[#allocation8 + $0x84] sm:$0xf]
        %v3212 = vld [vmem:[#allocation8 + $0x88] sm:$0xf]
        %v3213 = vld [vmem:[#allocation8 + $0x8c] sm:$0xf]
        %v3214 = vld [vmem:[#allocation8 + $0x90] sm:$0xf]
        %v3215 = vld [vmem:[#allocation8 + $0x94] sm:$0xf]
        %v3216 = vld [vmem:[#allocation8 + $0x98] sm:$0xf]
        %v3217 = vld [vmem:[#allocation8 + $0x9c] sm:$0xf]
        %v3218 = vld [vmem:[#allocation8 + $0xa0] sm:$0xf]
        %v3219 = vld [vmem:[#allocation8 + $0xa4] sm:$0xf]
        %v3220 = vld [vmem:[#allocation8 + $0xa8] sm:$0xf]
        %v3221 = vld [vmem:[#allocation8 + $0xac] sm:$0xf]
        %v3222 = vld [vmem:[#allocation8 + $0xb0] sm:$0xf]
        %v3223 = vld [vmem:[#allocation8 + $0xb4] sm:$0xf]
        %v3224 = vld [vmem:[#allocation8 + $0xb8] sm:$0xf]
        %v3225 = vld [vmem:[#allocation8 + $0xbc] sm:$0xf]
        %v3226 = vld [vmem:[#allocation8 + $0xc0] sm:$0xf]
        %v3227 = vld [vmem:[#allocation8 + $0xc4] sm:$0xf]
        %v3228 = vld [vmem:[#allocation8 + $0xc8] sm:$0xf]
        %v3229 = vld [vmem:[#allocation8 + $0xcc] sm:$0xf]
        %v3230 = vld [vmem:[#allocation8 + $0xd0] sm:$0xf]
        %v3231 = vld [vmem:[#allocation8 + $0xd4] sm:$0xf]
        %v3232 = vld [vmem:[#allocation8 + $0xd8] sm:$0xf]
        %v3233 = vld [vmem:[#allocation8 + $0xdc] sm:$0xf]
        %v3234 = vld [vmem:[#allocation8 + $0xe0] sm:$0xf]
        %v3235 = vld [vmem:[#allocation8 + $0xe4] sm:$0xf]
        %v3236 = vld [vmem:[#allocation8 + $0xe8] sm:$0xf]
        %v3237 = vld [vmem:[#allocation8 + $0xec] sm:$0xf]
        %v3238 = vld [vmem:[#allocation8 + $0xf0] sm:$0xf]
        %v3239 = vld [vmem:[#allocation8 + $0xf4] sm:$0xf]
        %v3240 = vld [vmem:[#allocation8 + $0xf8] sm:$0xf]
        %v3241 = vld [vmem:[#allocation8 + $0xfc] sm:$0xf]
        %v3242 = vld [vmem:[#allocation8 + $0x100] sm:$0xf]
        %v3243 = vld [vmem:[#allocation8 + $0x104] sm:$0xf]
        %v3244 = vld [vmem:[#allocation8 + $0x108] sm:$0xf]
        %v3245 = vld [vmem:[#allocation8 + $0x10c] sm:$0xf]
        %v3246 = vld [vmem:[#allocation8 + $0x110] sm:$0xf]
        %v3247 = vld [vmem:[#allocation8 + $0x114] sm:$0xf]
        %v3248 = vld [vmem:[#allocation8 + $0x118] sm:$0xf]
        %v3249 = vld [vmem:[#allocation8 + $0x11c] sm:$0xf]
        %v3250 = vld [vmem:[#allocation8 + $0x120] sm:$0xf]
        %v3251 = vld [vmem:[#allocation8 + $0x124] sm:$0xf]
        %v3252 = vld [vmem:[#allocation8 + $0x128] sm:$0xf]
        %v3253 = vld [vmem:[#allocation8 + $0x12c] sm:$0xf]
        %v3254 = vld [vmem:[#allocation8 + $0x130] sm:$0xf]
        %v3255 = vld [vmem:[#allocation8 + $0x134] sm:$0xf]
        %v3256 = vld [vmem:[#allocation8 + $0x138] sm:$0xf]
        %v3257 = vld [vmem:[#allocation8 + $0x13c] sm:$0xf]
        %v3258 = vld [vmem:[#allocation8 + $0x140] sm:$0xf]
        %v3259 = vld [vmem:[#allocation8 + $0x144] sm:$0xf]
        %v3260 = vld [vmem:[#allocation8 + $0x148] sm:$0xf]
        %v3261 = vld [vmem:[#allocation8 + $0x14c] sm:$0xf]
        %v3262 = vld [vmem:[#allocation8 + $0x150] sm:$0xf]
        %v3263 = vld [vmem:[#allocation8 + $0x154] sm:$0xf]
        %v3264 = vld [vmem:[#allocation8 + $0x158] sm:$0xf]
        %v3265 = vld [vmem:[#allocation8 + $0x15c] sm:$0xf]
        %v3266 = vld [vmem:[#allocation8 + $0x160] sm:$0xf]
        %v3267 = vld [vmem:[#allocation8 + $0x164] sm:$0xf]
        %v3268 = vld [vmem:[#allocation8 + $0x168] sm:$0xf]
        %v3269 = vld [vmem:[#allocation8 + $0x16c] sm:$0xf]
        %v3270 = vld [vmem:[#allocation8 + $0x170] sm:$0xf]
        %v3271 = vld [vmem:[#allocation8 + $0x174] sm:$0xf]
        %v3272 = vld [vmem:[#allocation8 + $0x178] sm:$0xf]
        %v3273 = vld [vmem:[#allocation8 + $0x17c] sm:$0xf]
        %v3274 = vld [vmem:[#allocation8 + $0x180] sm:$0xf]
        %v3275 = vld [vmem:[#allocation8 + $0x184] sm:$0xf]
        %v3276 = vld [vmem:[#allocation8 + $0x188] sm:$0xf]
        %v3277 = vld [vmem:[#allocation8 + $0x18c] sm:$0xf]
        %v3278 = vld [vmem:[#allocation8 + $0x190] sm:$0xf]
        %v3279 = vld [vmem:[#allocation8 + $0x194] sm:$0xf]
        %v3280 = vld [vmem:[#allocation8 + $0x198] sm:$0xf]
        %v3281 = vld [vmem:[#allocation8 + $0x19c] sm:$0xf]
        %v3282 = vld [vmem:[#allocation8 + $0x1a0] sm:$0xf]
        %v3283 = vld [vmem:[#allocation8 + $0x1a4] sm:$0xf]
        %v3284 = vld [vmem:[#allocation8 + $0x1a8] sm:$0xf]
        %v3285 = vld [vmem:[#allocation8 + $0x1ac] sm:$0xf]
        %v3286 = vld [vmem:[#allocation8 + $0x1b0] sm:$0xf]
        %v3287 = vld [vmem:[#allocation8 + $0x1b4] sm:$0xf]
        %v3288 = vld [vmem:[#allocation8 + $0x1b8] sm:$0xf]
        %v3289 = vld [vmem:[#allocation8 + $0x1bc] sm:$0xf]
        %v3290 = vld [vmem:[#allocation8 + $0x1c0] sm:$0xf]
        %v3291 = vld [vmem:[#allocation8 + $0x1c4] sm:$0xf]
        %v3292 = vld [vmem:[#allocation8 + $0x1c8] sm:$0xf]
        %v3293 = vld [vmem:[#allocation8 + $0x1cc] sm:$0xf]
        %v3294 = vld [vmem:[#allocation8 + $0x1d0] sm:$0xf]
        %v3295 = vld [vmem:[#allocation8 + $0x1d4] sm:$0xf]
        %v3296 = vld [vmem:[#allocation8 + $0x1d8] sm:$0xf]
        %v3297 = vld [vmem:[#allocation8 + $0x1dc] sm:$0xf]
        %v3298 = vld [vmem:[#allocation8 + $0x1e0] sm:$0xf]
        %v3299 = vld [vmem:[#allocation8 + $0x1e4] sm:$0xf]
        %v3300 = vld [vmem:[#allocation8 + $0x1e8] sm:$0xf]
        %v3301 = vld [vmem:[#allocation8 + $0x1ec] sm:$0xf]
        %v3302 = vld [vmem:[#allocation8 + $0x1f0] sm:$0xf]
        %v3303 = vld [vmem:[#allocation8 + $0x1f4] sm:$0xf]
        %v3304 = vld [vmem:[#allocation8 + $0x1f8] sm:$0xf]
        %v3305 = vld [vmem:[#allocation8 + $0x1fc] sm:$0xf]
        %v3306 = vld [vmem:[#allocation8 + $0x200] sm:$0xf]
        %v3307 = vld [vmem:[#allocation8 + $0x204] sm:$0xf]
        %v3308 = vld [vmem:[#allocation8 + $0x208] sm:$0xf]
        %v3309 = vld [vmem:[#allocation8 + $0x20c] sm:$0xf]
        %v3310 = vld [vmem:[#allocation8 + $0x210] sm:$0xf]
        %v3311 = vld [vmem:[#allocation8 + $0x214] sm:$0xf]
        %v3312 = vld [vmem:[#allocation8 + $0x218] sm:$0xf]
        %v3313 = vld [vmem:[#allocation8 + $0x21c] sm:$0xf]
        %v3314 = vld [vmem:[#allocation8 + $0x220] sm:$0xf]
        %v3315 = vld [vmem:[#allocation8 + $0x224] sm:$0xf]
        %v3316 = vld [vmem:[#allocation8 + $0x228] sm:$0xf]
        %v3317 = vld [vmem:[#allocation8 + $0x22c] sm:$0xf]
        %v3318 = vld [vmem:[#allocation8 + $0x230] sm:$0xf]
        %v3319 = vld [vmem:[#allocation8 + $0x234] sm:$0xf]
        %v3320 = vld [vmem:[#allocation8 + $0x238] sm:$0xf]
        %v3321 = vld [vmem:[#allocation8 + $0x23c] sm:$0xf]
        %v3402 = vunpack.c.l.b16 %v3098
        %v3403 = vunpack.c.h.b16 %v3098
        %v3404 = vunpack.c.l.b16 %v3099
        %v3405 = vunpack.c.h.b16 %v3099
        %v3406 = vunpack.c.l.b16 %v3100
        %v3407 = vunpack.c.h.b16 %v3100
        %v3408 = vunpack.c.l.b16 %v3101
        %v3409 = vunpack.c.h.b16 %v3101
        %v3410 = vunpack.c.l.b16 %v3102
        %v3411 = vunpack.c.l.b16 %v3103
        %v3412 = vunpack.c.h.b16 %v3103
        %v3413 = vunpack.c.l.b16 %v3104
        %v3414 = vunpack.c.h.b16 %v3104
        %v3415 = vunpack.c.l.b16 %v3105
        %v3416 = vunpack.c.h.b16 %v3105
        %v3417 = vunpack.c.l.b16 %v3106
        %v3418 = vunpack.c.h.b16 %v3106
        %v3419 = vunpack.c.l.b16 %v3107
        %v3420 = vunpack.c.l.b16 %v3108
        %v3421 = vunpack.c.h.b16 %v3108
        %v3422 = vunpack.c.l.b16 %v3109
        %v3423 = vunpack.c.h.b16 %v3109
        %v3424 = vunpack.c.l.b16 %v3110
        %v3425 = vunpack.c.h.b16 %v3110
        %v3426 = vunpack.c.l.b16 %v3111
        %v3427 = vunpack.c.h.b16 %v3111
        %v3428 = vunpack.c.l.b16 %v3112
        %v3429 = vunpack.c.l.b16 %v3113
        %v3430 = vunpack.c.h.b16 %v3113
        %v3431 = vunpack.c.l.b16 %v3114
        %v3432 = vunpack.c.h.b16 %v3114
        %v3433 = vunpack.c.l.b16 %v3115
        %v3434 = vunpack.c.h.b16 %v3115
        %v3435 = vunpack.c.l.b16 %v3116
        %v3436 = vunpack.c.h.b16 %v3116
        %v3437 = vunpack.c.l.b16 %v3117
        %v3438 = vunpack.c.l.b16 %v3118
        %v3439 = vunpack.c.h.b16 %v3118
        %v3440 = vunpack.c.l.b16 %v3119
        %v3441 = vunpack.c.h.b16 %v3119
        %v3442 = vunpack.c.l.b16 %v3120
        %v3443 = vunpack.c.h.b16 %v3120
        %v3444 = vunpack.c.l.b16 %v3121
        %v3445 = vunpack.c.h.b16 %v3121
        %v3446 = vunpack.c.l.b16 %v3122
        %v3447 = vunpack.c.l.b16 %v3123
        %v3448 = vunpack.c.h.b16 %v3123
        %v3449 = vunpack.c.l.b16 %v3124
        %v3450 = vunpack.c.h.b16 %v3124
        %v3451 = vunpack.c.l.b16 %v3125
        %v3452 = vunpack.c.h.b16 %v3125
        %v3453 = vunpack.c.l.b16 %v3126
        %v3454 = vunpack.c.h.b16 %v3126
        %v3455 = vunpack.c.l.b16 %v3127
        %v3456 = vunpack.c.l.b16 %v3128
        %v3457 = vunpack.c.h.b16 %v3128
        %v3458 = vunpack.c.l.b16 %v3129
        %v3459 = vunpack.c.h.b16 %v3129
        %v3460 = vunpack.c.l.b16 %v3130
        %v3461 = vunpack.c.h.b16 %v3130
        %v3462 = vunpack.c.l.b16 %v3131
        %v3463 = vunpack.c.h.b16 %v3131
        %v3464 = vunpack.c.l.b16 %v3132
        %v3465 = vunpack.c.l.b16 %v3133
        %v3466 = vunpack.c.h.b16 %v3133
        %v3467 = vunpack.c.l.b16 %v3134
        %v3468 = vunpack.c.h.b16 %v3134
        %v3469 = vunpack.c.l.b16 %v3135
        %v3470 = vunpack.c.h.b16 %v3135
        %v3471 = vunpack.c.l.b16 %v3136
        %v3472 = vunpack.c.h.b16 %v3136
        %v3473 = vunpack.c.l.b16 %v3137
        %v3474 = vunpack.c.l.b16 %v3138
        %v3475 = vunpack.c.h.b16 %v3138
        %v3476 = vunpack.c.l.b16 %v3139
        %v3477 = vunpack.c.h.b16 %v3139
        %v3478 = vunpack.c.l.b16 %v3140
        %v3479 = vunpack.c.h.b16 %v3140
        %v3480 = vunpack.c.l.b16 %v3141
        %v3481 = vunpack.c.h.b16 %v3141
        %v3482 = vunpack.c.l.b16 %v3142
        %v3483 = vunpack.c.l.b16 %v3143
        %v3484 = vunpack.c.h.b16 %v3143
        %v3485 = vunpack.c.l.b16 %v3144
        %v3486 = vunpack.c.h.b16 %v3144
        %v3487 = vunpack.c.l.b16 %v3145
        %v3488 = vunpack.c.h.b16 %v3145
        %v3489 = vunpack.c.l.b16 %v3146
        %v3490 = vunpack.c.h.b16 %v3146
        %v3491 = vunpack.c.l.b16 %v3147
        %v3492 = vunpack.c.l.b16 %v3148
        %v3493 = vunpack.c.h.b16 %v3148
        %v3494 = vunpack.c.l.b16 %v3149
        %v3495 = vunpack.c.h.b16 %v3149
        %v3496 = vunpack.c.l.b16 %v3150
        %v3497 = vunpack.c.h.b16 %v3150
        %v3498 = vunpack.c.l.b16 %v3151
        %v3499 = vunpack.c.h.b16 %v3151
        %v3500 = vunpack.c.l.b16 %v3152
        %v3501 = vunpack.c.l.b16 %v3153
        %v3502 = vunpack.c.h.b16 %v3153
        %v3503 = vunpack.c.l.b16 %v3154
        %v3504 = vunpack.c.h.b16 %v3154
        %v3505 = vunpack.c.l.b16 %v3155
        %v3506 = vunpack.c.h.b16 %v3155
        %v3507 = vunpack.c.l.b16 %v3156
        %v3508 = vunpack.c.h.b16 %v3156
        %v3509 = vunpack.c.l.b16 %v3157
        %v3510 = vunpack.c.l.b16 %v3158
        %v3511 = vunpack.c.h.b16 %v3158
        %v3512 = vunpack.c.l.b16 %v3159
        %v3513 = vunpack.c.h.b16 %v3159
        %v3514 = vunpack.c.l.b16 %v3160
        %v3515 = vunpack.c.h.b16 %v3160
        %v3516 = vunpack.c.l.b16 %v3161
        %v3517 = vunpack.c.h.b16 %v3161
        %v3518 = vunpack.c.l.b16 %v3162
        %v3519 = vunpack.c.l.b16 %v3163
        %v3520 = vunpack.c.h.b16 %v3163
        %v3521 = vunpack.c.l.b16 %v3164
        %v3522 = vunpack.c.h.b16 %v3164
        %v3523 = vunpack.c.l.b16 %v3165
        %v3524 = vunpack.c.h.b16 %v3165
        %v3525 = vunpack.c.l.b16 %v3166
        %v3526 = vunpack.c.h.b16 %v3166
        %v3527 = vunpack.c.l.b16 %v3167
        %v3528 = vunpack.c.l.b16 %v3168
        %v3529 = vunpack.c.h.b16 %v3168
        %v3530 = vunpack.c.l.b16 %v3169
        %v3531 = vunpack.c.h.b16 %v3169
        %v3532 = vunpack.c.l.b16 %v3170
        %v3533 = vunpack.c.h.b16 %v3170
        %v3534 = vunpack.c.l.b16 %v3171
        %v3535 = vunpack.c.h.b16 %v3171
        %v3536 = vunpack.c.l.b16 %v3172
        %v3537 = vunpack.c.l.b16 %v3173
        %v3538 = vunpack.c.h.b16 %v3173
        %v3539 = vunpack.c.l.b16 %v3174
        %v3540 = vunpack.c.h.b16 %v3174
        %v3541 = vunpack.c.l.b16 %v3175
        %v3542 = vunpack.c.h.b16 %v3175
        %v3543 = vunpack.c.l.b16 %v3176
        %v3544 = vunpack.c.h.b16 %v3176
        %v3545 = vunpack.c.l.b16 %v3177
        %v3546 = vpack.c.b16 %v3411, %v3402
        %v3547 = vpack.c.b16 %v3412, %v3403
        %v3548 = vpack.c.b16 %v3413, %v3404
        %v3549 = vpack.c.b16 %v3414, %v3405
        %v3550 = vpack.c.b16 %v3415, %v3406
        %v3551 = vpack.c.b16 %v3416, %v3407
        %v3552 = vpack.c.b16 %v3417, %v3408
        %v3553 = vpack.c.b16 %v3418, %v3409
        %v3554 = vpack.c.b16 %v3419, %v3410
        %v3555 = vpack.c.b16 %v3429, %v3420
        %v3556 = vpack.c.b16 %v3430, %v3421
        %v3557 = vpack.c.b16 %v3431, %v3422
        %v3558 = vpack.c.b16 %v3432, %v3423
        %v3559 = vpack.c.b16 %v3433, %v3424
        %v3560 = vpack.c.b16 %v3434, %v3425
        %v3561 = vpack.c.b16 %v3435, %v3426
        %v3562 = vpack.c.b16 %v3436, %v3427
        %v3563 = vpack.c.b16 %v3437, %v3428
        %v3564 = vpack.c.b16 %v3447, %v3438
        %v3565 = vpack.c.b16 %v3448, %v3439
        %v3566 = vpack.c.b16 %v3449, %v3440
        %v3567 = vpack.c.b16 %v3450, %v3441
        %v3568 = vpack.c.b16 %v3451, %v3442
        %v3569 = vpack.c.b16 %v3452, %v3443
        %v3570 = vpack.c.b16 %v3453, %v3444
        %v3571 = vpack.c.b16 %v3454, %v3445
        %v3572 = vpack.c.b16 %v3455, %v3446
        %v3573 = vpack.c.b16 %v3465, %v3456
        %v3574 = vpack.c.b16 %v3466, %v3457
        %v3575 = vpack.c.b16 %v3467, %v3458
        %v3576 = vpack.c.b16 %v3468, %v3459
        %v3577 = vpack.c.b16 %v3469, %v3460
        %v3578 = vpack.c.b16 %v3470, %v3461
        %v3579 = vpack.c.b16 %v3471, %v3462
        %v3580 = vpack.c.b16 %v3472, %v3463
        %v3581 = vpack.c.b16 %v3473, %v3464
        %v3582 = vpack.c.b16 %v3483, %v3474
        %v3583 = vpack.c.b16 %v3484, %v3475
        %v3584 = vpack.c.b16 %v3485, %v3476
        %v3585 = vpack.c.b16 %v3486, %v3477
        %v3586 = vpack.c.b16 %v3487, %v3478
        %v3587 = vpack.c.b16 %v3488, %v3479
        %v3588 = vpack.c.b16 %v3489, %v3480
        %v3589 = vpack.c.b16 %v3490, %v3481
        %v3590 = vpack.c.b16 %v3491, %v3482
        %v3591 = vpack.c.b16 %v3501, %v3492
        %v3592 = vpack.c.b16 %v3502, %v3493
        %v3593 = vpack.c.b16 %v3503, %v3494
        %v3594 = vpack.c.b16 %v3504, %v3495
        %v3595 = vpack.c.b16 %v3505, %v3496
        %v3596 = vpack.c.b16 %v3506, %v3497
        %v3597 = vpack.c.b16 %v3507, %v3498
        %v3598 = vpack.c.b16 %v3508, %v3499
        %v3599 = vpack.c.b16 %v3509, %v3500
        %v3600 = vpack.c.b16 %v3519, %v3510
        %v3601 = vpack.c.b16 %v3520, %v3511
        %v3602 = vpack.c.b16 %v3521, %v3512
        %v3603 = vpack.c.b16 %v3522, %v3513
        %v3604 = vpack.c.b16 %v3523, %v3514
        %v3605 = vpack.c.b16 %v3524, %v3515
        %v3606 = vpack.c.b16 %v3525, %v3516
        %v3607 = vpack.c.b16 %v3526, %v3517
        %v3608 = vpack.c.b16 %v3527, %v3518
        %v3609 = vpack.c.b16 %v3537, %v3528
        %v3610 = vpack.c.b16 %v3538, %v3529
        %v3611 = vpack.c.b16 %v3539, %v3530
        %v3612 = vpack.c.b16 %v3540, %v3531
        %v3613 = vpack.c.b16 %v3541, %v3532
        %v3614 = vpack.c.b16 %v3542, %v3533
        %v3615 = vpack.c.b16 %v3543, %v3534
        %v3616 = vpack.c.b16 %v3544, %v3535
        %v3617 = vpack.c.b16 %v3545, %v3536
        %v3834 = vunpack.c.l.b16 %v3178
        %v3835 = vunpack.c.l.b16 %v3179
        %v3836 = vunpack.c.l.b16 %v3180
        %v3837 = vunpack.c.l.b16 %v3181
        %v3838 = vunpack.c.l.b16 %v3182
        %v3839 = vunpack.c.l.b16 %v3183
        %v3840 = vunpack.c.l.b16 %v3184
        %v3841 = vunpack.c.l.b16 %v3185
        %v3842 = vunpack.c.l.b16 %v3186
        %v3843 = vunpack.c.l.b16 %v3187
        %v3844 = vunpack.c.l.b16 %v3188
        %v3845 = vunpack.c.l.b16 %v3189
        %v3846 = vunpack.c.l.b16 %v3190
        %v3847 = vunpack.c.l.b16 %v3191
        %v3848 = vunpack.c.l.b16 %v3192
        %v3849 = vunpack.c.l.b16 %v3193
        %v3850 = vunpack.c.l.b16 %v3194
        %v3851 = vunpack.c.l.b16 %v3195
        %v3852 = vunpack.c.l.b16 %v3196
        %v3853 = vunpack.c.l.b16 %v3197
        %v3854 = vunpack.c.l.b16 %v3198
        %v3855 = vunpack.c.l.b16 %v3199
        %v3856 = vunpack.c.l.b16 %v3200
        %v3857 = vunpack.c.l.b16 %v3201
        %v3858 = vunpack.c.l.b16 %v3202
        %v3859 = vunpack.c.l.b16 %v3203
        %v3860 = vunpack.c.l.b16 %v3204
        %v3861 = vunpack.c.l.b16 %v3205
        %v3862 = vunpack.c.l.b16 %v3206
        %v3863 = vunpack.c.l.b16 %v3207
        %v3864 = vunpack.c.l.b16 %v3208
        %v3865 = vunpack.c.l.b16 %v3209
        %v3866 = vunpack.c.l.b16 %v3210
        %v3867 = vunpack.c.l.b16 %v3211
        %v3868 = vunpack.c.l.b16 %v3212
        %v3869 = vunpack.c.l.b16 %v3213
        %v3870 = vunpack.c.l.b16 %v3214
        %v3871 = vunpack.c.l.b16 %v3215
        %v3872 = vunpack.c.l.b16 %v3216
        %v3873 = vunpack.c.l.b16 %v3217
        %v3874 = vunpack.c.l.b16 %v3218
        %v3875 = vunpack.c.l.b16 %v3219
        %v3876 = vunpack.c.l.b16 %v3220
        %v3877 = vunpack.c.l.b16 %v3221
        %v3878 = vunpack.c.l.b16 %v3222
        %v3879 = vunpack.c.l.b16 %v3223
        %v3880 = vunpack.c.l.b16 %v3224
        %v3881 = vunpack.c.l.b16 %v3225
        %v3882 = vunpack.c.l.b16 %v3226
        %v3883 = vunpack.c.l.b16 %v3227
        %v3884 = vunpack.c.l.b16 %v3228
        %v3885 = vunpack.c.l.b16 %v3229
        %v3886 = vunpack.c.l.b16 %v3230
        %v3887 = vunpack.c.l.b16 %v3231
        %v3888 = vunpack.c.l.b16 %v3232
        %v3889 = vunpack.c.l.b16 %v3233
        %v3890 = vunpack.c.l.b16 %v3234
        %v3891 = vunpack.c.l.b16 %v3235
        %v3892 = vunpack.c.l.b16 %v3236
        %v3893 = vunpack.c.l.b16 %v3237
        %v3894 = vunpack.c.l.b16 %v3238
        %v3895 = vunpack.c.l.b16 %v3239
        %v3896 = vunpack.c.l.b16 %v3240
        %v3897 = vunpack.c.l.b16 %v3241
        %v3898 = vunpack.c.l.b16 %v3242
        %v3899 = vunpack.c.l.b16 %v3243
        %v3900 = vunpack.c.l.b16 %v3244
        %v3901 = vunpack.c.l.b16 %v3245
        %v3902 = vunpack.c.l.b16 %v3246
        %v3903 = vunpack.c.l.b16 %v3247
        %v3904 = vunpack.c.l.b16 %v3248
        %v3905 = vunpack.c.l.b16 %v3249
        %v3906 = vunpack.c.l.b16 %v3250
        %v3907 = vunpack.c.l.b16 %v3251
        %v3908 = vunpack.c.l.b16 %v3252
        %v3909 = vunpack.c.l.b16 %v3253
        %v3910 = vunpack.c.l.b16 %v3254
        %v3911 = vunpack.c.l.b16 %v3255
        %v3912 = vunpack.c.l.b16 %v3256
        %v3913 = vunpack.c.l.b16 %v3257
        %v3914 = vunpack.c.l.b16 %v3258
        %v3915 = vunpack.c.l.b16 %v3259
        %v3916 = vunpack.c.l.b16 %v3260
        %v3917 = vunpack.c.l.b16 %v3261
        %v3918 = vunpack.c.l.b16 %v3262
        %v3919 = vunpack.c.l.b16 %v3263
        %v3920 = vunpack.c.l.b16 %v3264
        %v3921 = vunpack.c.l.b16 %v3265
        %v3922 = vunpack.c.l.b16 %v3266
        %v3923 = vunpack.c.l.b16 %v3267
        %v3924 = vunpack.c.l.b16 %v3268
        %v3925 = vunpack.c.l.b16 %v3269
        %v3926 = vunpack.c.l.b16 %v3270
        %v3927 = vunpack.c.l.b16 %v3271
        %v3928 = vunpack.c.l.b16 %v3272
        %v3929 = vunpack.c.l.b16 %v3273
        %v3930 = vunpack.c.l.b16 %v3274
        %v3931 = vunpack.c.l.b16 %v3275
        %v3932 = vunpack.c.l.b16 %v3276
        %v3933 = vunpack.c.l.b16 %v3277
        %v3934 = vunpack.c.l.b16 %v3278
        %v3935 = vunpack.c.l.b16 %v3279
        %v3936 = vunpack.c.l.b16 %v3280
        %v3937 = vunpack.c.l.b16 %v3281
        %v3938 = vunpack.c.l.b16 %v3282
        %v3939 = vunpack.c.l.b16 %v3283
        %v3940 = vunpack.c.l.b16 %v3284
        %v3941 = vunpack.c.l.b16 %v3285
        %v3942 = vunpack.c.l.b16 %v3286
        %v3943 = vunpack.c.l.b16 %v3287
        %v3944 = vunpack.c.l.b16 %v3288
        %v3945 = vunpack.c.l.b16 %v3289
        %v3946 = vunpack.c.l.b16 %v3290
        %v3947 = vunpack.c.l.b16 %v3291
        %v3948 = vunpack.c.l.b16 %v3292
        %v3949 = vunpack.c.l.b16 %v3293
        %v3950 = vunpack.c.l.b16 %v3294
        %v3951 = vunpack.c.l.b16 %v3295
        %v3952 = vunpack.c.l.b16 %v3296
        %v3953 = vunpack.c.l.b16 %v3297
        %v3954 = vunpack.c.l.b16 %v3298
        %v3955 = vunpack.c.l.b16 %v3299
        %v3956 = vunpack.c.l.b16 %v3300
        %v3957 = vunpack.c.l.b16 %v3301
        %v3958 = vunpack.c.l.b16 %v3302
        %v3959 = vunpack.c.l.b16 %v3303
        %v3960 = vunpack.c.l.b16 %v3304
        %v3961 = vunpack.c.l.b16 %v3305
        %v3962 = vunpack.c.l.b16 %v3306
        %v3963 = vunpack.c.l.b16 %v3307
        %v3964 = vunpack.c.l.b16 %v3308
        %v3965 = vunpack.c.l.b16 %v3309
        %v3966 = vunpack.c.l.b16 %v3310
        %v3967 = vunpack.c.l.b16 %v3311
        %v3968 = vunpack.c.l.b16 %v3312
        %v3969 = vunpack.c.l.b16 %v3313
        %v3970 = vunpack.c.l.b16 %v3314
        %v3971 = vunpack.c.l.b16 %v3315
        %v3972 = vunpack.c.l.b16 %v3316
        %v3973 = vunpack.c.l.b16 %v3317
        %v3974 = vunpack.c.l.b16 %v3318
        %v3975 = vunpack.c.l.b16 %v3319
        %v3976 = vunpack.c.l.b16 %v3320
        %v3977 = vunpack.c.l.b16 %v3321
        %v3978 = vpack.c.b16 %v3835, %v3834
        %v3979 = vpack.c.b16 %v3837, %v3836
        %v3980 = vpack.c.b16 %v3839, %v3838
        %v3981 = vpack.c.b16 %v3841, %v3840
        %v3982 = vpack.c.b16 %v3843, %v3842
        %v3983 = vpack.c.b16 %v3845, %v3844
        %v3984 = vpack.c.b16 %v3847, %v3846
        %v3985 = vpack.c.b16 %v3849, %v3848
        %v3986 = vpack.c.b16 %v3851, %v3850
        %v3987 = vpack.c.b16 %v3853, %v3852
        %v3988 = vpack.c.b16 %v3855, %v3854
        %v3989 = vpack.c.b16 %v3857, %v3856
        %v3990 = vpack.c.b16 %v3859, %v3858
        %v3991 = vpack.c.b16 %v3861, %v3860
        %v3992 = vpack.c.b16 %v3863, %v3862
        %v3993 = vpack.c.b16 %v3865, %v3864
        %v3994 = vpack.c.b16 %v3867, %v3866
        %v3995 = vpack.c.b16 %v3869, %v3868
        %v3996 = vpack.c.b16 %v3871, %v3870
        %v3997 = vpack.c.b16 %v3873, %v3872
        %v3998 = vpack.c.b16 %v3875, %v3874
        %v3999 = vpack.c.b16 %v3877, %v3876
        %v4000 = vpack.c.b16 %v3879, %v3878
        %v4001 = vpack.c.b16 %v3881, %v3880
        %v4002 = vpack.c.b16 %v3883, %v3882
        %v4003 = vpack.c.b16 %v3885, %v3884
        %v4004 = vpack.c.b16 %v3887, %v3886
        %v4005 = vpack.c.b16 %v3889, %v3888
        %v4006 = vpack.c.b16 %v3891, %v3890
        %v4007 = vpack.c.b16 %v3893, %v3892
        %v4008 = vpack.c.b16 %v3895, %v3894
        %v4009 = vpack.c.b16 %v3897, %v3896
        %v4010 = vpack.c.b16 %v3899, %v3898
        %v4011 = vpack.c.b16 %v3901, %v3900
        %v4012 = vpack.c.b16 %v3903, %v3902
        %v4013 = vpack.c.b16 %v3905, %v3904
        %v4014 = vpack.c.b16 %v3907, %v3906
        %v4015 = vpack.c.b16 %v3909, %v3908
        %v4016 = vpack.c.b16 %v3911, %v3910
        %v4017 = vpack.c.b16 %v3913, %v3912
        %v4018 = vpack.c.b16 %v3915, %v3914
        %v4019 = vpack.c.b16 %v3917, %v3916
        %v4020 = vpack.c.b16 %v3919, %v3918
        %v4021 = vpack.c.b16 %v3921, %v3920
        %v4022 = vpack.c.b16 %v3923, %v3922
        %v4023 = vpack.c.b16 %v3925, %v3924
        %v4024 = vpack.c.b16 %v3927, %v3926
        %v4025 = vpack.c.b16 %v3929, %v3928
        %v4026 = vpack.c.b16 %v3931, %v3930
        %v4027 = vpack.c.b16 %v3933, %v3932
        %v4028 = vpack.c.b16 %v3935, %v3934
        %v4029 = vpack.c.b16 %v3937, %v3936
        %v4030 = vpack.c.b16 %v3939, %v3938
        %v4031 = vpack.c.b16 %v3941, %v3940
        %v4032 = vpack.c.b16 %v3943, %v3942
        %v4033 = vpack.c.b16 %v3945, %v3944
        %v4034 = vpack.c.b16 %v3947, %v3946
        %v4035 = vpack.c.b16 %v3949, %v3948
        %v4036 = vpack.c.b16 %v3951, %v3950
        %v4037 = vpack.c.b16 %v3953, %v3952
        %v4038 = vpack.c.b16 %v3955, %v3954
        %v4039 = vpack.c.b16 %v3957, %v3956
        %v4040 = vpack.c.b16 %v3959, %v3958
        %v4041 = vpack.c.b16 %v3961, %v3960
        %v4042 = vpack.c.b16 %v3963, %v3962
        %v4043 = vpack.c.b16 %v3965, %v3964
        %v4044 = vpack.c.b16 %v3967, %v3966
        %v4045 = vpack.c.b16 %v3969, %v3968
        %v4046 = vpack.c.b16 %v3971, %v3970
        %v4047 = vpack.c.b16 %v3973, %v3972
        %v4048 = vpack.c.b16 %v3975, %v3974
        %v4049 = vpack.c.b16 %v3977, %v3976
        %4122 = vmatprep.subr.bf16.mxu0 0
        %4123 = vmatpush1.bf16.msra.mxu0 %v3985
        %4124 = vmatprep.subr.bf16.mxu0 0
        %4125 = vmatpush1.bf16.msra.mxu0 %v3984
        %4126 = vmatprep.subr.bf16.mxu0 0
        %4127 = vmatpush1.bf16.msra.mxu0 %v3983
        %4128 = vmatprep.subr.bf16.mxu0 0
        %4129 = vmatpush1.bf16.msra.mxu0 %v3982
        %4130 = vmatprep.subr.bf16.mxu0 0
        %4131 = vmatpush1.bf16.msra.mxu0 %v3981
        %4132 = vmatprep.subr.bf16.mxu0 0
        %4133 = vmatpush1.bf16.msra.mxu0 %v3980
        %4134 = vmatprep.subr.bf16.mxu0 0
        %4135 = vmatpush1.bf16.msra.mxu0 %v3979
        %4136 = vmatprep.subr.bf16.mxu0 0
        %4137 = vmatpush1.bf16.msra.mxu0 %v3978
        %4138 = vmatprep.subr.bf16.mxu0 0
        %4139 = vmatpush2.bf16.msra.mxu0 %v3993
        %4140 = vmatprep.subr.bf16.mxu0 0
        %4141 = vmatpush2.bf16.msra.mxu0 %v3992
        %4142 = vmatprep.subr.bf16.mxu0 0
        %4143 = vmatpush2.bf16.msra.mxu0 %v3991
        %4144 = vmatprep.subr.bf16.mxu0 0
        %4145 = vmatpush2.bf16.msra.mxu0 %v3990
        %4146 = vmatprep.subr.bf16.mxu0 0
        %4147 = vmatpush2.bf16.msra.mxu0 %v3989
        %4148 = vmatprep.subr.bf16.mxu0 0
        %4149 = vmatpush2.bf16.msra.mxu0 %v3988
        %4150 = vmatprep.subr.bf16.mxu0 0
        %4151 = vmatpush2.bf16.msra.mxu0 %v3987
        %4152 = vmatprep.subr.bf16.mxu0 0
        %4153 = vmatpush2.bf16.msra.mxu0 %v3986
        %4154 = vmatprep.mubr.bf16.mxu0 %v3547
        %4155 = vmatmul.mubr.bf16.gmra.mxu0 %v3546
        %v4156 = vpop.f32.mrf.mxu0
        %v4157 = vadd.f32 0.0, %v4156
        %v4158 = vpop.f32.mrf.mxu0
        %v4159 = vpop.f32.mrf.mxu0
        %v4160 = vadd.f32 0.0, %v4159
        %v4161 = vpop.f32.mrf.mxu0
        %4162 = vmatprep.mubr.bf16.mxu0 %v3556
        %4163 = vmatmul.mubr.bf16.gmra.mxu0 %v3555
        %v4164 = vpop.f32.mrf.mxu0
        %v4165 = vadd.f32 0.0, %v4164
        %v4166 = vpop.f32.mrf.mxu0
        %v4167 = vpop.f32.mrf.mxu0
        %v4168 = vadd.f32 0.0, %v4167
        %v4169 = vpop.f32.mrf.mxu0
        %4170 = vmatprep.mubr.bf16.mxu0 %v3565
        %4171 = vmatmul.mubr.bf16.gmra.mxu0 %v3564
        %v4172 = vpop.f32.mrf.mxu0
        %v4173 = vadd.f32 0.0, %v4172
        %v4174 = vpop.f32.mrf.mxu0
        %v4175 = vpop.f32.mrf.mxu0
        %v4176 = vadd.f32 0.0, %v4175
        %v4177 = vpop.f32.mrf.mxu0
        %4178 = vmatprep.mubr.bf16.mxu0 %v3574
        %4179 = vmatmul.mubr.bf16.gmra.mxu0 %v3573
        %v4180 = vpop.f32.mrf.mxu0
        %v4181 = vadd.f32 0.0, %v4180
        %v4182 = vpop.f32.mrf.mxu0
        %v4183 = vpop.f32.mrf.mxu0
        %v4184 = vadd.f32 0.0, %v4183
        %v4185 = vpop.f32.mrf.mxu0
        %4186 = vmatprep.mubr.bf16.mxu0 %v3583
        %4187 = vmatmul.mubr.bf16.gmra.mxu0 %v3582
        %v4188 = vpop.f32.mrf.mxu0
        %v4189 = vadd.f32 0.0, %v4188
        %v4190 = vpop.f32.mrf.mxu0
        %v4191 = vpop.f32.mrf.mxu0
        %v4192 = vadd.f32 0.0, %v4191
        %v4193 = vpop.f32.mrf.mxu0
        %4194 = vmatprep.mubr.bf16.mxu0 %v3592
        %4195 = vmatmul.mubr.bf16.gmra.mxu0 %v3591
        %v4196 = vpop.f32.mrf.mxu0
        %v4197 = vadd.f32 0.0, %v4196
        %v4198 = vpop.f32.mrf.mxu0
        %v4199 = vpop.f32.mrf.mxu0
        %v4200 = vadd.f32 0.0, %v4199
        %v4201 = vpop.f32.mrf.mxu0
        %4202 = vmatprep.mubr.bf16.mxu0 %v3601
        %4203 = vmatmul.mubr.bf16.gmra.mxu0 %v3600
        %v4204 = vpop.f32.mrf.mxu0
        %v4205 = vadd.f32 0.0, %v4204
        %v4206 = vpop.f32.mrf.mxu0
        %v4207 = vpop.f32.mrf.mxu0
        %v4208 = vadd.f32 0.0, %v4207
        %v4209 = vpop.f32.mrf.mxu0
        %4210 = vmatprep.mubr.bf16.mxu0 %v3610
        %4211 = vmatmul.mubr.bf16.gmra.mxu0 %v3609
        %v4212 = vpop.f32.mrf.mxu0
        %v4213 = vadd.f32 0.0, %v4212
        %v4214 = vpop.f32.mrf.mxu0
        %v4215 = vpop.f32.mrf.mxu0
        %v4216 = vadd.f32 0.0, %v4215
        %v4217 = vpop.f32.mrf.mxu0
        %4218 = vdwg.mxu0
        %4219 = vmatprep.subr.bf16.mxu0 0
        %4220 = vmatpush1.bf16.msra.mxu0 %v4001
        %4221 = vmatprep.subr.bf16.mxu0 0
        %4222 = vmatpush1.bf16.msra.mxu0 %v4000
        %4223 = vmatprep.subr.bf16.mxu0 0
        %4224 = vmatpush1.bf16.msra.mxu0 %v3999
        %4225 = vmatprep.subr.bf16.mxu0 0
        %4226 = vmatpush1.bf16.msra.mxu0 %v3998
        %4227 = vmatprep.subr.bf16.mxu0 0
        %4228 = vmatpush1.bf16.msra.mxu0 %v3997
        %4229 = vmatprep.subr.bf16.mxu0 0
        %4230 = vmatpush1.bf16.msra.mxu0 %v3996
        %4231 = vmatprep.subr.bf16.mxu0 0
        %4232 = vmatpush1.bf16.msra.mxu0 %v3995
        %4233 = vmatprep.subr.bf16.mxu0 0
        %4234 = vmatpush1.bf16.msra.mxu0 %v3994
        %4235 = vmatprep.subr.bf16.mxu0 0
        %4236 = vmatpush2.bf16.msra.mxu0 %v4009
        %4237 = vmatprep.subr.bf16.mxu0 0
        %4238 = vmatpush2.bf16.msra.mxu0 %v4008
        %4239 = vmatprep.subr.bf16.mxu0 0
        %4240 = vmatpush2.bf16.msra.mxu0 %v4007
        %4241 = vmatprep.subr.bf16.mxu0 0
        %4242 = vmatpush2.bf16.msra.mxu0 %v4006
        %4243 = vmatprep.subr.bf16.mxu0 0
        %4244 = vmatpush2.bf16.msra.mxu0 %v4005
        %4245 = vmatprep.subr.bf16.mxu0 0
        %4246 = vmatpush2.bf16.msra.mxu0 %v4004
        %4247 = vmatprep.subr.bf16.mxu0 0
        %4248 = vmatpush2.bf16.msra.mxu0 %v4003
        %4249 = vmatprep.subr.bf16.mxu0 0
        %4250 = vmatpush2.bf16.msra.mxu0 %v4002
        %4251 = vmatprep.mubr.bf16.mxu0 %v3549
        %4252 = vmatmul.mubr.bf16.gmra.mxu0 %v3548
        %v4253 = vpop.f32.mrf.mxu0
        %v4254 = vadd.f32 %v4157, %v4253
        %v4255 = vpop.f32.mrf.mxu0
        %v4256 = vpop.f32.mrf.mxu0
        %v4257 = vadd.f32 %v4160, %v4256
        %v4258 = vpop.f32.mrf.mxu0
        %4259 = vmatprep.mubr.bf16.mxu0 %v3558
        %4260 = vmatmul.mubr.bf16.gmra.mxu0 %v3557
        %v4261 = vpop.f32.mrf.mxu0
        %v4262 = vadd.f32 %v4165, %v4261
        %v4263 = vpop.f32.mrf.mxu0
        %v4264 = vpop.f32.mrf.mxu0
        %v4265 = vadd.f32 %v4168, %v4264
        %v4266 = vpop.f32.mrf.mxu0
        %4267 = vmatprep.mubr.bf16.mxu0 %v3567
        %4268 = vmatmul.mubr.bf16.gmra.mxu0 %v3566
        %v4269 = vpop.f32.mrf.mxu0
        %v4270 = vadd.f32 %v4173, %v4269
        %v4271 = vpop.f32.mrf.mxu0
        %v4272 = vpop.f32.mrf.mxu0
        %v4273 = vadd.f32 %v4176, %v4272
        %v4274 = vpop.f32.mrf.mxu0
        %4275 = vmatprep.mubr.bf16.mxu0 %v3576
        %4276 = vmatmul.mubr.bf16.gmra.mxu0 %v3575
        %v4277 = vpop.f32.mrf.mxu0
        %v4278 = vadd.f32 %v4181, %v4277
        %v4279 = vpop.f32.mrf.mxu0
        %v4280 = vpop.f32.mrf.mxu0
        %v4281 = vadd.f32 %v4184, %v4280
        %v4282 = vpop.f32.mrf.mxu0
        %4283 = vmatprep.mubr.bf16.mxu0 %v3585
        %4284 = vmatmul.mubr.bf16.gmra.mxu0 %v3584
        %v4285 = vpop.f32.mrf.mxu0
        %v4286 = vadd.f32 %v4189, %v4285
        %v4287 = vpop.f32.mrf.mxu0
        %v4288 = vpop.f32.mrf.mxu0
        %v4289 = vadd.f32 %v4192, %v4288
        %v4290 = vpop.f32.mrf.mxu0
        %4291 = vmatprep.mubr.bf16.mxu0 %v3594
        %4292 = vmatmul.mubr.bf16.gmra.mxu0 %v3593
        %v4293 = vpop.f32.mrf.mxu0
        %v4294 = vadd.f32 %v4197, %v4293
        %v4295 = vpop.f32.mrf.mxu0
        %v4296 = vpop.f32.mrf.mxu0
        %v4297 = vadd.f32 %v4200, %v4296
        %v4298 = vpop.f32.mrf.mxu0
        %4299 = vmatprep.mubr.bf16.mxu0 %v3603
        %4300 = vmatmul.mubr.bf16.gmra.mxu0 %v3602
        %v4301 = vpop.f32.mrf.mxu0
        %v4302 = vadd.f32 %v4205, %v4301
        %v4303 = vpop.f32.mrf.mxu0
        %v4304 = vpop.f32.mrf.mxu0
        %v4305 = vadd.f32 %v4208, %v4304
        %v4306 = vpop.f32.mrf.mxu0
        %4307 = vmatprep.mubr.bf16.mxu0 %v3612
        %4308 = vmatmul.mubr.bf16.gmra.mxu0 %v3611
        %v4309 = vpop.f32.mrf.mxu0
        %v4310 = vadd.f32 %v4213, %v4309
        %v4311 = vpop.f32.mrf.mxu0
        %v4312 = vpop.f32.mrf.mxu0
        %v4313 = vadd.f32 %v4216, %v4312
        %v4314 = vpop.f32.mrf.mxu0
        %4315 = vdwg.mxu0
        %4316 = vmatprep.subr.bf16.mxu0 0
        %4317 = vmatpush1.bf16.msra.mxu0 %v4017
        %4318 = vmatprep.subr.bf16.mxu0 0
        %4319 = vmatpush1.bf16.msra.mxu0 %v4016
        %4320 = vmatprep.subr.bf16.mxu0 0
        %4321 = vmatpush1.bf16.msra.mxu0 %v4015
        %4322 = vmatprep.subr.bf16.mxu0 0
        %4323 = vmatpush1.bf16.msra.mxu0 %v4014
        %4324 = vmatprep.subr.bf16.mxu0 0
        %4325 = vmatpush1.bf16.msra.mxu0 %v4013
        %4326 = vmatprep.subr.bf16.mxu0 0
        %4327 = vmatpush1.bf16.msra.mxu0 %v4012
        %4328 = vmatprep.subr.bf16.mxu0 0
        %4329 = vmatpush1.bf16.msra.mxu0 %v4011
        %4330 = vmatprep.subr.bf16.mxu0 0
        %4331 = vmatpush1.bf16.msra.mxu0 %v4010
        %4332 = vmatprep.subr.bf16.mxu0 0
        %4333 = vmatpush2.bf16.msra.mxu0 %v4025
        %4334 = vmatprep.subr.bf16.mxu0 0
        %4335 = vmatpush2.bf16.msra.mxu0 %v4024
        %4336 = vmatprep.subr.bf16.mxu0 0
        %4337 = vmatpush2.bf16.msra.mxu0 %v4023
        %4338 = vmatprep.subr.bf16.mxu0 0
        %4339 = vmatpush2.bf16.msra.mxu0 %v4022
        %4340 = vmatprep.subr.bf16.mxu0 0
        %4341 = vmatpush2.bf16.msra.mxu0 %v4021
        %4342 = vmatprep.subr.bf16.mxu0 0
        %4343 = vmatpush2.bf16.msra.mxu0 %v4020
        %4344 = vmatprep.subr.bf16.mxu0 0
        %4345 = vmatpush2.bf16.msra.mxu0 %v4019
        %4346 = vmatprep.subr.bf16.mxu0 0
        %4347 = vmatpush2.bf16.msra.mxu0 %v4018
        %4348 = vmatprep.mubr.bf16.mxu0 %v3551
        %4349 = vmatmul.mubr.bf16.gmra.mxu0 %v3550
        %v4350 = vpop.f32.mrf.mxu0
        %v4351 = vadd.f32 %v4254, %v4350
        %v4352 = vpop.f32.mrf.mxu0
        %v4353 = vpop.f32.mrf.mxu0
        %v4354 = vadd.f32 %v4257, %v4353
        %v4355 = vpop.f32.mrf.mxu0
        %4356 = vmatprep.mubr.bf16.mxu0 %v3560
        %4357 = vmatmul.mubr.bf16.gmra.mxu0 %v3559
        %v4358 = vpop.f32.mrf.mxu0
        %v4359 = vadd.f32 %v4262, %v4358
        %v4360 = vpop.f32.mrf.mxu0
        %v4361 = vpop.f32.mrf.mxu0
        %v4362 = vadd.f32 %v4265, %v4361
        %v4363 = vpop.f32.mrf.mxu0
        %4364 = vmatprep.mubr.bf16.mxu0 %v3569
        %4365 = vmatmul.mubr.bf16.gmra.mxu0 %v3568
        %v4366 = vpop.f32.mrf.mxu0
        %v4367 = vadd.f32 %v4270, %v4366
        %v4368 = vpop.f32.mrf.mxu0
        %v4369 = vpop.f32.mrf.mxu0
        %v4370 = vadd.f32 %v4273, %v4369
        %v4371 = vpop.f32.mrf.mxu0
        %4372 = vmatprep.mubr.bf16.mxu0 %v3578
        %4373 = vmatmul.mubr.bf16.gmra.mxu0 %v3577
        %v4374 = vpop.f32.mrf.mxu0
        %v4375 = vadd.f32 %v4278, %v4374
        %v4376 = vpop.f32.mrf.mxu0
        %v4377 = vpop.f32.mrf.mxu0
        %v4378 = vadd.f32 %v4281, %v4377
        %v4379 = vpop.f32.mrf.mxu0
        %4380 = vmatprep.mubr.bf16.mxu0 %v3587
        %4381 = vmatmul.mubr.bf16.gmra.mxu0 %v3586
        %v4382 = vpop.f32.mrf.mxu0
        %v4383 = vadd.f32 %v4286, %v4382
        %v4384 = vpop.f32.mrf.mxu0
        %v4385 = vpop.f32.mrf.mxu0
        %v4386 = vadd.f32 %v4289, %v4385
        %v4387 = vpop.f32.mrf.mxu0
        %4388 = vmatprep.mubr.bf16.mxu0 %v3596
        %4389 = vmatmul.mubr.bf16.gmra.mxu0 %v3595
        %v4390 = vpop.f32.mrf.mxu0
        %v4391 = vadd.f32 %v4294, %v4390
        %v4392 = vpop.f32.mrf.mxu0
        %v4393 = vpop.f32.mrf.mxu0
        %v4394 = vadd.f32 %v4297, %v4393
        %v4395 = vpop.f32.mrf.mxu0
        %4396 = vmatprep.mubr.bf16.mxu0 %v3605
        %4397 = vmatmul.mubr.bf16.gmra.mxu0 %v3604
        %v4398 = vpop.f32.mrf.mxu0
        %v4399 = vadd.f32 %v4302, %v4398
        %v4400 = vpop.f32.mrf.mxu0
        %v4401 = vpop.f32.mrf.mxu0
        %v4402 = vadd.f32 %v4305, %v4401
        %v4403 = vpop.f32.mrf.mxu0
        %4404 = vmatprep.mubr.bf16.mxu0 %v3614
        %4405 = vmatmul.mubr.bf16.gmra.mxu0 %v3613
        %v4406 = vpop.f32.mrf.mxu0
        %v4407 = vadd.f32 %v4310, %v4406
        %v4408 = vpop.f32.mrf.mxu0
        %v4409 = vpop.f32.mrf.mxu0
        %v4410 = vadd.f32 %v4313, %v4409
        %v4411 = vpop.f32.mrf.mxu0
        %4412 = vdwg.mxu0
        %4413 = vmatprep.subr.bf16.mxu0 0
        %4414 = vmatpush1.bf16.msra.mxu0 %v4033
        %4415 = vmatprep.subr.bf16.mxu0 0
        %4416 = vmatpush1.bf16.msra.mxu0 %v4032
        %4417 = vmatprep.subr.bf16.mxu0 0
        %4418 = vmatpush1.bf16.msra.mxu0 %v4031
        %4419 = vmatprep.subr.bf16.mxu0 0
        %4420 = vmatpush1.bf16.msra.mxu0 %v4030
        %4421 = vmatprep.subr.bf16.mxu0 0
        %4422 = vmatpush1.bf16.msra.mxu0 %v4029
        %4423 = vmatprep.subr.bf16.mxu0 0
        %4424 = vmatpush1.bf16.msra.mxu0 %v4028
        %4425 = vmatprep.subr.bf16.mxu0 0
        %4426 = vmatpush1.bf16.msra.mxu0 %v4027
        %4427 = vmatprep.subr.bf16.mxu0 0
        %4428 = vmatpush1.bf16.msra.mxu0 %v4026
        %4429 = vmatprep.subr.bf16.mxu0 0
        %4430 = vmatpush2.bf16.msra.mxu0 %v4041
        %4431 = vmatprep.subr.bf16.mxu0 0
        %4432 = vmatpush2.bf16.msra.mxu0 %v4040
        %4433 = vmatprep.subr.bf16.mxu0 0
        %4434 = vmatpush2.bf16.msra.mxu0 %v4039
        %4435 = vmatprep.subr.bf16.mxu0 0
        %4436 = vmatpush2.bf16.msra.mxu0 %v4038
        %4437 = vmatprep.subr.bf16.mxu0 0
        %4438 = vmatpush2.bf16.msra.mxu0 %v4037
        %4439 = vmatprep.subr.bf16.mxu0 0
        %4440 = vmatpush2.bf16.msra.mxu0 %v4036
        %4441 = vmatprep.subr.bf16.mxu0 0
        %4442 = vmatpush2.bf16.msra.mxu0 %v4035
        %4443 = vmatprep.subr.bf16.mxu0 0
        %4444 = vmatpush2.bf16.msra.mxu0 %v4034
        %4445 = vmatprep.mubr.bf16.mxu0 %v3553
        %4446 = vmatmul.mubr.bf16.gmra.mxu0 %v3552
        %v4447 = vpop.f32.mrf.mxu0
        %v4448 = vadd.f32 %v4351, %v4447
        %v4449 = vpop.f32.mrf.mxu0
        %v4450 = vpop.f32.mrf.mxu0
        %v4451 = vadd.f32 %v4354, %v4450
        %v4452 = vpop.f32.mrf.mxu0
        %4453 = vmatprep.mubr.bf16.mxu0 %v3562
        %4454 = vmatmul.mubr.bf16.gmra.mxu0 %v3561
        %v4455 = vpop.f32.mrf.mxu0
        %v4456 = vadd.f32 %v4359, %v4455
        %v4457 = vpop.f32.mrf.mxu0
        %v4458 = vpop.f32.mrf.mxu0
        %v4459 = vadd.f32 %v4362, %v4458
        %v4460 = vpop.f32.mrf.mxu0
        %4461 = vmatprep.mubr.bf16.mxu0 %v3571
        %4462 = vmatmul.mubr.bf16.gmra.mxu0 %v3570
        %v4463 = vpop.f32.mrf.mxu0
        %v4464 = vadd.f32 %v4367, %v4463
        %v4465 = vpop.f32.mrf.mxu0
        %v4466 = vpop.f32.mrf.mxu0
        %v4467 = vadd.f32 %v4370, %v4466
        %v4468 = vpop.f32.mrf.mxu0
        %4469 = vmatprep.mubr.bf16.mxu0 %v3580
        %4470 = vmatmul.mubr.bf16.gmra.mxu0 %v3579
        %v4471 = vpop.f32.mrf.mxu0
        %v4472 = vadd.f32 %v4375, %v4471
        %v4473 = vpop.f32.mrf.mxu0
        %v4474 = vpop.f32.mrf.mxu0
        %v4475 = vadd.f32 %v4378, %v4474
        %v4476 = vpop.f32.mrf.mxu0
        %4477 = vmatprep.mubr.bf16.mxu0 %v3589
        %4478 = vmatmul.mubr.bf16.gmra.mxu0 %v3588
        %v4479 = vpop.f32.mrf.mxu0
        %v4480 = vadd.f32 %v4383, %v4479
        %v4481 = vpop.f32.mrf.mxu0
        %v4482 = vpop.f32.mrf.mxu0
        %v4483 = vadd.f32 %v4386, %v4482
        %v4484 = vpop.f32.mrf.mxu0
        %4485 = vmatprep.mubr.bf16.mxu0 %v3598
        %4486 = vmatmul.mubr.bf16.gmra.mxu0 %v3597
        %v4487 = vpop.f32.mrf.mxu0
        %v4488 = vadd.f32 %v4391, %v4487
        %v4489 = vpop.f32.mrf.mxu0
        %v4490 = vpop.f32.mrf.mxu0
        %v4491 = vadd.f32 %v4394, %v4490
        %v4492 = vpop.f32.mrf.mxu0
        %4493 = vmatprep.mubr.bf16.mxu0 %v3607
        %4494 = vmatmul.mubr.bf16.gmra.mxu0 %v3606
        %v4495 = vpop.f32.mrf.mxu0
        %v4496 = vadd.f32 %v4399, %v4495
        %v4497 = vpop.f32.mrf.mxu0
        %v4498 = vpop.f32.mrf.mxu0
        %v4499 = vadd.f32 %v4402, %v4498
        %v4500 = vpop.f32.mrf.mxu0
        %4501 = vmatprep.mubr.bf16.mxu0 %v3616
        %4502 = vmatmul.mubr.bf16.gmra.mxu0 %v3615
        %v4503 = vpop.f32.mrf.mxu0
        %v4504 = vadd.f32 %v4407, %v4503
        %v4505 = vpop.f32.mrf.mxu0
        %v4506 = vpop.f32.mrf.mxu0
        %v4507 = vadd.f32 %v4410, %v4506
        %v4508 = vpop.f32.mrf.mxu0
        %4509 = vdwg.mxu0
        %4510 = vmatprep.subr.bf16.mxu0 0
        %4511 = vmatpush1.bf16.msra.mxu0 %v4049
        %4512 = vmatprep.subr.bf16.mxu0 0
        %4513 = vmatpush1.bf16.msra.mxu0 %v4048
        %4514 = vmatprep.subr.bf16.mxu0 0
        %4515 = vmatpush1.bf16.msra.mxu0 %v4047
        %4516 = vmatprep.subr.bf16.mxu0 0
        %4517 = vmatpush1.bf16.msra.mxu0 %v4046
        %4518 = vmatprep.subr.bf16.mxu0 0
        %4519 = vmatpush1.bf16.msra.mxu0 %v4045
        %4520 = vmatprep.subr.bf16.mxu0 0
        %4521 = vmatpush1.bf16.msra.mxu0 %v4044
        %4522 = vmatprep.subr.bf16.mxu0 0
        %4523 = vmatpush1.bf16.msra.mxu0 %v4043
        %4524 = vmatprep.subr.bf16.mxu0 0
        %4525 = vmatpush1.bf16.msra.mxu0 %v4042
        %4526 = vmatprep.subr.bf16.mxu0 0
        %4527 = vmatpush2.bf16.msra.mxu0 0
        %4528 = vmatprep.subr.bf16.mxu0 0
        %4529 = vmatpush2.bf16.msra.mxu0 0
        %4530 = vmatprep.subr.bf16.mxu0 0
        %4531 = vmatpush2.bf16.msra.mxu0 0
        %4532 = vmatprep.subr.bf16.mxu0 0
        %4533 = vmatpush2.bf16.msra.mxu0 0
        %4534 = vmatprep.subr.bf16.mxu0 0
        %4535 = vmatpush2.bf16.msra.mxu0 0
        %4536 = vmatprep.subr.bf16.mxu0 0
        %4537 = vmatpush2.bf16.msra.mxu0 0
        %4538 = vmatprep.subr.bf16.mxu0 0
        %4539 = vmatpush2.bf16.msra.mxu0 0
        %4540 = vmatprep.subr.bf16.mxu0 0
        %4541 = vmatpush2.bf16.msra.mxu0 0
        %4542 = vmatprep.mubr.bf16.mxu0 0
        %4543 = vmatmul.mubr.bf16.gmra.mxu0 %v3554
        %v4544 = vpop.f32.mrf.mxu0
        %v4545 = vadd.f32 %v4448, %v4544
        %v4546 = vpop.f32.mrf.mxu0
        %v4547 = vpop.f32.mrf.mxu0
        %v4548 = vadd.f32 %v4451, %v4547
        %v4549 = vpop.f32.mrf.mxu0
        %4550 = vmatprep.mubr.bf16.mxu0 0
        %4551 = vmatmul.mubr.bf16.gmra.mxu0 %v3563
        %v4552 = vpop.f32.mrf.mxu0
        %v4553 = vadd.f32 %v4456, %v4552
        %v4554 = vpop.f32.mrf.mxu0
        %v4555 = vpop.f32.mrf.mxu0
        %v4556 = vadd.f32 %v4459, %v4555
        %v4557 = vpop.f32.mrf.mxu0
        %4558 = vmatprep.mubr.bf16.mxu0 0
        %4559 = vmatmul.mubr.bf16.gmra.mxu0 %v3572
        %v4560 = vpop.f32.mrf.mxu0
        %v4561 = vadd.f32 %v4464, %v4560
        %v4562 = vpop.f32.mrf.mxu0
        %v4563 = vpop.f32.mrf.mxu0
        %v4564 = vadd.f32 %v4467, %v4563
        %v4565 = vpop.f32.mrf.mxu0
        %4566 = vmatprep.mubr.bf16.mxu0 0
        %4567 = vmatmul.mubr.bf16.gmra.mxu0 %v3581
        %v4568 = vpop.f32.mrf.mxu0
        %v4569 = vadd.f32 %v4472, %v4568
        %v4570 = vpop.f32.mrf.mxu0
        %v4571 = vpop.f32.mrf.mxu0
        %v4572 = vadd.f32 %v4475, %v4571
        %v4573 = vpop.f32.mrf.mxu0
        %4574 = vmatprep.mubr.bf16.mxu0 0
        %4575 = vmatmul.mubr.bf16.gmra.mxu0 %v3590
        %v4576 = vpop.f32.mrf.mxu0
        %v4577 = vadd.f32 %v4480, %v4576
        %v4578 = vpop.f32.mrf.mxu0
        %v4579 = vpop.f32.mrf.mxu0
        %v4580 = vadd.f32 %v4483, %v4579
        %v4581 = vpop.f32.mrf.mxu0
        %4582 = vmatprep.mubr.bf16.mxu0 0
        %4583 = vmatmul.mubr.bf16.gmra.mxu0 %v3599
        %v4584 = vpop.f32.mrf.mxu0
        %v4585 = vadd.f32 %v4488, %v4584
        %v4586 = vpop.f32.mrf.mxu0
        %v4587 = vpop.f32.mrf.mxu0
        %v4588 = vadd.f32 %v4491, %v4587
        %v4589 = vpop.f32.mrf.mxu0
        %4590 = vmatprep.mubr.bf16.mxu0 0
        %4591 = vmatmul.mubr.bf16.gmra.mxu0 %v3608
        %v4592 = vpop.f32.mrf.mxu0
        %v4593 = vadd.f32 %v4496, %v4592
        %v4594 = vpop.f32.mrf.mxu0
        %v4595 = vpop.f32.mrf.mxu0
        %v4596 = vadd.f32 %v4499, %v4595
        %v4597 = vpop.f32.mrf.mxu0
        %4598 = vmatprep.mubr.bf16.mxu0 0
        %4599 = vmatmul.mubr.bf16.gmra.mxu0 %v3617
        %v4600 = vpop.f32.mrf.mxu0
        %v4601 = vadd.f32 %v4504, %v4600
        %v4602 = vpop.f32.mrf.mxu0
        %v4603 = vpop.f32.mrf.mxu0
        %v4604 = vadd.f32 %v4507, %v4603
        %v4605 = vpop.f32.mrf.mxu0
        %4606 = vdwg.mxu0
        %v4623 = vunpack.c.l.b16 %v3066
        %v4624 = vunpack.c.l.b16 %v3067
        %v4625 = vunpack.c.l.b16 %v3068
        %v4626 = vunpack.c.l.b16 %v3069
        %v4627 = vunpack.c.l.b16 %v3070
        %v4628 = vunpack.c.l.b16 %v3071
        %v4629 = vunpack.c.l.b16 %v3072
        %v4630 = vunpack.c.l.b16 %v3073
        %v4631 = vunpack.c.l.b16 %v3074
        %v4632 = vunpack.c.l.b16 %v3075
        %v4633 = vunpack.c.l.b16 %v3076
        %v4634 = vunpack.c.l.b16 %v3077
        %v4635 = vunpack.c.l.b16 %v3078
        %v4636 = vunpack.c.l.b16 %v3079
        %v4637 = vunpack.c.l.b16 %v3080
        %v4638 = vunpack.c.l.b16 %v3081
        %v4639 = vpack.c.b16 %v4624, %v4623
        %v4640 = vpack.c.b16 %v4626, %v4625
        %v4641 = vpack.c.b16 %v4628, %v4627
        %v4642 = vpack.c.b16 %v4630, %v4629
        %v4643 = vpack.c.b16 %v4632, %v4631
        %v4644 = vpack.c.b16 %v4634, %v4633
        %v4645 = vpack.c.b16 %v4636, %v4635
        %v4646 = vpack.c.b16 %v4638, %v4637
        %v4671 = vunpack.c.l.b16 %v3082
        %v4672 = vunpack.c.l.b16 %v3083
        %v4673 = vunpack.c.l.b16 %v3084
        %v4674 = vunpack.c.l.b16 %v3085
        %v4675 = vunpack.c.l.b16 %v3086
        %v4676 = vunpack.c.l.b16 %v3087
        %v4677 = vunpack.c.l.b16 %v3088
        %v4678 = vunpack.c.l.b16 %v3089
        %v4679 = vunpack.c.l.b16 %v3090
        %v4680 = vunpack.c.l.b16 %v3091
        %v4681 = vunpack.c.l.b16 %v3092
        %v4682 = vunpack.c.l.b16 %v3093
        %v4683 = vunpack.c.l.b16 %v3094
        %v4684 = vunpack.c.l.b16 %v3095
        %v4685 = vunpack.c.l.b16 %v3096
        %v4686 = vunpack.c.l.b16 %v3097
        %v4687 = vpack.c.b16 %v4672, %v4671
        %v4688 = vpack.c.b16 %v4674, %v4673
        %v4689 = vpack.c.b16 %v4676, %v4675
        %v4690 = vpack.c.b16 %v4678, %v4677
        %v4691 = vpack.c.b16 %v4680, %v4679
        %v4692 = vpack.c.b16 %v4682, %v4681
        %v4693 = vpack.c.b16 %v4684, %v4683
        %v4694 = vpack.c.b16 %v4686, %v4685
        %4703 = vmatprep.subr.bf16.mxu0 0
        %4704 = vmatpush1.bf16.msra.mxu0 %v4694
        %4705 = vmatprep.subr.bf16.mxu0 0
        %4706 = vmatpush1.bf16.msra.mxu0 %v4693
        %4707 = vmatprep.subr.bf16.mxu0 0
        %4708 = vmatpush1.bf16.msra.mxu0 %v4692
        %4709 = vmatprep.subr.bf16.mxu0 0
        %4710 = vmatpush1.bf16.msra.mxu0 %v4691
        %4711 = vmatprep.subr.bf16.mxu0 0
        %4712 = vmatpush1.bf16.msra.mxu0 %v4690
        %4713 = vmatprep.subr.bf16.mxu0 0
        %4714 = vmatpush1.bf16.msra.mxu0 %v4689
        %4715 = vmatprep.subr.bf16.mxu0 0
        %4716 = vmatpush1.bf16.msra.mxu0 %v4688
        %4717 = vmatprep.subr.bf16.mxu0 0
        %4718 = vmatpush1.bf16.msra.mxu0 %v4687
        %4719 = vmatprep.subr.bf16.mxu0 0
        %4720 = vmatpush2.bf16.msra.mxu0 0
        %4721 = vmatprep.subr.bf16.mxu0 0
        %4722 = vmatpush2.bf16.msra.mxu0 0
        %4723 = vmatprep.subr.bf16.mxu0 0
        %4724 = vmatpush2.bf16.msra.mxu0 0
        %4725 = vmatprep.subr.bf16.mxu0 0
        %4726 = vmatpush2.bf16.msra.mxu0 0
        %4727 = vmatprep.subr.bf16.mxu0 0
        %4728 = vmatpush2.bf16.msra.mxu0 0
        %4729 = vmatprep.subr.bf16.mxu0 0
        %4730 = vmatpush2.bf16.msra.mxu0 0
        %4731 = vmatprep.subr.bf16.mxu0 0
        %4732 = vmatpush2.bf16.msra.mxu0 0
        %4733 = vmatprep.subr.bf16.mxu0 0
        %4734 = vmatpush2.bf16.msra.mxu0 0
        %4735 = vmatprep.mubr.bf16.mxu0 0
        %4736 = vmatmul.mubr.bf16.gmra.mxu0 %v4639
        %v4737 = vpop.f32.mrf.mxu0
        %v4738 = vadd.f32 %v4545, %v4737
        %v4739 = vpop.f32.mrf.mxu0
        %v4740 = vpop.f32.mrf.mxu0
        %v4741 = vadd.f32 %v4548, %v4740
        %v4742 = vpop.f32.mrf.mxu0
        %4743 = vmatprep.mubr.bf16.mxu0 0
        %4744 = vmatmul.mubr.bf16.gmra.mxu0 %v4640
        %v4745 = vpop.f32.mrf.mxu0
        %v4746 = vadd.f32 %v4553, %v4745
        %v4747 = vpop.f32.mrf.mxu0
        %v4748 = vpop.f32.mrf.mxu0
        %v4749 = vadd.f32 %v4556, %v4748
        %v4750 = vpop.f32.mrf.mxu0
        %4751 = vmatprep.mubr.bf16.mxu0 0
        %4752 = vmatmul.mubr.bf16.gmra.mxu0 %v4641
        %v4753 = vpop.f32.mrf.mxu0
        %v4754 = vadd.f32 %v4561, %v4753
        %v4755 = vpop.f32.mrf.mxu0
        %v4756 = vpop.f32.mrf.mxu0
        %v4757 = vadd.f32 %v4564, %v4756
        %v4758 = vpop.f32.mrf.mxu0
        %4759 = vmatprep.mubr.bf16.mxu0 0
        %4760 = vmatmul.mubr.bf16.gmra.mxu0 %v4642
        %v4761 = vpop.f32.mrf.mxu0
        %v4762 = vadd.f32 %v4569, %v4761
        %v4763 = vpop.f32.mrf.mxu0
        %v4764 = vpop.f32.mrf.mxu0
        %v4765 = vadd.f32 %v4572, %v4764
        %v4766 = vpop.f32.mrf.mxu0
        %4767 = vmatprep.mubr.bf16.mxu0 0
        %4768 = vmatmul.mubr.bf16.gmra.mxu0 %v4643
        %v4769 = vpop.f32.mrf.mxu0
        %v4770 = vadd.f32 %v4577, %v4769
        %v4771 = vpop.f32.mrf.mxu0
        %v4772 = vpop.f32.mrf.mxu0
        %v4773 = vadd.f32 %v4580, %v4772
        %v4774 = vpop.f32.mrf.mxu0
        %4775 = vmatprep.mubr.bf16.mxu0 0
        %4776 = vmatmul.mubr.bf16.gmra.mxu0 %v4644
        %v4777 = vpop.f32.mrf.mxu0
        %v4778 = vadd.f32 %v4585, %v4777
        %v4779 = vpop.f32.mrf.mxu0
        %v4780 = vpop.f32.mrf.mxu0
        %v4781 = vadd.f32 %v4588, %v4780
        %v4782 = vpop.f32.mrf.mxu0
        %4783 = vmatprep.mubr.bf16.mxu0 0
        %4784 = vmatmul.mubr.bf16.gmra.mxu0 %v4645
        %v4785 = vpop.f32.mrf.mxu0
        %v4786 = vadd.f32 %v4593, %v4785
        %v4787 = vpop.f32.mrf.mxu0
        %v4788 = vpop.f32.mrf.mxu0
        %v4789 = vadd.f32 %v4596, %v4788
        %v4790 = vpop.f32.mrf.mxu0
        %4791 = vmatprep.mubr.bf16.mxu0 0
        %4792 = vmatmul.mubr.bf16.gmra.mxu0 %v4646
        %v4793 = vpop.f32.mrf.mxu0
        %v4794 = vadd.f32 %v4601, %v4793
        %v4795 = vpop.f32.mrf.mxu0
        %v4796 = vpop.f32.mrf.mxu0
        %v4797 = vadd.f32 %v4604, %v4796
        %v4798 = vpop.f32.mrf.mxu0
        %4799 = vdwg.mxu0
        %v4800 = vld [vmem:[%s411] sm:$0xf]
        %v4801 = vld [vmem:[%s411 + $0x4] sm:$0xf]
        %v4802 = vld [vmem:[%s411 + $0x8] sm:$0xf]
        %v4803 = vld [vmem:[%s411 + $0xc] sm:$0xf]
        %v4804 = vld [vmem:[%s411 + $0x10] sm:$0xf]
        %v4805 = vld [vmem:[%s411 + $0x14] sm:$0xf]
        %v4806 = vld [vmem:[%s411 + $0x18] sm:$0xf]
        %v4807 = vld [vmem:[%s411 + $0x1c] sm:$0xf]
        %v4808 = vld [vmem:[%s411 + $0x20] sm:$0xf]
        %v4809 = vld [vmem:[%s411 + $0x24] sm:$0xf]
        %v4810 = vld [vmem:[%s411 + $0x28] sm:$0xf]
        %v4811 = vld [vmem:[%s411 + $0x2c] sm:$0xf]
        %v4812 = vld [vmem:[%s411 + $0x30] sm:$0xf]
        %v4813 = vld [vmem:[%s411 + $0x34] sm:$0xf]
        %v4814 = vld [vmem:[%s411 + $0x38] sm:$0xf]
        %v4815 = vld [vmem:[%s411 + $0x3c] sm:$0xf]
        %v4816 = vld [vmem:[#allocation12] sm:$0xf]
        %v4817 = vld [vmem:[#allocation12 + $0x4] sm:$0xf]
        %v4818 = vld [vmem:[#allocation12 + $0x8] sm:$0xf]
        %v4819 = vld [vmem:[#allocation12 + $0xc] sm:$0xf]
        %v4820 = vld [vmem:[#allocation12 + $0x10] sm:$0xf]
        %v4821 = vld [vmem:[#allocation12 + $0x14] sm:$0xf]
        %v4822 = vld [vmem:[#allocation12 + $0x18] sm:$0xf]
        %v4823 = vld [vmem:[#allocation12 + $0x1c] sm:$0xf]
        %v4824 = vld [vmem:[#allocation12 + $0x20] sm:$0xf]
        %v4825 = vld [vmem:[#allocation12 + $0x24] sm:$0xf]
        %v4826 = vld [vmem:[#allocation12 + $0x28] sm:$0xf]
        %v4827 = vld [vmem:[#allocation12 + $0x2c] sm:$0xf]
        %v4828 = vld [vmem:[#allocation12 + $0x30] sm:$0xf]
        %v4829 = vld [vmem:[#allocation12 + $0x34] sm:$0xf]
        %v4830 = vld [vmem:[#allocation12 + $0x38] sm:$0xf]
        %v4831 = vld [vmem:[#allocation12 + $0x3c] sm:$0xf]
        %v4848 = vunpack.c.l.b16 %v4800
        %v4849 = vunpack.c.l.b16 %v4801
        %v4850 = vunpack.c.l.b16 %v4802
        %v4851 = vunpack.c.l.b16 %v4803
        %v4852 = vunpack.c.l.b16 %v4804
        %v4853 = vunpack.c.l.b16 %v4805
        %v4854 = vunpack.c.l.b16 %v4806
        %v4855 = vunpack.c.l.b16 %v4807
        %v4856 = vunpack.c.l.b16 %v4808
        %v4857 = vunpack.c.l.b16 %v4809
        %v4858 = vunpack.c.l.b16 %v4810
        %v4859 = vunpack.c.l.b16 %v4811
        %v4860 = vunpack.c.l.b16 %v4812
        %v4861 = vunpack.c.l.b16 %v4813
        %v4862 = vunpack.c.l.b16 %v4814
        %v4863 = vunpack.c.l.b16 %v4815
        %v4864 = vpack.c.b16 %v4849, %v4848
        %v4865 = vpack.c.b16 %v4851, %v4850
        %v4866 = vpack.c.b16 %v4853, %v4852
        %v4867 = vpack.c.b16 %v4855, %v4854
        %v4868 = vpack.c.b16 %v4857, %v4856
        %v4869 = vpack.c.b16 %v4859, %v4858
        %v4870 = vpack.c.b16 %v4861, %v4860
        %v4871 = vpack.c.b16 %v4863, %v4862
        %v4896 = vunpack.c.l.b16 %v4816
        %v4897 = vunpack.c.l.b16 %v4817
        %v4898 = vunpack.c.l.b16 %v4818
        %v4899 = vunpack.c.l.b16 %v4819
        %v4900 = vunpack.c.l.b16 %v4820
        %v4901 = vunpack.c.l.b16 %v4821
        %v4902 = vunpack.c.l.b16 %v4822
        %v4903 = vunpack.c.l.b16 %v4823
        %v4904 = vunpack.c.l.b16 %v4824
        %v4905 = vunpack.c.l.b16 %v4825
        %v4906 = vunpack.c.l.b16 %v4826
        %v4907 = vunpack.c.l.b16 %v4827
        %v4908 = vunpack.c.l.b16 %v4828
        %v4909 = vunpack.c.l.b16 %v4829
        %v4910 = vunpack.c.l.b16 %v4830
        %v4911 = vunpack.c.l.b16 %v4831
        %v4912 = vpack.c.b16 %v4897, %v4896
        %v4913 = vpack.c.b16 %v4899, %v4898
        %v4914 = vpack.c.b16 %v4901, %v4900
        %v4915 = vpack.c.b16 %v4903, %v4902
        %v4916 = vpack.c.b16 %v4905, %v4904
        %v4917 = vpack.c.b16 %v4907, %v4906
        %v4918 = vpack.c.b16 %v4909, %v4908
        %v4919 = vpack.c.b16 %v4911, %v4910
        %4928 = vmatprep.subr.bf16.mxu0 0
        %4929 = vmatpush1.bf16.msra.mxu0 %v4919
        %4930 = vmatprep.subr.bf16.mxu0 0
        %4931 = vmatpush1.bf16.msra.mxu0 %v4918
        %4932 = vmatprep.subr.bf16.mxu0 0
        %4933 = vmatpush1.bf16.msra.mxu0 %v4917
        %4934 = vmatprep.subr.bf16.mxu0 0
        %4935 = vmatpush1.bf16.msra.mxu0 %v4916
        %4936 = vmatprep.subr.bf16.mxu0 0
        %4937 = vmatpush1.bf16.msra.mxu0 %v4915
        %4938 = vmatprep.subr.bf16.mxu0 0
        %4939 = vmatpush1.bf16.msra.mxu0 %v4914
        %4940 = vmatprep.subr.bf16.mxu0 0
        %4941 = vmatpush1.bf16.msra.mxu0 %v4913
        %4942 = vmatprep.subr.bf16.mxu0 0
        %4943 = vmatpush1.bf16.msra.mxu0 %v4912
        %4944 = vmatprep.subr.bf16.mxu0 0
        %4945 = vmatpush2.bf16.msra.mxu0 0
        %4946 = vmatprep.subr.bf16.mxu0 0
        %4947 = vmatpush2.bf16.msra.mxu0 0
        %4948 = vmatprep.subr.bf16.mxu0 0
        %4949 = vmatpush2.bf16.msra.mxu0 0
        %4950 = vmatprep.subr.bf16.mxu0 0
        %4951 = vmatpush2.bf16.msra.mxu0 0
        %4952 = vmatprep.subr.bf16.mxu0 0
        %4953 = vmatpush2.bf16.msra.mxu0 0
        %4954 = vmatprep.subr.bf16.mxu0 0
        %4955 = vmatpush2.bf16.msra.mxu0 0
        %4956 = vmatprep.subr.bf16.mxu0 0
        %4957 = vmatpush2.bf16.msra.mxu0 0
        %4958 = vmatprep.subr.bf16.mxu0 0
        %4959 = vmatpush2.bf16.msra.mxu0 0
        %4960 = vmatprep.mubr.bf16.mxu0 0
        %4961 = vmatmul.mubr.bf16.gmra.mxu0 %v4864
        %v4962 = vpop.f32.mrf.mxu0
        %v4963 = vadd.f32 0.0, %v4962
        %v4964 = vpop.f32.mrf.mxu0
        %v4965 = vpop.f32.mrf.mxu0
        %v4966 = vadd.f32 0.0, %v4965
        %v4967 = vpop.f32.mrf.mxu0
        %4968 = vmatprep.mubr.bf16.mxu0 0
        %4969 = vmatmul.mubr.bf16.gmra.mxu0 %v4865
        %v4970 = vpop.f32.mrf.mxu0
        %v4971 = vadd.f32 0.0, %v4970
        %v4972 = vpop.f32.mrf.mxu0
        %v4973 = vpop.f32.mrf.mxu0
        %v4974 = vadd.f32 0.0, %v4973
        %v4975 = vpop.f32.mrf.mxu0
        %4976 = vmatprep.mubr.bf16.mxu0 0
        %4977 = vmatmul.mubr.bf16.gmra.mxu0 %v4866
        %v4978 = vpop.f32.mrf.mxu0
        %v4979 = vadd.f32 0.0, %v4978
        %v4980 = vpop.f32.mrf.mxu0
        %v4981 = vpop.f32.mrf.mxu0
        %v4982 = vadd.f32 0.0, %v4981
        %v4983 = vpop.f32.mrf.mxu0
        %4984 = vmatprep.mubr.bf16.mxu0 0
        %4985 = vmatmul.mubr.bf16.gmra.mxu0 %v4867
        %v4986 = vpop.f32.mrf.mxu0
        %v4987 = vadd.f32 0.0, %v4986
        %v4988 = vpop.f32.mrf.mxu0
        %v4989 = vpop.f32.mrf.mxu0
        %v4990 = vadd.f32 0.0, %v4989
        %v4991 = vpop.f32.mrf.mxu0
        %4992 = vmatprep.mubr.bf16.mxu0 0
        %4993 = vmatmul.mubr.bf16.gmra.mxu0 %v4868
        %v4994 = vpop.f32.mrf.mxu0
        %v4995 = vadd.f32 0.0, %v4994
        %v4996 = vpop.f32.mrf.mxu0
        %v4997 = vpop.f32.mrf.mxu0
        %v4998 = vadd.f32 0.0, %v4997
        %v4999 = vpop.f32.mrf.mxu0
        %5000 = vmatprep.mubr.bf16.mxu0 0
        %5001 = vmatmul.mubr.bf16.gmra.mxu0 %v4869
        %v5002 = vpop.f32.mrf.mxu0
        %v5003 = vadd.f32 0.0, %v5002
        %v5004 = vpop.f32.mrf.mxu0
        %v5005 = vpop.f32.mrf.mxu0
        %v5006 = vadd.f32 0.0, %v5005
        %v5007 = vpop.f32.mrf.mxu0
        %5008 = vmatprep.mubr.bf16.mxu0 0
        %5009 = vmatmul.mubr.bf16.gmra.mxu0 %v4870
        %v5010 = vpop.f32.mrf.mxu0
        %v5011 = vadd.f32 0.0, %v5010
        %v5012 = vpop.f32.mrf.mxu0
        %v5013 = vpop.f32.mrf.mxu0
        %v5014 = vadd.f32 0.0, %v5013
        %v5015 = vpop.f32.mrf.mxu0
        %5016 = vmatprep.mubr.bf16.mxu0 0
        %5017 = vmatmul.mubr.bf16.gmra.mxu0 %v4871
        %v5018 = vpop.f32.mrf.mxu0
        %v5019 = vadd.f32 0.0, %v5018
        %v5020 = vpop.f32.mrf.mxu0
        %v5021 = vpop.f32.mrf.mxu0
        %v5022 = vadd.f32 0.0, %v5021
        %v5023 = vpop.f32.mrf.mxu0
        %5024 = vdwg.mxu0
        %5025 = vst [vmem:[%s448] sm:$0xff] %v4738
        %5026 = vst [vmem:[%s448 + $0x8] sm:$0xff] %v4741
        %5027 = vst [vmem:[%s448 + $0x10] sm:$0xff] %v4746
        %5028 = vst [vmem:[%s448 + $0x18] sm:$0xff] %v4749
        %5029 = vst [vmem:[%s448 + $0x20] sm:$0xff] %v4754
        %5030 = vst [vmem:[%s448 + $0x28] sm:$0xff] %v4757
        %5031 = vst [vmem:[%s448 + $0x30] sm:$0xff] %v4762
        %5032 = vst [vmem:[%s448 + $0x38] sm:$0xff] %v4765
        %5033 = vst [vmem:[%s448 + $0x40] sm:$0xff] %v4770
        %5034 = vst [vmem:[%s448 + $0x48] sm:$0xff] %v4773
        %5035 = vst [vmem:[%s448 + $0x50] sm:$0xff] %v4778
        %5036 = vst [vmem:[%s448 + $0x58] sm:$0xff] %v4781
        %5037 = vst [vmem:[%s448 + $0x60] sm:$0xff] %v4786
        %5038 = vst [vmem:[%s448 + $0x68] sm:$0xff] %v4789
        %5039 = vst [vmem:[%s448 + $0x70] sm:$0xff] %v4794
        %5040 = vst [vmem:[%s448 + $0x78] sm:$0xff] %v4797
        %5041 = vst [vmem:[%s455] sm:$0xff] %v4963
        %5042 = vst [vmem:[%s455 + $0x8] sm:$0xff] %v4966
        %5043 = vst [vmem:[%s455 + $0x10] sm:$0xff] %v4971
        %5044 = vst [vmem:[%s455 + $0x18] sm:$0xff] %v4974
        %5045 = vst [vmem:[%s455 + $0x20] sm:$0xff] %v4979
        %5046 = vst [vmem:[%s455 + $0x28] sm:$0xff] %v4982
        %5047 = vst [vmem:[%s455 + $0x30] sm:$0xff] %v4987
        %5048 = vst [vmem:[%s455 + $0x38] sm:$0xff] %v4990
        %5049 = vst [vmem:[%s455 + $0x40] sm:$0xff] %v4995
        %5050 = vst [vmem:[%s455 + $0x48] sm:$0xff] %v4998
        %5051 = vst [vmem:[%s455 + $0x50] sm:$0xff] %v5003
        %5052 = vst [vmem:[%s455 + $0x58] sm:$0xff] %v5006
        %5053 = vst [vmem:[%s455 + $0x60] sm:$0xff] %v5011
        %5054 = vst [vmem:[%s455 + $0x68] sm:$0xff] %v5014
        %5055 = vst [vmem:[%s455 + $0x70] sm:$0xff] %v5019
        %5056 = vst [vmem:[%s455 + $0x78] sm:$0xff] %v5022
        %v5057 = vadd.f32 %v4738, %v4741
        %v5058 = vadd.f32 %v5057, %v4746
        %v5059 = vadd.f32 %v5058, %v4749
        %v5060 = vadd.f32 %v5059, %v4754
        %v5061 = vadd.f32 %v5060, %v4757
        %v5062 = vadd.f32 %v5061, %v4762
        %v5063 = vadd.f32 %v5062, %v4765
        %v5064 = vadd.f32 %v5063, %v4770
        %v5065 = vadd.f32 %v5064, %v4773
        %v5066 = vadd.f32 %v5065, %v4778
        %v5067 = vadd.f32 %v5066, %v4781
        %v5068 = vadd.f32 %v5067, %v4786
        %v5069 = vadd.f32 %v5068, %v4789
        %v5070 = vadd.f32 %v5069, %v4794
        %v5071 = vadd.f32 %v5070, %v4797
        %v5072 = vrot.slane %v5071, 4
        %v5073 = vadd.f32 %v5071, %v5072
        %v5074 = vrot.slane %v5073, 2
        %v5075 = vadd.f32 %v5073, %v5074
        %v5076 = vrot.slane %v5075, 1
        %v5077 = vadd.f32 %v5075, %v5076
        %v5078 = vmul.f32 %v4738, %v4738
        %v5079 = vmul.f32 %v4741, %v4741
        %v5080 = vmul.f32 %v4746, %v4746
        %v5081 = vmul.f32 %v4749, %v4749
        %v5082 = vmul.f32 %v4754, %v4754
        %v5083 = vmul.f32 %v4757, %v4757
        %v5084 = vmul.f32 %v4762, %v4762
        %v5085 = vmul.f32 %v4765, %v4765
        %v5086 = vmul.f32 %v4770, %v4770
        %v5087 = vmul.f32 %v4773, %v4773
        %v5088 = vmul.f32 %v4778, %v4778
        %v5089 = vmul.f32 %v4781, %v4781
        %v5090 = vmul.f32 %v4786, %v4786
        %v5091 = vmul.f32 %v4789, %v4789
        %v5092 = vmul.f32 %v4794, %v4794
        %v5093 = vmul.f32 %v4797, %v4797
        %v5094 = vadd.f32 %v5078, %v5079
        %v5095 = vadd.f32 %v5094, %v5080
        %v5096 = vadd.f32 %v5095, %v5081
        %v5097 = vadd.f32 %v5096, %v5082
        %v5098 = vadd.f32 %v5097, %v5083
        %v5099 = vadd.f32 %v5098, %v5084
        %v5100 = vadd.f32 %v5099, %v5085
        %v5101 = vadd.f32 %v5100, %v5086
        %v5102 = vadd.f32 %v5101, %v5087
        %v5103 = vadd.f32 %v5102, %v5088
        %v5104 = vadd.f32 %v5103, %v5089
        %v5105 = vadd.f32 %v5104, %v5090
        %v5106 = vadd.f32 %v5105, %v5091
        %v5107 = vadd.f32 %v5106, %v5092
        %v5108 = vadd.f32 %v5107, %v5093
        %v5109 = vrot.slane %v5108, 4
        %v5110 = vadd.f32 %v5108, %v5109
        %v5111 = vrot.slane %v5110, 2
        %v5112 = vadd.f32 %v5110, %v5111
        %v5113 = vrot.slane %v5112, 1
        %v5114 = vadd.f32 %v5112, %v5113
        %v5115 = vadd.f32 %v4963, %v4966
        %v5116 = vadd.f32 %v5115, %v4971
        %v5117 = vadd.f32 %v5116, %v4974
        %v5118 = vadd.f32 %v5117, %v4979
        %v5119 = vadd.f32 %v5118, %v4982
        %v5120 = vadd.f32 %v5119, %v4987
        %v5121 = vadd.f32 %v5120, %v4990
        %v5122 = vadd.f32 %v5121, %v4995
        %v5123 = vadd.f32 %v5122, %v4998
        %v5124 = vadd.f32 %v5123, %v5003
        %v5125 = vadd.f32 %v5124, %v5006
        %v5126 = vadd.f32 %v5125, %v5011
        %v5127 = vadd.f32 %v5126, %v5014
        %v5128 = vadd.f32 %v5127, %v5019
        %v5129 = vadd.f32 %v5128, %v5022
        %v5130 = vrot.slane %v5129, 4
        %v5131 = vadd.f32 %v5129, %v5130
        %v5132 = vrot.slane %v5131, 2
        %v5133 = vadd.f32 %v5131, %v5132
        %v5134 = vrot.slane %v5133, 1
        %v5135 = vadd.f32 %v5133, %v5134
        %v5136 = vmul.f32 %v4963, %v4963
        %v5137 = vmul.f32 %v4966, %v4966
        %v5138 = vmul.f32 %v4971, %v4971
        %v5139 = vmul.f32 %v4974, %v4974
        %v5140 = vmul.f32 %v4979, %v4979
        %v5141 = vmul.f32 %v4982, %v4982
        %v5142 = vmul.f32 %v4987, %v4987
        %v5143 = vmul.f32 %v4990, %v4990
        %v5144 = vmul.f32 %v4995, %v4995
        %v5145 = vmul.f32 %v4998, %v4998
        %v5146 = vmul.f32 %v5003, %v5003
        %v5147 = vmul.f32 %v5006, %v5006
        %v5148 = vmul.f32 %v5011, %v5011
        %v5149 = vmul.f32 %v5014, %v5014
        %v5150 = vmul.f32 %v5019, %v5019
        %v5151 = vmul.f32 %v5022, %v5022
        %v5152 = vadd.f32 %v5136, %v5137
        %v5153 = vadd.f32 %v5152, %v5138
        %v5154 = vadd.f32 %v5153, %v5139
        %v5155 = vadd.f32 %v5154, %v5140
        %v5156 = vadd.f32 %v5155, %v5141
        %v5157 = vadd.f32 %v5156, %v5142
        %v5158 = vadd.f32 %v5157, %v5143
        %v5159 = vadd.f32 %v5158, %v5144
        %v5160 = vadd.f32 %v5159, %v5145
        %v5161 = vadd.f32 %v5160, %v5146
        %v5162 = vadd.f32 %v5161, %v5147
        %v5163 = vadd.f32 %v5162, %v5148
        %v5164 = vadd.f32 %v5163, %v5149
        %v5165 = vadd.f32 %v5164, %v5150
        %v5166 = vadd.f32 %v5165, %v5151
        %v5167 = vrot.slane %v5166, 4
        %v5168 = vadd.f32 %v5166, %v5167
        %v5169 = vrot.slane %v5168, 2
        %v5170 = vadd.f32 %v5168, %v5169
        %v5171 = vrot.slane %v5170, 1
        %v5172 = vadd.f32 %v5170, %v5171
        %vm5173 = vcmask 1040384
        %v5174 = vsel %vm5173, %v5077, %v5114
        %vm5175 = vcmask 1041408
        %v5176 = vsel %vm5175, %v5174, %v5135
        %vm5177 = vcmask 1042432
        %v5178 = vsel %vm5177, %v5176, %v5172
        %vm5179 = vcmask 1043456
        %v5180 = vsel %vm5179, %v5178, 0.0
        %5181 = vst [vmem:[%s462] sm:$0xff] %v5180
        %s5182 = sand.u32 %s175, 1
        %s5183 = scalar_lea.sflag [#allocation5], %s5182
        %s5184 = sand.u32 %s175, 1
        %s5185 = smul.addr %s5184, 128
        %s5186 = scalar_lea.vmem [#allocation13], %s5185
        %s5187 = sand.u32 %s31, 1
        %s5188 = scalar_lea.sflag [#allocation15], %s5187
        %s5189 = sand.u32 %s201, 1
        %s5190 = smul.addr %s5189, 128
        %s5191 = scalar_lea.vmem [#allocation14], %s5190
        %s5192 = sand.u32 %s31, 1
        %s5193 = scalar_lea.sflag [#allocation15], %s5192
        %s5194 = sand.u32 %s227, 1
        %s5195 = smul.addr %s5194, 8
        %s5196 = scalar_lea.vmem [#allocation16], %s5195
        // Predicated region
        $region69: #{tpu_custom_call.1} parent=43 // pred_check
          %p5197 = pneg %p185
        $region70: #{tpu_custom_call.1} parent=43 // pred_check_branch
          %5199 = sbr.rel (%p5197) target = $region72
        $region71: #{tpu_custom_call.1} parent=43 // pred_region
          %s5200 = smul.u32 16, %s31
          %s5202 = ssub.s32 2048, 2048
          %5203 = vsyncadd %s5183, %s5202
          %s5204 = smul.addr %s5200, 128
          %s5205 = scalar_lea.hbm %s6, %s5204
          %s5206 = sshll.u32 %s5186, 4
          %s5207 = int_to_ptr.vmem [resolvable:$true] %s5206
          %5212 = dma.vmem_to_hbm [thread:$0]  %s5207, 2048, %s5205, %s5183, 128, 128, 8
        $region72: #{tpu_custom_call.1} parent=43 // pred_fallthru
          _
        // Predicated region
        $region73: #{tpu_custom_call.1} parent=43 // pred_check
          %p5213 = pneg %p211
        $region74: #{tpu_custom_call.1} parent=43 // pred_check_branch
          %5215 = sbr.rel (%p5213) target = $region76
        $region75: #{tpu_custom_call.1} parent=43 // pred_region
          %s5216 = smul.u32 16, %s31
          %s5218 = ssub.s32 2048, 2048
          %5219 = vsyncadd %s5188, %s5218
          %s5220 = smul.addr %s5216, 128
          %s5221 = scalar_lea.hbm %s7, %s5220
          %s5222 = sshll.u32 %s5191, 4
          %s5223 = int_to_ptr.vmem [resolvable:$true] %s5222
          %5228 = dma.vmem_to_hbm [thread:$0]  %s5223, 2048, %s5221, %s5188, 128, 128, 8
        $region76: #{tpu_custom_call.1} parent=43 // pred_fallthru
          _
        // Predicated region
        $region77: #{tpu_custom_call.1} parent=43 // pred_check
          %p5229 = pneg %p237
        $region78: #{tpu_custom_call.1} parent=43 // pred_check_branch
          %5231 = sbr.rel (%p5229) target = $region80
        $region79: #{tpu_custom_call.1} parent=43 // pred_region
          %s5233 = ssub.s32 128, 128
          %5234 = vsyncadd %s5193, %s5233
          %s5235 = smul.addr %s31, 128
          %s5236 = scalar_lea.hbm %s8, %s5235
          %s5238 = sshll.u32 %s5196, 4
          %s5239 = int_to_ptr.vmem [resolvable:$true] %s5238
          %5241 = dma.vmem_to_hbm [thread:$0]  %s5239, 128, %s5236, %s5193
        $region80: #{tpu_custom_call.1} parent=43 // pred_fallthru
          _
      $region44: #{tpu_custom_call.1} parent=5 // pred_fallthru
        _
      %p5242 = scmp.le.s32.totalorder 2, %s26
      // Predicated region
      $region81: #{tpu_custom_call.1} parent=5 // pred_check
        %p5243 = pneg %p5242
      $region82: #{tpu_custom_call.1} parent=5 // pred_check_branch
        %5245 = sbr.rel (%p5243) target = $region84
      $region83: #{tpu_custom_call.1} parent=5 // pred_region
        %s5246 = ssub.s32 %s26, 2
        // Predicated region
        $region85: #{tpu_custom_call.1} parent=83 // pred_check
          %p5247 = pneg %p191
        $region86: #{tpu_custom_call.1} parent=83 // pred_check_branch
          %5249 = sbr.rel (%p5247) target = $region88
        $region87: #{tpu_custom_call.1} parent=83 // pred_region
          %s5250 = sand.u32 %s176, 1
          %s5251 = scalar_lea.sflag [#allocation5], %s5250
          %s5252 = sand.u32 %s176, 1
          %s5253 = smul.addr %s5252, 128
          %s5254 = scalar_lea.vmem [#allocation13], %s5253
          %5255 = dma.done %s5251, 2048
        $region88: #{tpu_custom_call.1} parent=83 // pred_fallthru
          _
        // Predicated region
        $region89: #{tpu_custom_call.1} parent=83 // pred_check
          %p5256 = pneg %p217
        $region90: #{tpu_custom_call.1} parent=83 // pred_check_branch
          %5258 = sbr.rel (%p5256) target = $region92
        $region91: #{tpu_custom_call.1} parent=83 // pred_region
          %s5259 = sand.u32 %s32, 1
          %s5260 = scalar_lea.sflag [#allocation15], %s5259
          %s5261 = sand.u32 %s202, 1
          %s5262 = smul.addr %s5261, 128
          %s5263 = scalar_lea.vmem [#allocation14], %s5262
          %5264 = dma.done %s5260, 2048
        $region92: #{tpu_custom_call.1} parent=83 // pred_fallthru
          _
        // Predicated region
        $region93: #{tpu_custom_call.1} parent=83 // pred_check
          %p5265 = pneg %p243
        $region94: #{tpu_custom_call.1} parent=83 // pred_check_branch
          %5267 = sbr.rel (%p5265) target = $region96
        $region95: #{tpu_custom_call.1} parent=83 // pred_region
          %s5268 = sand.u32 %s32, 1
          %s5269 = scalar_lea.sflag [#allocation15], %s5268
          %s5270 = sand.u32 %s228, 1
          %s5271 = smul.addr %s5270, 8
          %s5272 = scalar_lea.vmem [#allocation16], %s5271
          %5273 = dma.done %s5269, 128
        $region96: #{tpu_custom_call.1} parent=83 // pred_fallthru
          _
      $region84: #{tpu_custom_call.1} parent=5 // pred_fallthru
        _
    $region6: #{tpu_custom_call.1} parent=1 // loop_footer
      %s30 = sadd.s32 1, %s26
    $region7: #{tpu_custom_call.1} parent=1 // loop_footer_branch
      %25 = sbr.rel target = $region3
    $region8: #{tpu_custom_call.1} parent=1 // loop_exit
      _
    %5274 = vsyncpa [#allocation4], 1
    %s5275 = scalar_lea.sflag [#allocation4], 1
    %5276 = vsyncpa %s5275, 1
    %5277 = vsyncpa [#allocation7], 1
    %5278 = vsyncpa [#allocation10], 1
    %5279 = vsyncpa [#allocation5], 1
    %s5280 = scalar_lea.sflag [#allocation5], 1
    %5281 = vsyncpa %s5280, 1
    %5282 = vsyncpa [#allocation15], 1
    %s5283 = scalar_lea.sflag [#allocation15], 1
    %5284 = vsyncpa %s5283, 1

</llo_original>
